<compile_context>
chip_gen: v7x
topology: tpu7x:2x2x1
jax: 0.10.0
libtpu: 0.0.40
codegen_flags: <defaults>
</compile_context>

<pallas_src>
import numpy as np
import jax
import jax.numpy as jnp
from jax.experimental import pallas as pl
from jax.experimental.pallas import tpu as pltpu

IMG_SHAPE = (1, 28, 28)
LATENT_DIM = 100
LATENT_PAD = 128                       # 100 zero-padded to a full lane tile
IMG_FLAT = int(np.prod(IMG_SHAPE))     # 784
IMG_FLAT_PAD = 896                     # 7 * 128, lane-dense output store
LEAKY_SLOPE = 0.2
BN_EPS = 0.8                           # nn.BatchNorm1d(out_feat, 0.8) -> eps=0.8
PARAM_ROWS = 8                         # packed per-feature param slab rows
PARAM_COLS = 1024                      # widest per-feature param


def _leaky_relu(x):
    return jnp.where(x >= 0, x, LEAKY_SLOPE * x)


def _bn_leaky(h, gamma, beta):
    # Training-mode BatchNorm1d over the batch axis (biased variance), one-pass
    # stats (mean(h^2) - mean^2), fused into a single scale/shift FMA, then
    # LeakyReLU(0.2). Stats in f32; eps=0.8 keeps rsqrt safe.
    mean = jnp.mean(h, axis=0, keepdims=True)
    var = jnp.maximum(jnp.mean(h * h, axis=0, keepdims=True) - mean * mean, 0.0)
    scale = gamma * jax.lax.rsqrt(var + BN_EPS)
    shift = beta - mean * scale
    return _leaky_relu(h * scale + shift)


def generator_kernel(
    z_ref,                      # (B, 128) bf16               VMEM
    w1_ref, w2_ref,             # bf16 weights                 VMEM (auto-DMA)
    w3_hbm, w4_hbm, w5_hbm,     # bf16 weights                 HBM (manual DMA)
    params_ref,                 # (8, 1024) f32 packed slab    VMEM
    out_ref,                    # (B, 896) f32                 VMEM
    w3_buf, w4_buf, w5_buf,     # VMEM scratch for streamed weights
    dma_sems,                   # DMA semaphores (3,)
):
    # Kick off the big-weight DMAs immediately; layers 1-2 hide their latency.
    w3_cp = pltpu.make_async_copy(w3_hbm, w3_buf, dma_sems.at[0])
    w4_cp = pltpu.make_async_copy(w4_hbm, w4_buf, dma_sems.at[1])
    w5_cp = pltpu.make_async_copy(w5_hbm, w5_buf, dma_sems.at[2])
    w3_cp.start()
    w4_cp.start()
    w5_cp.start()

    # Static slices of the packed per-feature parameter slab (lane-aligned).
    b1 = params_ref[0:1, :128]
    g2 = params_ref[1:2, :256]
    be2 = params_ref[2:3, :256]
    g3 = params_ref[3:4, :512]
    be3 = params_ref[4:5, :512]
    g4 = params_ref[5:6, :1024]
    be4 = params_ref[6:7, :1024]
    b5 = params_ref[7:8, :IMG_FLAT_PAD]

    # block(latent_dim, 128, normalize=False): Linear + bias + LeakyReLU
    h = jnp.dot(z_ref[...], w1_ref[...], preferred_element_type=jnp.float32)
    h = _leaky_relu(h + b1)

    # block(128, 256): Linear (bias dropped — cancelled by BN) + BN + LeakyReLU
    h = jnp.dot(h.astype(jnp.bfloat16), w2_ref[...],
                preferred_element_type=jnp.float32)
    h = _bn_leaky(h, g2, be2)

    # block(256, 512)
    w3_cp.wait()
    h = jnp.dot(h.astype(jnp.bfloat16), w3_buf[...],
                preferred_element_type=jnp.float32)
    h = _bn_leaky(h, g3, be3)

    # block(512, 1024)
    w4_cp.wait()
    h = jnp.dot(h.astype(jnp.bfloat16), w4_buf[...],
                preferred_element_type=jnp.float32)
    h = _bn_leaky(h, g4, be4)

    # Linear(1024, 784 padded to 896) + Tanh  (padded lanes are zero-weight,
    # zero-bias -> tanh(0)=0, sliced off in the wrapper)
    w5_cp.wait()
    h = jnp.dot(h.astype(jnp.bfloat16), w5_buf[...],
                preferred_element_type=jnp.float32)
    out_ref[...] = jnp.tanh(h + b5)


def init_params(key):
    """PyTorch-style Linear init; weights stored bf16, per-feature params f32.

    Only biases that survive the math are kept (layer 1 and layer 5); the
    pre-BatchNorm biases of layers 2-4 are dropped because training-mode BN
    cancels them exactly. All per-feature vectors (b1, BN gamma/beta x3, b5)
    are packed into a single (8, 1024) f32 slab, one row each, zero padded.
    """
    dims = [(LATENT_DIM, 128), (128, 256), (256, 512), (512, 1024),
            (1024, IMG_FLAT)]
    keys = jax.random.split(key, len(dims))

    weights = []
    biases = []
    for i, ((din, dout), k) in enumerate(zip(dims, keys)):
        bound = 1.0 / np.sqrt(din)
        kw, kb = jax.random.split(k)
        w = jax.random.uniform(kw, (din, dout), jnp.float32, -bound, bound)
        b = jax.random.uniform(kb, (dout,), jnp.float32, -bound, bound)
        if i == 0:
            # zero-pad the contracting (latent) dim 100 -> 128
            w = jnp.pad(w, ((0, LATENT_PAD - din), (0, 0)))
        if i == len(dims) - 1:
            # zero-pad the output dim 784 -> 896 for lane-dense stores
            w = jnp.pad(w, ((0, 0), (0, IMG_FLAT_PAD - dout)))
            b = jnp.pad(b, (0, IMG_FLAT_PAD - dout))
        weights.append(w.astype(jnp.bfloat16))
        biases.append(b)

    # BatchNorm affine params (f32) for the 3 normalized blocks.
    bn_rows = []
    for dout in (256, 512, 1024):
        bn_rows.append(jnp.ones((dout,), jnp.float32))    # gamma
        bn_rows.append(jnp.zeros((dout,), jnp.float32))   # beta
    # Interleave so rows are: b1, g2, be2, g3, be3, g4, be4, b5.
    rows = [biases[0]] + bn_rows + [biases[4]]
    slab = jnp.zeros((PARAM_ROWS, PARAM_COLS), jnp.float32)
    for i, r in enumerate(rows):
        slab = slab.at[i, : r.shape[0]].set(r)

    params = {
        "w1": weights[0], "w2": weights[1], "w3": weights[2],
        "w4": weights[3], "w5": weights[4],
        "slab": slab,
    }
    return params


@jax.jit
def generator_forward(real_imgs, params, z_key):
    """Mirrors Generator.forward: draws z ~ N(0,1) of shape (B, latent_dim)."""
    B = real_imgs.shape[0]
    z = jax.random.normal(z_key, (B, LATENT_DIM), jnp.float32)
    # Zero-pad latent 100 -> 128 and feed the matmul input as bf16.
    z = jnp.pad(z, ((0, 0), (0, LATENT_PAD - LATENT_DIM))).astype(jnp.bfloat16)

    vmem = pl.BlockSpec(memory_space=pltpu.MemorySpace.VMEM)
    anym = pl.BlockSpec(memory_space=pl.ANY)

    img_flat_pad = pl.pallas_call(
        generator_kernel,
        out_shape=jax.ShapeDtypeStruct((B, IMG_FLAT_PAD), jnp.float32),
        in_specs=[vmem,                 # z
                  vmem, vmem,           # w1, w2 (small, auto-DMA)
                  anym, anym, anym,     # w3, w4, w5 (streamed in-kernel)
                  vmem],                # packed per-feature params
        out_specs=vmem,
        scratch_shapes=[
            pltpu.VMEM((256, 512), jnp.bfloat16),            # w3 buffer
            pltpu.VMEM((512, 1024), jnp.bfloat16),           # w4 buffer
            pltpu.VMEM((1024, IMG_FLAT_PAD), jnp.bfloat16),  # w5 buffer
            pltpu.SemaphoreType.DMA((3,)),
        ],
        # ~3.2 MiB real footprint; 16 MiB leaves ample headroom even on v7x's
        # 64 MiB physical VMEM.
        compiler_params=pltpu.CompilerParams(vmem_limit_bytes=16 << 20),
    )(z, params["w1"], params["w2"], params["w3"], params["w4"], params["w5"],
      params["slab"])

    # Drop the lane padding, then img.view(B, *img_shape) -> NCHW.
    return img_flat_pad[:, :IMG_FLAT].reshape(B, *IMG_SHAPE)


if __name__ == "__main__":
    key = jax.random.PRNGKey(0)
    k_params, k_imgs, k_z = jax.random.split(key, 3)

    # Small example input (only its batch size is used, like the PyTorch forward).
    real_imgs = jax.random.normal(k_imgs, (8, *IMG_SHAPE), jnp.float32)

    params = init_params(k_params)
    img = generator_forward(real_imgs, params, k_z)
    jax.block_until_ready(img)

    assert img.shape == (8, 1, 28, 28)
    assert img.dtype == jnp.float32
    assert bool(jnp.all(jnp.abs(img) <= 1.0))      # tanh range
    assert bool(jnp.all(jnp.isfinite(img)))
    print("KERNEL_OK")
</pallas_src>

<mosaic_0001>
module attributes {stable_mosaic.version = 11 : i64} {
  func.func @generator_kernel(%arg0: memref<8x128xbf16, #tpu.memory_space<vmem>>, %arg1: memref<128x128xbf16, #tpu.memory_space<vmem>>, %arg2: memref<128x256xbf16, #tpu.memory_space<vmem>>, %arg3: memref<256x512xbf16, #tpu.memory_space<any>>, %arg4: memref<512x1024xbf16, #tpu.memory_space<any>>, %arg5: memref<1024x896xbf16, #tpu.memory_space<any>>, %arg6: memref<8x1024xf32, #tpu.memory_space<vmem>>, %arg7: memref<8x896xf32, #tpu.memory_space<vmem>>, %arg8: memref<256x512xbf16, #tpu.memory_space<vmem>>, %arg9: memref<512x1024xbf16, #tpu.memory_space<vmem>>, %arg10: memref<1024x896xbf16, #tpu.memory_space<vmem>>, %arg11: memref<3x!tpu.dma_semaphore, #tpu.memory_space<semaphore_mem>>) attributes {dimension_semantics = [], scalar_prefetch = 0 : i64, scratch_operands = 4 : i64, tpu.core_type = #tpu.core_type<tc>} {
    %c0_i32 = arith.constant 0 : i32
    %0 = tpu.memref_slice %arg11[%c0_i32] : memref<3x!tpu.dma_semaphore, #tpu.memory_space<semaphore_mem>> -> memref<1x!tpu.dma_semaphore, #tpu.memory_space<semaphore_mem>>
    %1 = tpu.memref_squeeze %0 : memref<1x!tpu.dma_semaphore, #tpu.memory_space<semaphore_mem>> -> memref<!tpu.dma_semaphore, #tpu.memory_space<semaphore_mem>>
    tpu.enqueue_dma source(%arg3 : memref<256x512xbf16, #tpu.memory_space<any>>) target(%arg8 : memref<256x512xbf16, #tpu.memory_space<vmem>>) target_semaphore(%1 : memref<!tpu.dma_semaphore, #tpu.memory_space<semaphore_mem>>)
    %c1_i32 = arith.constant 1 : i32
    %2 = tpu.memref_slice %arg11[%c1_i32] : memref<3x!tpu.dma_semaphore, #tpu.memory_space<semaphore_mem>> -> memref<1x!tpu.dma_semaphore, #tpu.memory_space<semaphore_mem>>
    %3 = tpu.memref_squeeze %2 : memref<1x!tpu.dma_semaphore, #tpu.memory_space<semaphore_mem>> -> memref<!tpu.dma_semaphore, #tpu.memory_space<semaphore_mem>>
    tpu.enqueue_dma source(%arg4 : memref<512x1024xbf16, #tpu.memory_space<any>>) target(%arg9 : memref<512x1024xbf16, #tpu.memory_space<vmem>>) target_semaphore(%3 : memref<!tpu.dma_semaphore, #tpu.memory_space<semaphore_mem>>)
    %c2_i32 = arith.constant 2 : i32
    %4 = tpu.memref_slice %arg11[%c2_i32] : memref<3x!tpu.dma_semaphore, #tpu.memory_space<semaphore_mem>> -> memref<1x!tpu.dma_semaphore, #tpu.memory_space<semaphore_mem>>
    %5 = tpu.memref_squeeze %4 : memref<1x!tpu.dma_semaphore, #tpu.memory_space<semaphore_mem>> -> memref<!tpu.dma_semaphore, #tpu.memory_space<semaphore_mem>>
    tpu.enqueue_dma source(%arg5 : memref<1024x896xbf16, #tpu.memory_space<any>>) target(%arg10 : memref<1024x896xbf16, #tpu.memory_space<vmem>>) target_semaphore(%5 : memref<!tpu.dma_semaphore, #tpu.memory_space<semaphore_mem>>)
    %c0 = arith.constant 0 : index
    %c0_0 = arith.constant 0 : index
    %6 = vector.load %arg6[%c0, %c0_0] : memref<8x1024xf32, #tpu.memory_space<vmem>>, vector<1x128xf32>
    %c1 = arith.constant 1 : index
    %c0_1 = arith.constant 0 : index
    %7 = vector.load %arg6[%c1, %c0_1] : memref<8x1024xf32, #tpu.memory_space<vmem>>, vector<1x256xf32>
    %c2 = arith.constant 2 : index
    %c0_2 = arith.constant 0 : index
    %8 = vector.load %arg6[%c2, %c0_2] : memref<8x1024xf32, #tpu.memory_space<vmem>>, vector<1x256xf32>
    %c3 = arith.constant 3 : index
    %c0_3 = arith.constant 0 : index
    %9 = vector.load %arg6[%c3, %c0_3] : memref<8x1024xf32, #tpu.memory_space<vmem>>, vector<1x512xf32>
    %c4 = arith.constant 4 : index
    %c0_4 = arith.constant 0 : index
    %10 = vector.load %arg6[%c4, %c0_4] : memref<8x1024xf32, #tpu.memory_space<vmem>>, vector<1x512xf32>
    %c5 = arith.constant 5 : index
    %c0_5 = arith.constant 0 : index
    %11 = vector.load %arg6[%c5, %c0_5] : memref<8x1024xf32, #tpu.memory_space<vmem>>, vector<1x1024xf32>
    %c6 = arith.constant 6 : index
    %c0_6 = arith.constant 0 : index
    %12 = vector.load %arg6[%c6, %c0_6] : memref<8x1024xf32, #tpu.memory_space<vmem>>, vector<1x1024xf32>
    %c7 = arith.constant 7 : index
    %c0_7 = arith.constant 0 : index
    %13 = vector.load %arg6[%c7, %c0_7] : memref<8x1024xf32, #tpu.memory_space<vmem>>, vector<1x896xf32>
    %c0_8 = arith.constant 0 : index
    %c0_9 = arith.constant 0 : index
    %14 = vector.load %arg0[%c0_8, %c0_9] : memref<8x128xbf16, #tpu.memory_space<vmem>>, vector<8x128xbf16>
    %c0_10 = arith.constant 0 : index
    %c0_11 = arith.constant 0 : index
    %15 = vector.load %arg1[%c0_10, %c0_11] : memref<128x128xbf16, #tpu.memory_space<vmem>>, vector<128x128xbf16>
    %cst = arith.constant dense<0.000000e+00> : vector<8x128xf32>
    %16 = tpu.matmul %14, %15, %cst {dimension_numbers = #tpu.dot_dimension_numbers<[1], [0], [0], [1], [0, 0, 1, 1], [], []>} : vector<8x128xbf16>, vector<128x128xbf16>, vector<8x128xf32> -> vector<8x128xf32>
    %17 = vector.broadcast %6 : vector<1x128xf32> to vector<8x128xf32>
    %18 = arith.addf %16, %17 : vector<8x128xf32>
    %cst_12 = arith.constant 0.000000e+00 : f32
    %19 = vector.broadcast %cst_12 : f32 to vector<8x128xf32>
    %20 = arith.cmpf oge, %18, %19 : vector<8x128xf32>
    %cst_13 = arith.constant 2.000000e-01 : f32
    %21 = vector.broadcast %cst_13 : f32 to vector<8x128xf32>
    %22 = arith.mulf %21, %18 : vector<8x128xf32>
    %23 = arith.select %20, %18, %22 : vector<8x128xi1>, vector<8x128xf32>
    %24 = arith.truncf %23 : vector<8x128xf32> to vector<8x128xbf16>
    %c0_14 = arith.constant 0 : index
    %c0_15 = arith.constant 0 : index
    %25 = vector.load %arg2[%c0_14, %c0_15] : memref<128x256xbf16, #tpu.memory_space<vmem>>, vector<128x256xbf16>
    %cst_16 = arith.constant dense<0.000000e+00> : vector<8x256xf32>
    %26 = tpu.matmul %24, %25, %cst_16 {dimension_numbers = #tpu.dot_dimension_numbers<[1], [0], [0], [1], [0, 0, 1, 1], [], []>} : vector<8x128xbf16>, vector<128x256xbf16>, vector<8x256xf32> -> vector<8x256xf32>
    %cst_17 = arith.constant dense<0.000000e+00> : vector<256xf32>
    %27 = vector.multi_reduction <add>, %26, %cst_17 [0] : vector<8x256xf32> to vector<256xf32>
    %28 = vector.shape_cast %27 : vector<256xf32> to vector<1x256xf32>
    %cst_18 = arith.constant 8.000000e+00 : f32
    %29 = vector.broadcast %cst_18 : f32 to vector<1x256xf32>
    %30 = arith.divf %28, %29 : vector<1x256xf32>
    %31 = arith.mulf %26, %26 : vector<8x256xf32>
    %cst_19 = arith.constant dense<0.000000e+00> : vector<256xf32>
    %32 = vector.multi_reduction <add>, %31, %cst_19 [0] : vector<8x256xf32> to vector<256xf32>
    %33 = vector.shape_cast %32 : vector<256xf32> to vector<1x256xf32>
    %cst_20 = arith.constant 8.000000e+00 : f32
    %34 = vector.broadcast %cst_20 : f32 to vector<1x256xf32>
    %35 = arith.divf %33, %34 : vector<1x256xf32>
    %36 = arith.mulf %30, %30 : vector<1x256xf32>
    %37 = arith.subf %35, %36 : vector<1x256xf32>
    %cst_21 = arith.constant 0.000000e+00 : f32
    %38 = vector.broadcast %cst_21 : f32 to vector<1x256xf32>
    %39 = arith.maximumf %37, %38 : vector<1x256xf32>
    %cst_22 = arith.constant 8.000000e-01 : f32
    %40 = vector.broadcast %cst_22 : f32 to vector<1x256xf32>
    %41 = arith.addf %39, %40 : vector<1x256xf32>
    %42 = math.rsqrt %41 : vector<1x256xf32>
    %43 = arith.mulf %7, %42 : vector<1x256xf32>
    %44 = arith.mulf %30, %43 : vector<1x256xf32>
    %45 = arith.subf %8, %44 : vector<1x256xf32>
    %46 = vector.broadcast %43 : vector<1x256xf32> to vector<8x256xf32>
    %47 = arith.mulf %26, %46 : vector<8x256xf32>
    %48 = vector.broadcast %45 : vector<1x256xf32> to vector<8x256xf32>
    %49 = arith.addf %47, %48 : vector<8x256xf32>
    %cst_23 = arith.constant 0.000000e+00 : f32
    %50 = vector.broadcast %cst_23 : f32 to vector<8x256xf32>
    %51 = arith.cmpf oge, %49, %50 : vector<8x256xf32>
    %cst_24 = arith.constant 2.000000e-01 : f32
    %52 = vector.broadcast %cst_24 : f32 to vector<8x256xf32>
    %53 = arith.mulf %52, %49 : vector<8x256xf32>
    %54 = arith.select %51, %49, %53 : vector<8x256xi1>, vector<8x256xf32>
    %c0_i32_25 = arith.constant 0 : i32
    %55 = tpu.memref_slice %arg11[%c0_i32_25] : memref<3x!tpu.dma_semaphore, #tpu.memory_space<semaphore_mem>> -> memref<1x!tpu.dma_semaphore, #tpu.memory_space<semaphore_mem>>
    %56 = tpu.memref_squeeze %55 : memref<1x!tpu.dma_semaphore, #tpu.memory_space<semaphore_mem>> -> memref<!tpu.dma_semaphore, #tpu.memory_space<semaphore_mem>>
    tpu.wait_dma2 semaphore(%56 : memref<!tpu.dma_semaphore, #tpu.memory_space<semaphore_mem>>) src(%arg3 : memref<256x512xbf16, #tpu.memory_space<any>>) dst(%arg8 : memref<256x512xbf16, #tpu.memory_space<vmem>>)
    %57 = arith.truncf %54 : vector<8x256xf32> to vector<8x256xbf16>
    %c0_26 = arith.constant 0 : index
    %c0_27 = arith.constant 0 : index
    %58 = vector.load %arg8[%c0_26, %c0_27] : memref<256x512xbf16, #tpu.memory_space<vmem>>, vector<256x512xbf16>
    %cst_28 = arith.constant dense<0.000000e+00> : vector<8x512xf32>
    %59 = tpu.matmul %57, %58, %cst_28 {dimension_numbers = #tpu.dot_dimension_numbers<[1], [0], [0], [1], [0, 0, 1, 1], [], []>} : vector<8x256xbf16>, vector<256x512xbf16>, vector<8x512xf32> -> vector<8x512xf32>
    %cst_29 = arith.constant dense<0.000000e+00> : vector<512xf32>
    %60 = vector.multi_reduction <add>, %59, %cst_29 [0] : vector<8x512xf32> to vector<512xf32>
    %61 = vector.shape_cast %60 : vector<512xf32> to vector<1x512xf32>
    %cst_30 = arith.constant 8.000000e+00 : f32
    %62 = vector.broadcast %cst_30 : f32 to vector<1x512xf32>
    %63 = arith.divf %61, %62 : vector<1x512xf32>
    %64 = arith.mulf %59, %59 : vector<8x512xf32>
    %cst_31 = arith.constant dense<0.000000e+00> : vector<512xf32>
    %65 = vector.multi_reduction <add>, %64, %cst_31 [0] : vector<8x512xf32> to vector<512xf32>
    %66 = vector.shape_cast %65 : vector<512xf32> to vector<1x512xf32>
    %cst_32 = arith.constant 8.000000e+00 : f32
    %67 = vector.broadcast %cst_32 : f32 to vector<1x512xf32>
    %68 = arith.divf %66, %67 : vector<1x512xf32>
    %69 = arith.mulf %63, %63 : vector<1x512xf32>
    %70 = arith.subf %68, %69 : vector<1x512xf32>
    %cst_33 = arith.constant 0.000000e+00 : f32
    %71 = vector.broadcast %cst_33 : f32 to vector<1x512xf32>
    %72 = arith.maximumf %70, %71 : vector<1x512xf32>
    %cst_34 = arith.constant 8.000000e-01 : f32
    %73 = vector.broadcast %cst_34 : f32 to vector<1x512xf32>
    %74 = arith.addf %72, %73 : vector<1x512xf32>
    %75 = math.rsqrt %74 : vector<1x512xf32>
    %76 = arith.mulf %9, %75 : vector<1x512xf32>
    %77 = arith.mulf %63, %76 : vector<1x512xf32>
    %78 = arith.subf %10, %77 : vector<1x512xf32>
    %79 = vector.broadcast %76 : vector<1x512xf32> to vector<8x512xf32>
    %80 = arith.mulf %59, %79 : vector<8x512xf32>
    %81 = vector.broadcast %78 : vector<1x512xf32> to vector<8x512xf32>
    %82 = arith.addf %80, %81 : vector<8x512xf32>
    %cst_35 = arith.constant 0.000000e+00 : f32
    %83 = vector.broadcast %cst_35 : f32 to vector<8x512xf32>
    %84 = arith.cmpf oge, %82, %83 : vector<8x512xf32>
    %cst_36 = arith.constant 2.000000e-01 : f32
    %85 = vector.broadcast %cst_36 : f32 to vector<8x512xf32>
    %86 = arith.mulf %85, %82 : vector<8x512xf32>
    %87 = arith.select %84, %82, %86 : vector<8x512xi1>, vector<8x512xf32>
    %c1_i32_37 = arith.constant 1 : i32
    %88 = tpu.memref_slice %arg11[%c1_i32_37] : memref<3x!tpu.dma_semaphore, #tpu.memory_space<semaphore_mem>> -> memref<1x!tpu.dma_semaphore, #tpu.memory_space<semaphore_mem>>
    %89 = tpu.memref_squeeze %88 : memref<1x!tpu.dma_semaphore, #tpu.memory_space<semaphore_mem>> -> memref<!tpu.dma_semaphore, #tpu.memory_space<semaphore_mem>>
    tpu.wait_dma2 semaphore(%89 : memref<!tpu.dma_semaphore, #tpu.memory_space<semaphore_mem>>) src(%arg4 : memref<512x1024xbf16, #tpu.memory_space<any>>) dst(%arg9 : memref<512x1024xbf16, #tpu.memory_space<vmem>>)
    %90 = arith.truncf %87 : vector<8x512xf32> to vector<8x512xbf16>
    %c0_38 = arith.constant 0 : index
    %c0_39 = arith.constant 0 : index
    %91 = vector.load %arg9[%c0_38, %c0_39] : memref<512x1024xbf16, #tpu.memory_space<vmem>>, vector<512x1024xbf16>
    %cst_40 = arith.constant dense<0.000000e+00> : vector<8x1024xf32>
    %92 = tpu.matmul %90, %91, %cst_40 {dimension_numbers = #tpu.dot_dimension_numbers<[1], [0], [0], [1], [0, 0, 1, 1], [], []>} : vector<8x512xbf16>, vector<512x1024xbf16>, vector<8x1024xf32> -> vector<8x1024xf32>
    %cst_41 = arith.constant dense<0.000000e+00> : vector<1024xf32>
    %93 = vector.multi_reduction <add>, %92, %cst_41 [0] : vector<8x1024xf32> to vector<1024xf32>
    %94 = vector.shape_cast %93 : vector<1024xf32> to vector<1x1024xf32>
    %cst_42 = arith.constant 8.000000e+00 : f32
    %95 = vector.broadcast %cst_42 : f32 to vector<1x1024xf32>
    %96 = arith.divf %94, %95 : vector<1x1024xf32>
    %97 = arith.mulf %92, %92 : vector<8x1024xf32>
    %cst_43 = arith.constant dense<0.000000e+00> : vector<1024xf32>
    %98 = vector.multi_reduction <add>, %97, %cst_43 [0] : vector<8x1024xf32> to vector<1024xf32>
    %99 = vector.shape_cast %98 : vector<1024xf32> to vector<1x1024xf32>
    %cst_44 = arith.constant 8.000000e+00 : f32
    %100 = vector.broadcast %cst_44 : f32 to vector<1x1024xf32>
    %101 = arith.divf %99, %100 : vector<1x1024xf32>
    %102 = arith.mulf %96, %96 : vector<1x1024xf32>
    %103 = arith.subf %101, %102 : vector<1x1024xf32>
    %cst_45 = arith.constant 0.000000e+00 : f32
    %104 = vector.broadcast %cst_45 : f32 to vector<1x1024xf32>
    %105 = arith.maximumf %103, %104 : vector<1x1024xf32>
    %cst_46 = arith.constant 8.000000e-01 : f32
    %106 = vector.broadcast %cst_46 : f32 to vector<1x1024xf32>
    %107 = arith.addf %105, %106 : vector<1x1024xf32>
    %108 = math.rsqrt %107 : vector<1x1024xf32>
    %109 = arith.mulf %11, %108 : vector<1x1024xf32>
    %110 = arith.mulf %96, %109 : vector<1x1024xf32>
    %111 = arith.subf %12, %110 : vector<1x1024xf32>
    %112 = vector.broadcast %109 : vector<1x1024xf32> to vector<8x1024xf32>
    %113 = arith.mulf %92, %112 : vector<8x1024xf32>
    %114 = vector.broadcast %111 : vector<1x1024xf32> to vector<8x1024xf32>
    %115 = arith.addf %113, %114 : vector<8x1024xf32>
    %cst_47 = arith.constant 0.000000e+00 : f32
    %116 = vector.broadcast %cst_47 : f32 to vector<8x1024xf32>
    %117 = arith.cmpf oge, %115, %116 : vector<8x1024xf32>
    %cst_48 = arith.constant 2.000000e-01 : f32
    %118 = vector.broadcast %cst_48 : f32 to vector<8x1024xf32>
    %119 = arith.mulf %118, %115 : vector<8x1024xf32>
    %120 = arith.select %117, %115, %119 : vector<8x1024xi1>, vector<8x1024xf32>
    %c2_i32_49 = arith.constant 2 : i32
    %121 = tpu.memref_slice %arg11[%c2_i32_49] : memref<3x!tpu.dma_semaphore, #tpu.memory_space<semaphore_mem>> -> memref<1x!tpu.dma_semaphore, #tpu.memory_space<semaphore_mem>>
    %122 = tpu.memref_squeeze %121 : memref<1x!tpu.dma_semaphore, #tpu.memory_space<semaphore_mem>> -> memref<!tpu.dma_semaphore, #tpu.memory_space<semaphore_mem>>
    tpu.wait_dma2 semaphore(%122 : memref<!tpu.dma_semaphore, #tpu.memory_space<semaphore_mem>>) src(%arg5 : memref<1024x896xbf16, #tpu.memory_space<any>>) dst(%arg10 : memref<1024x896xbf16, #tpu.memory_space<vmem>>)
    %123 = arith.truncf %120 : vector<8x1024xf32> to vector<8x1024xbf16>
    %c0_50 = arith.constant 0 : index
    %c0_51 = arith.constant 0 : index
    %124 = vector.load %arg10[%c0_50, %c0_51] : memref<1024x896xbf16, #tpu.memory_space<vmem>>, vector<1024x896xbf16>
    %cst_52 = arith.constant dense<0.000000e+00> : vector<8x896xf32>
    %125 = tpu.matmul %123, %124, %cst_52 {dimension_numbers = #tpu.dot_dimension_numbers<[1], [0], [0], [1], [0, 0, 1, 1], [], []>} : vector<8x1024xbf16>, vector<1024x896xbf16>, vector<8x896xf32> -> vector<8x896xf32>
    %126 = vector.broadcast %13 : vector<1x896xf32> to vector<8x896xf32>
    %127 = arith.addf %125, %126 : vector<8x896xf32>
    %128 = math.tanh %127 : vector<8x896xf32>
    %c0_53 = arith.constant 0 : index
    %c0_54 = arith.constant 0 : index
    %129 = vector.load %arg7[%c0_53, %c0_54] : memref<8x896xf32, #tpu.memory_space<vmem>>, vector<8x896xf32>
    tpu.vector_store %arg7[%c0_53, %c0_54], %128 {strides = array<i32>} : memref<8x896xf32, #tpu.memory_space<vmem>>, vector<8x896xf32>,
    return
  }
}

</mosaic_0001>

<llo_original>
// kernel: generator_forward.1
$region0: #{generator_forward.1}
  #allocation0 [shape = 'u32[]', space=smem, size = 0x4, offset = 0x4, fixed_abs, tag = 'smem constant byte address 0x4 - core index']
  #allocation1 [shape = 'u32[144,128]{1,0:T(1,128)}', space=vmem, size = 0x12000, scoped, tag = 'internal scratch']
  #allocation2 [shape = 'bf16[256,512]{1,0:T(16,128)(2,1)}', space=vmem, size = 0x40000, scoped, tag = 'scratch operand']
  #allocation3 [shape = 'bf16[512,1024]{1,0:T(16,128)(2,1)}', space=vmem, size = 0x100000, scoped, tag = 'scratch operand']
  #allocation4 [shape = 'bf16[1024,896]{1,0:T(16,128)(2,1)}', space=vmem, size = 0x1c0000, scoped, tag = 'scratch operand']
  #allocation5 [shape = 's32[3]{0}', space=sflag, size = 0xc, scoped, tag = 'scratch operand']
  #allocation11 [shape = 's32[]', space=sflag, size = 0x4, offset = 0, fixed_abs, tag = 'sflag constant byte address 0x0 - dummy sync flag']
  #allocation13 [shape = 's32[]', space=sflag, size = 0x4, offset = 0, fixed_abs, tag = 'sflag constant byte address 0x0 - dummy sync flag']
  #allocation15 [shape = 's32[]', space=sflag, size = 0x4, offset = 0, fixed_abs, tag = 'sflag constant byte address 0x0 - dummy sync flag']
  %s0 = inlined_call_operand.vmem [shape: bf16[8,128], index: 0, kind: input, shape index: {}]
  %s1 = inlined_call_operand.hbm [shape: bf16[128,128], index: 1, kind: input, shape index: {}]
  %s2 = inlined_call_operand.hbm [shape: bf16[128,256], index: 2, kind: input, shape index: {}]
  %s3 = inlined_call_operand.hbm [shape: bf16[256,512], index: 3, kind: input, shape index: {}]
  %s4 = inlined_call_operand.hbm [shape: bf16[512,1024], index: 4, kind: input, shape index: {}]
  %s5 = inlined_call_operand.hbm [shape: bf16[1024,896], index: 5, kind: input, shape index: {}]
  %s6 = inlined_call_operand.hbm [shape: f32[8,1024], index: 6, kind: input, shape index: {}]
  %s7 = inlined_call_operand.vmem [shape: f32[8,896], index: 7, kind: output, shape index: {}]
  %s8 = sld [smem:[#allocation0]]
  $region38: #{generator_forward.1} parent=0
    _
  %s10 = ssub.s32 1, %s8
  %s11 = scalar_select 0, %s10, %s8
  $region1: #{generator_forward.1} parent=0
    #allocation6 [shape = 'u8[32768]{0}', space=vmem, size = 0x8000, scoped, tag = 'input window, operand 1, single buffered']
    #allocation7 [shape = 's32[1]{0}', space=sflag, size = 0x4, scoped, tag = 'scoped memory for generator_forward.1']
    #allocation8 [shape = 'u8[65536]{0}', space=vmem, size = 0x10000, scoped, tag = 'input window, operand 2, single buffered']
    #allocation9 [shape = 's32[1]{0}', space=sflag, size = 0x4, scoped, tag = 'scoped memory for generator_forward.1']
    #allocation10 [shape = 'u8[32768]{0}', space=vmem, size = 0x8000, scoped, tag = 'input window, operand 6, single buffered']
    #allocation12 [shape = 'u32[9]{0}', space=smem, size = 0x24, scoped, tag = 'DMA stride descriptor']
    #allocation14 [shape = 'u32[9]{0}', space=smem, size = 0x24, scoped, tag = 'DMA stride descriptor']
    #allocation16 [shape = 'u32[9]{0}', space=smem, size = 0x24, scoped, tag = 'DMA stride descriptor']
    %12 = vsyncpa [#allocation7], 0
    %13 = vsyncpa [#allocation9], 0
    // Predicated region
    $region2: #{generator_forward.1} parent=1 // pred_check
      _
    $region3: #{generator_forward.1} parent=1 // pred_check_branch
      %15 = sbr.rel (0) target = $region5
    $region4: #{generator_forward.1} parent=1 // pred_region
      _
    $region5: #{generator_forward.1} parent=1 // pred_fallthru
      _
    // Predicated region
    $region6: #{generator_forward.1} parent=1 // pred_check
      _
    $region7: #{generator_forward.1} parent=1 // pred_check_branch
      %17 = sbr.rel (0) target = $region9
    $region8: #{generator_forward.1} parent=1 // pred_region
      %s19 = ssub.s32 1024, 1024
      %20 = vsyncadd [#allocation7], %s19
      %s21 = sshll.u32 [#allocation6], 4
      %s22 = int_to_ptr.vmem [resolvable:$true] %s21
      %27 = dma.hbm_to_vmem [thread:$0]  %s1, 1024, %s22, [#allocation7], 64, 64, 4
    $region9: #{generator_forward.1} parent=1 // pred_fallthru
      _
    // Predicated region
    $region10: #{generator_forward.1} parent=1 // pred_check
      _
    $region11: #{generator_forward.1} parent=1 // pred_check_branch
      %29 = sbr.rel (0) target = $region13
    $region12: #{generator_forward.1} parent=1 // pred_region
      %s31 = ssub.s32 2048, 2048
      %32 = vsyncadd [#allocation9], %s31
      %s33 = sshll.u32 [#allocation8], 4
      %s34 = int_to_ptr.vmem [resolvable:$true] %s33
      %39 = dma.hbm_to_vmem [thread:$0]  %s2, 2048, %s34, [#allocation9], 128, 128, 8
    $region13: #{generator_forward.1} parent=1 // pred_fallthru
      _
    // Predicated region
    $region14: #{generator_forward.1} parent=1 // pred_check
      _
    $region15: #{generator_forward.1} parent=1 // pred_check_branch
      %41 = sbr.rel (0) target = $region17
    $region16: #{generator_forward.1} parent=1 // pred_region
      %s43 = ssub.s32 1024, 1024
      %44 = vsyncadd [#allocation9], %s43
      %s46 = sshll.u32 [#allocation10], 4
      %s47 = int_to_ptr.vmem [resolvable:$true] %s46
      %49 = dma.hbm_to_vmem [thread:$0]  %s6, 1024, %s47, [#allocation9]
    $region17: #{generator_forward.1} parent=1 // pred_fallthru
      _
    // Predicated region
    $region18: #{generator_forward.1} parent=1 // pred_check
      _
    $region19: #{generator_forward.1} parent=1 // pred_check_branch
      %51 = sbr.rel (0) target = $region21
    $region20: #{generator_forward.1} parent=1 // pred_region
      %52 = dma.done [#allocation7], 1024
    $region21: #{generator_forward.1} parent=1 // pred_fallthru
      _
    // Predicated region
    $region22: #{generator_forward.1} parent=1 // pred_check
      _
    $region23: #{generator_forward.1} parent=1 // pred_check_branch
      %54 = sbr.rel (0) target = $region25
    $region24: #{generator_forward.1} parent=1 // pred_region
      %55 = dma.done [#allocation9], 2048
    $region25: #{generator_forward.1} parent=1 // pred_fallthru
      _
    // Predicated region
    $region26: #{generator_forward.1} parent=1 // pred_check
      _
    $region27: #{generator_forward.1} parent=1 // pred_check_branch
      %57 = sbr.rel (0) target = $region29
    $region28: #{generator_forward.1} parent=1 // pred_region
      %58 = dma.done [#allocation9], 1024
    $region29: #{generator_forward.1} parent=1 // pred_fallthru
      _
    %s61 = sshll.u32 1, 14
    %s62 = sxor.u32 4294967295, %s61
    %s64 = sld [smem:[#allocation0]]
    %s65 = sadd.s32 2, %s64
    %s67 = sshll.u32 7, 26
    %s68 = sxor.u32 4294967295, %s67
    %s69 = sand.u32 0, %s68
    %s70 = sshll.u32 %s65, 26
    %s71 = sor.u32 %s69, %s70
    %s72 = sshll.u32 [#allocation2], 4
    %s73 = int_to_ptr.vmem [resolvable:$true] %s72
    %76 = sst [smem:[#allocation12]] 512
    %s77 = scalar_lea.smem [#allocation12], 1
    %78 = sst [smem:[%s77]] 512
    %s79 = scalar_lea.smem [#allocation12], 2
    %80 = sst [smem:[%s79]] 4
    %s81 = scalar_lea.smem [#allocation12], 3
    %82 = sst [smem:[%s81]] 64
    %s83 = scalar_lea.smem [#allocation12], 4
    %84 = sst [smem:[%s83]] 128
    %s85 = scalar_lea.smem [#allocation12], 5
    %86 = sst [smem:[%s85]] 2
    %s87 = scalar_lea.smem [#allocation12], 6
    %88 = sst [smem:[%s87]] 256
    %s89 = scalar_lea.smem [#allocation12], 7
    %90 = sst [smem:[%s89]] 64
    %s91 = scalar_lea.smem [#allocation12], 8
    %92 = sst [smem:[%s91]] 4
    %94 = dma.general %s3, 8192, %s73, [#allocation5], [#allocation11], [#allocation12], %s71, 0
    %s95 = scalar_lea.sflag [#allocation5], 1
    %s97 = sshll.u32 1, 14
    %s98 = sxor.u32 4294967295, %s97
    %s100 = sadd.s32 2, %s64
    %s102 = sshll.u32 7, 26
    %s103 = sxor.u32 4294967295, %s102
    %s104 = sand.u32 0, %s103
    %s105 = sshll.u32 %s100, 26
    %s106 = sor.u32 %s104, %s105
    %s107 = sshll.u32 [#allocation3], 4
    %s108 = int_to_ptr.vmem [resolvable:$true] %s107
    %111 = sst [smem:[#allocation14]] 1024
    %s112 = scalar_lea.smem [#allocation14], 1
    %113 = sst [smem:[%s112]] 1024
    %s114 = scalar_lea.smem [#allocation14], 2
    %115 = sst [smem:[%s114]] 8
    %s116 = scalar_lea.smem [#allocation14], 3
    %117 = sst [smem:[%s116]] 64
    %s118 = scalar_lea.smem [#allocation14], 4
    %119 = sst [smem:[%s118]] 128
    %s120 = scalar_lea.smem [#allocation14], 5
    %121 = sst [smem:[%s120]] 2
    %s122 = scalar_lea.smem [#allocation14], 6
    %123 = sst [smem:[%s122]] 512
    %s124 = scalar_lea.smem [#allocation14], 7
    %125 = sst [smem:[%s124]] 64
    %s126 = scalar_lea.smem [#allocation14], 8
    %127 = sst [smem:[%s126]] 4
    %129 = dma.general %s4, 32768, %s108, %s95, [#allocation13], [#allocation14], %s106, 0
    %s130 = scalar_lea.sflag [#allocation5], 2
    %s132 = sshll.u32 1, 14
    %s133 = sxor.u32 4294967295, %s132
    %s135 = sadd.s32 2, %s64
    %s137 = sshll.u32 7, 26
    %s138 = sxor.u32 4294967295, %s137
    %s139 = sand.u32 0, %s138
    %s140 = sshll.u32 %s135, 26
    %s141 = sor.u32 %s139, %s140
    %s142 = sshll.u32 [#allocation4], 4
    %s143 = int_to_ptr.vmem [resolvable:$true] %s142
    %146 = sst [smem:[#allocation16]] 896
    %s147 = scalar_lea.smem [#allocation16], 1
    %148 = sst [smem:[%s147]] 896
    %s149 = scalar_lea.smem [#allocation16], 2
    %150 = sst [smem:[%s149]] 7
    %s151 = scalar_lea.smem [#allocation16], 3
    %152 = sst [smem:[%s151]] 64
    %s153 = scalar_lea.smem [#allocation16], 4
    %154 = sst [smem:[%s153]] 128
    %s155 = scalar_lea.smem [#allocation16], 5
    %156 = sst [smem:[%s155]] 2
    %s157 = scalar_lea.smem [#allocation16], 6
    %158 = sst [smem:[%s157]] 448
    %s159 = scalar_lea.smem [#allocation16], 7
    %160 = sst [smem:[%s159]] 64
    %s161 = scalar_lea.smem [#allocation16], 8
    %162 = sst [smem:[%s161]] 4
    %164 = dma.general %s5, 57344, %s143, %s130, [#allocation15], [#allocation16], %s141, 0
    %v165 = vld [vmem:[#allocation10] ss:$0 sm:$0xff]
    %s166 = scalar_lea.vmem [#allocation10], 1
    %v167 = vld [vmem:[%s166] ss:$8 sm:$0x3]
    %s168 = scalar_lea.vmem [#allocation10], 2
    %v169 = vld [vmem:[%s168] ss:$8 sm:$0x3]
    %s170 = scalar_lea.vmem [#allocation10], 3
    %v171 = vld [vmem:[%s170] ss:$8 sm:$0xf]
    %s172 = scalar_lea.vmem [#allocation10], 4
    %v173 = vld [vmem:[%s172] ss:$8 sm:$0xf]
    %s174 = scalar_lea.vmem [#allocation10], 5
    %v175 = vld [vmem:[%s174] ss:$8 sm:$0xf]
    %v176 = vld [vmem:[%s174] ss:$8 sm:$0xf0]
    %v177 = vor.u32 %v175, %v176
    %s178 = scalar_lea.vmem [#allocation10], 6
    %v179 = vld [vmem:[%s178] ss:$8 sm:$0xf]
    %v180 = vld [vmem:[%s178] ss:$8 sm:$0xf0]
    %v181 = vor.u32 %v179, %v180
    %s182 = scalar_lea.vmem [#allocation10], 7
    %v183 = vld [vmem:[%s182] ss:$8 sm:$0xf]
    %v184 = vld [vmem:[%s182] ss:$8 sm:$0xf0]
    %v185 = vor.u32 %v183, %v184
    %v186 = vld [vmem:[%s0] sm:$0xf]
    %v187 = vld [vmem:[#allocation6] sm:$0xf]
    %v188 = vld [vmem:[#allocation6 + $0x4] sm:$0xf]
    %v189 = vld [vmem:[#allocation6 + $0x8] sm:$0xf]
    %v190 = vld [vmem:[#allocation6 + $0xc] sm:$0xf]
    %v191 = vld [vmem:[#allocation6 + $0x10] sm:$0xf]
    %v192 = vld [vmem:[#allocation6 + $0x14] sm:$0xf]
    %v193 = vld [vmem:[#allocation6 + $0x18] sm:$0xf]
    %v194 = vld [vmem:[#allocation6 + $0x1c] sm:$0xf]
    %v195 = vld [vmem:[#allocation6 + $0x20] sm:$0xf]
    %v196 = vld [vmem:[#allocation6 + $0x24] sm:$0xf]
    %v197 = vld [vmem:[#allocation6 + $0x28] sm:$0xf]
    %v198 = vld [vmem:[#allocation6 + $0x2c] sm:$0xf]
    %v199 = vld [vmem:[#allocation6 + $0x30] sm:$0xf]
    %v200 = vld [vmem:[#allocation6 + $0x34] sm:$0xf]
    %v201 = vld [vmem:[#allocation6 + $0x38] sm:$0xf]
    %v202 = vld [vmem:[#allocation6 + $0x3c] sm:$0xf]
    %v219 = vunpack.c.l.b16 %v187
    %v220 = vunpack.c.l.b16 %v188
    %v221 = vunpack.c.l.b16 %v189
    %v222 = vunpack.c.l.b16 %v190
    %v223 = vunpack.c.l.b16 %v191
    %v224 = vunpack.c.l.b16 %v192
    %v225 = vunpack.c.l.b16 %v193
    %v226 = vunpack.c.l.b16 %v194
    %v227 = vunpack.c.l.b16 %v195
    %v228 = vunpack.c.l.b16 %v196
    %v229 = vunpack.c.l.b16 %v197
    %v230 = vunpack.c.l.b16 %v198
    %v231 = vunpack.c.l.b16 %v199
    %v232 = vunpack.c.l.b16 %v200
    %v233 = vunpack.c.l.b16 %v201
    %v234 = vunpack.c.l.b16 %v202
    %v235 = vpack.c.b16 %v220, %v219
    %v236 = vpack.c.b16 %v222, %v221
    %v237 = vpack.c.b16 %v224, %v223
    %v238 = vpack.c.b16 %v226, %v225
    %v239 = vpack.c.b16 %v228, %v227
    %v240 = vpack.c.b16 %v230, %v229
    %v241 = vpack.c.b16 %v232, %v231
    %v242 = vpack.c.b16 %v234, %v233
    %251 = vmatprep.subr.bf16.mxu0 0
    %252 = vmatpush1.bf16.msra.mxu0 %v235
    %253 = vmatprep.subr.bf16.mxu0 0
    %254 = vmatpush1.bf16.msra.mxu0 %v236
    %255 = vmatprep.subr.bf16.mxu0 0
    %256 = vmatpush1.bf16.msra.mxu0 %v237
    %257 = vmatprep.subr.bf16.mxu0 0
    %258 = vmatpush1.bf16.msra.mxu0 %v238
    %259 = vmatprep.subr.bf16.mxu0 0
    %260 = vmatpush1.bf16.msra.mxu0 %v239
    %261 = vmatprep.subr.bf16.mxu0 0
    %262 = vmatpush1.bf16.msra.mxu0 %v240
    %263 = vmatprep.subr.bf16.mxu0 0
    %264 = vmatpush1.bf16.msra.mxu0 %v241
    %265 = vmatprep.subr.bf16.mxu0 0
    %266 = vmatpush1.bf16.msra.mxu0 %v242
    %267 = vmatprep.subr.bf16.mxu0 0
    %268 = vmatpush1.bf16.msra.mxu0 0
    %269 = vmatprep.subr.bf16.mxu0 0
    %270 = vmatpush1.bf16.msra.mxu0 0
    %271 = vmatprep.subr.bf16.mxu0 0
    %272 = vmatpush1.bf16.msra.mxu0 0
    %273 = vmatprep.subr.bf16.mxu0 0
    %274 = vmatpush1.bf16.msra.mxu0 0
    %275 = vmatprep.subr.bf16.mxu0 0
    %276 = vmatpush1.bf16.msra.mxu0 0
    %277 = vmatprep.subr.bf16.mxu0 0
    %278 = vmatpush1.bf16.msra.mxu0 0
    %279 = vmatprep.subr.bf16.mxu0 0
    %280 = vmatpush1.bf16.msra.mxu0 0
    %281 = vmatprep.subr.bf16.mxu0 0
    %282 = vmatpush1.bf16.msra.mxu0 0
    %283 = vmatprep.mubr.bf16.mxu0 0
    %284 = vmatmul.mubr.bf16.gmra.mrb[0].mxu0 %v186
    %v285 = vpop.f32.mrb[0].mxu0
    %v286 = vadd.f32 %v165, %v285
    %v287 = vpop.f32.mrb[0].mxu0
    %v288 = vpop.f32.mrb[0].mxu0
    %v289 = vpop.f32.mrb[0].mxu0
    %290 = vdwg.mxu0
    %vm291 = vcmp.ge.f32.partialorder %v286, 0.0
    %v292 = vmul.f32 %v286, 0.2
    %v293 = vsel %vm291, %v286, %v292
    %v294 = vpack.c.bf16 %v293, %v293
    %v295 = vld [vmem:[#allocation8] sm:$0xff]
    %v296 = vld [vmem:[#allocation8 + $0x8] sm:$0xff]
    %v297 = vld [vmem:[#allocation8 + $0x10] sm:$0xff]
    %v298 = vld [vmem:[#allocation8 + $0x18] sm:$0xff]
    %v299 = vld [vmem:[#allocation8 + $0x20] sm:$0xff]
    %v300 = vld [vmem:[#allocation8 + $0x28] sm:$0xff]
    %v301 = vld [vmem:[#allocation8 + $0x30] sm:$0xff]
    %v302 = vld [vmem:[#allocation8 + $0x38] sm:$0xff]
    %v303 = vld [vmem:[#allocation8 + $0x40] sm:$0xff]
    %v304 = vld [vmem:[#allocation8 + $0x48] sm:$0xff]
    %v305 = vld [vmem:[#allocation8 + $0x50] sm:$0xff]
    %v306 = vld [vmem:[#allocation8 + $0x58] sm:$0xff]
    %v307 = vld [vmem:[#allocation8 + $0x60] sm:$0xff]
    %v308 = vld [vmem:[#allocation8 + $0x68] sm:$0xff]
    %v309 = vld [vmem:[#allocation8 + $0x70] sm:$0xff]
    %v310 = vld [vmem:[#allocation8 + $0x78] sm:$0xff]
    %v327 = vunpack.c.l.b16 %v295
    %v328 = vunpack.c.h.b16 %v295
    %v329 = vunpack.c.l.b16 %v296
    %v330 = vunpack.c.h.b16 %v296
    %v331 = vunpack.c.l.b16 %v297
    %v332 = vunpack.c.h.b16 %v297
    %v333 = vunpack.c.l.b16 %v298
    %v334 = vunpack.c.h.b16 %v298
    %v335 = vunpack.c.l.b16 %v299
    %v336 = vunpack.c.h.b16 %v299
    %v337 = vunpack.c.l.b16 %v300
    %v338 = vunpack.c.h.b16 %v300
    %v339 = vunpack.c.l.b16 %v301
    %v340 = vunpack.c.h.b16 %v301
    %v341 = vunpack.c.l.b16 %v302
    %v342 = vunpack.c.h.b16 %v302
    %v343 = vunpack.c.l.b16 %v303
    %v344 = vunpack.c.h.b16 %v303
    %v345 = vunpack.c.l.b16 %v304
    %v346 = vunpack.c.h.b16 %v304
    %v347 = vunpack.c.l.b16 %v305
    %v348 = vunpack.c.h.b16 %v305
    %v349 = vunpack.c.l.b16 %v306
    %v350 = vunpack.c.h.b16 %v306
    %v351 = vunpack.c.l.b16 %v307
    %v352 = vunpack.c.h.b16 %v307
    %v353 = vunpack.c.l.b16 %v308
    %v354 = vunpack.c.h.b16 %v308
    %v355 = vunpack.c.l.b16 %v309
    %v356 = vunpack.c.h.b16 %v309
    %v357 = vunpack.c.l.b16 %v310
    %v358 = vunpack.c.h.b16 %v310
    %v359 = vpack.c.b16 %v329, %v327
    %v360 = vpack.c.b16 %v330, %v328
    %v361 = vpack.c.b16 %v333, %v331
    %v362 = vpack.c.b16 %v334, %v332
    %v363 = vpack.c.b16 %v337, %v335
    %v364 = vpack.c.b16 %v338, %v336
    %v365 = vpack.c.b16 %v341, %v339
    %v366 = vpack.c.b16 %v342, %v340
    %v367 = vpack.c.b16 %v345, %v343
    %v368 = vpack.c.b16 %v346, %v344
    %v369 = vpack.c.b16 %v349, %v347
    %v370 = vpack.c.b16 %v350, %v348
    %v371 = vpack.c.b16 %v353, %v351
    %v372 = vpack.c.b16 %v354, %v352
    %v373 = vpack.c.b16 %v357, %v355
    %v374 = vpack.c.b16 %v358, %v356
    %391 = vmatprep.subr.bf16.mxu0 %v360
    %392 = vmatpush1.bf16.msra.mxu0 %v359
    %393 = vmatprep.subr.bf16.mxu0 %v362
    %394 = vmatpush1.bf16.msra.mxu0 %v361
    %395 = vmatprep.subr.bf16.mxu0 %v364
    %396 = vmatpush1.bf16.msra.mxu0 %v363
    %397 = vmatprep.subr.bf16.mxu0 %v366
    %398 = vmatpush1.bf16.msra.mxu0 %v365
    %399 = vmatprep.subr.bf16.mxu0 %v368
    %400 = vmatpush1.bf16.msra.mxu0 %v367
    %401 = vmatprep.subr.bf16.mxu0 %v370
    %402 = vmatpush1.bf16.msra.mxu0 %v369
    %403 = vmatprep.subr.bf16.mxu0 %v372
    %404 = vmatpush1.bf16.msra.mxu0 %v371
    %405 = vmatprep.subr.bf16.mxu0 %v374
    %406 = vmatpush1.bf16.msra.mxu0 %v373
    %407 = vmatprep.subr.bf16.mxu0 0
    %408 = vmatpush1.bf16.msra.mxu0 0
    %409 = vmatprep.subr.bf16.mxu0 0
    %410 = vmatpush1.bf16.msra.mxu0 0
    %411 = vmatprep.subr.bf16.mxu0 0
    %412 = vmatpush1.bf16.msra.mxu0 0
    %413 = vmatprep.subr.bf16.mxu0 0
    %414 = vmatpush1.bf16.msra.mxu0 0
    %415 = vmatprep.subr.bf16.mxu0 0
    %416 = vmatpush1.bf16.msra.mxu0 0
    %417 = vmatprep.subr.bf16.mxu0 0
    %418 = vmatpush1.bf16.msra.mxu0 0
    %419 = vmatprep.subr.bf16.mxu0 0
    %420 = vmatpush1.bf16.msra.mxu0 0
    %421 = vmatprep.subr.bf16.mxu0 0
    %422 = vmatpush1.bf16.msra.mxu0 0
    %423 = vmatprep.mubr.bf16.mxu0 0
    %424 = vmatmul.mubr.bf16.gmra.mrb[0].mxu0 %v294
    %v425 = vpop.f32.mrb[0].mxu0
    %v426 = vadd.f32 0.0, %v425
    %v427 = vpop.f32.mrb[0].mxu0
    %v428 = vadd.f32 0.0, %v427
    %v429 = vpop.f32.mrb[0].mxu0
    %v430 = vpop.f32.mrb[0].mxu0
    %431 = vdwg.mxu0
    %v432 = vrot.slane %v426, 4
    %v433 = vadd.f32 %v426, %v432
    %v434 = vrot.slane %v433, 2
    %v435 = vadd.f32 %v433, %v434
    %v436 = vrot.slane %v435, 1
    %v437 = vadd.f32 %v435, %v436
    %v438 = vrot.slane %v428, 4
    %v439 = vadd.f32 %v428, %v438
    %v440 = vrot.slane %v439, 2
    %v441 = vadd.f32 %v439, %v440
    %v442 = vrot.slane %v441, 1
    %v443 = vadd.f32 %v441, %v442
    %v444 = vrcp.pop 8.0
    %v445 = vmul.f32 %v437, %v444
    %v446 = vmul.f32 %v443, %v444
    %v447 = vmul.f32 %v426, %v426
    %v448 = vmul.f32 %v428, %v428
    %v449 = vrot.slane %v447, 4
    %v450 = vadd.f32 %v447, %v449
    %v451 = vrot.slane %v450, 2
    %v452 = vadd.f32 %v450, %v451
    %v453 = vrot.slane %v452, 1
    %v454 = vadd.f32 %v452, %v453
    %v455 = vrot.slane %v448, 4
    %v456 = vadd.f32 %v448, %v455
    %v457 = vrot.slane %v456, 2
    %v458 = vadd.f32 %v456, %v457
    %v459 = vrot.slane %v458, 1
    %v460 = vadd.f32 %v458, %v459
    %v461 = vmul.f32 %v454, %v444
    %v462 = vmul.f32 %v460, %v444
    %v463 = vmul.f32 %v445, %v445
    %v464 = vmul.f32 %v446, %v446
    %v465 = vsub.f32 %v461, %v463
    %v466 = vsub.f32 %v462, %v464
    %v467 = vmax.f32 %v465, 0.0
    %v468 = vmax.f32 %v466, 0.0
    %v469 = vadd.f32 %v467, 0.8
    %v470 = vadd.f32 %v468, 0.8
    %v471 = vrsqrt.pop %v469
    %v472 = vrsqrt.pop %v470
    %v475 = vcombine.low %v471, %v472
    %v477 = vunpack.c.l.s4 1966171168
    %v478 = vunpack.c.0.s8 %v477
    %v479 = vlaneseq
    %v480 = vshrl.u32 %v479, 7
    %v481 = vsub.s32 %v478, %v480
    %v482 = vrot.slane %v475, %v481
    %v484 = vunpack.c.l.s4 1966171168
    %v485 = vunpack.c.0.s8 %v484
    %v486 = vlaneseq
    %v487 = vshrl.u32 %v486, 7
    %v488 = vsub.s32 %v485, %v487
    %v489 = vrot.slane %v482, %v488
    %v491 = vmul.f32 %v167, %v489
    %v493 = vlaneseq
    %v494 = vshrl.u32 %v493, 7
    %v495 = vsub.s32 0, %v494
    %v496 = vrot.slane %v491, %v495
    %v497 = vlaneseq
    %v498 = vshrl.u32 %v497, 7
    %v499 = vsub.s32 1, %v498
    %v500 = vrot.slane %v491, %v499
    %v503 = vmul.f32 %v445, %v496
    %v504 = vmul.f32 %v446, %v500
    %v507 = vcombine.low %v503, %v504
    %v509 = vunpack.c.l.s4 1966171168
    %v510 = vunpack.c.0.s8 %v509
    %v511 = vlaneseq
    %v512 = vshrl.u32 %v511, 7
    %v513 = vsub.s32 %v510, %v512
    %v514 = vrot.slane %v507, %v513
    %v516 = vunpack.c.l.s4 1966171168
    %v517 = vunpack.c.0.s8 %v516
    %v518 = vlaneseq
    %v519 = vshrl.u32 %v518, 7
    %v520 = vsub.s32 %v517, %v519
    %v521 = vrot.slane %v514, %v520
    %v523 = vsub.f32 %v169, %v521
    %v524 = vmul.f32 %v426, %v496
    %v525 = vmul.f32 %v428, %v500
    %v527 = vlaneseq
    %v528 = vshrl.u32 %v527, 7
    %v529 = vsub.s32 0, %v528
    %v530 = vrot.slane %v523, %v529
    %v531 = vlaneseq
    %v532 = vshrl.u32 %v531, 7
    %v533 = vsub.s32 1, %v532
    %v534 = vrot.slane %v523, %v533
    %v537 = vadd.f32 %v524, %v530
    %v538 = vadd.f32 %v525, %v534
    %vm539 = vcmp.ge.f32.partialorder %v537, 0.0
    %vm540 = vcmp.ge.f32.partialorder %v538, 0.0
    %v541 = vmul.f32 %v537, 0.2
    %v542 = vmul.f32 %v538, 0.2
    %v543 = vsel %vm539, %v537, %v541
    %v544 = vsel %vm540, %v538, %v542
    %s545 = smul.u32 4, 32
    %s546 = smul.u32 %s545, 4
    %s547 = sshll.u32 %s546, 4
    %548 = dma.done [#allocation5], %s547
    %v549 = vpack.c.bf16 %v543, %v543
    %v550 = vpack.c.bf16 %v544, %v544
    %v551 = vld [vmem:[#allocation2] sm:$0xff]
    %v552 = vld [vmem:[#allocation2 + $0x8] sm:$0xff]
    %v553 = vld [vmem:[#allocation2 + $0x10] sm:$0xff]
    %v554 = vld [vmem:[#allocation2 + $0x18] sm:$0xff]
    %v555 = vld [vmem:[#allocation2 + $0x20] sm:$0xff]
    %v556 = vld [vmem:[#allocation2 + $0x28] sm:$0xff]
    %v557 = vld [vmem:[#allocation2 + $0x30] sm:$0xff]
    %v558 = vld [vmem:[#allocation2 + $0x38] sm:$0xff]
    %v559 = vld [vmem:[#allocation2 + $0x40] sm:$0xff]
    %v560 = vld [vmem:[#allocation2 + $0x48] sm:$0xff]
    %v561 = vld [vmem:[#allocation2 + $0x50] sm:$0xff]
    %v562 = vld [vmem:[#allocation2 + $0x58] sm:$0xff]
    %v563 = vld [vmem:[#allocation2 + $0x60] sm:$0xff]
    %v564 = vld [vmem:[#allocation2 + $0x68] sm:$0xff]
    %v565 = vld [vmem:[#allocation2 + $0x70] sm:$0xff]
    %v566 = vld [vmem:[#allocation2 + $0x78] sm:$0xff]
    %v567 = vld [vmem:[#allocation2 + $0x80] sm:$0xff]
    %v568 = vld [vmem:[#allocation2 + $0x88] sm:$0xff]
    %v569 = vld [vmem:[#allocation2 + $0x90] sm:$0xff]
    %v570 = vld [vmem:[#allocation2 + $0x98] sm:$0xff]
    %v571 = vld [vmem:[#allocation2 + $0xa0] sm:$0xff]
    %v572 = vld [vmem:[#allocation2 + $0xa8] sm:$0xff]
    %v573 = vld [vmem:[#allocation2 + $0xb0] sm:$0xff]
    %v574 = vld [vmem:[#allocation2 + $0xb8] sm:$0xff]
    %v575 = vld [vmem:[#allocation2 + $0xc0] sm:$0xff]
    %v576 = vld [vmem:[#allocation2 + $0xc8] sm:$0xff]
    %v577 = vld [vmem:[#allocation2 + $0xd0] sm:$0xff]
    %v578 = vld [vmem:[#allocation2 + $0xd8] sm:$0xff]
    %v579 = vld [vmem:[#allocation2 + $0xe0] sm:$0xff]
    %v580 = vld [vmem:[#allocation2 + $0xe8] sm:$0xff]
    %v581 = vld [vmem:[#allocation2 + $0xf0] sm:$0xff]
    %v582 = vld [vmem:[#allocation2 + $0xf8] sm:$0xff]
    %v583 = vld [vmem:[#allocation2 + $0x100] sm:$0xff]
    %v584 = vld [vmem:[#allocation2 + $0x108] sm:$0xff]
    %v585 = vld [vmem:[#allocation2 + $0x110] sm:$0xff]
    %v586 = vld [vmem:[#allocation2 + $0x118] sm:$0xff]
    %v587 = vld [vmem:[#allocation2 + $0x120] sm:$0xff]
    %v588 = vld [vmem:[#allocation2 + $0x128] sm:$0xff]
    %v589 = vld [vmem:[#allocation2 + $0x130] sm:$0xff]
    %v590 = vld [vmem:[#allocation2 + $0x138] sm:$0xff]
    %v591 = vld [vmem:[#allocation2 + $0x140] sm:$0xff]
    %v592 = vld [vmem:[#allocation2 + $0x148] sm:$0xff]
    %v593 = vld [vmem:[#allocation2 + $0x150] sm:$0xff]
    %v594 = vld [vmem:[#allocation2 + $0x158] sm:$0xff]
    %v595 = vld [vmem:[#allocation2 + $0x160] sm:$0xff]
    %v596 = vld [vmem:[#allocation2 + $0x168] sm:$0xff]
    %v597 = vld [vmem:[#allocation2 + $0x170] sm:$0xff]
    %v598 = vld [vmem:[#allocation2 + $0x178] sm:$0xff]
    %v599 = vld [vmem:[#allocation2 + $0x180] sm:$0xff]
    %v600 = vld [vmem:[#allocation2 + $0x188] sm:$0xff]
    %v601 = vld [vmem:[#allocation2 + $0x190] sm:$0xff]
    %v602 = vld [vmem:[#allocation2 + $0x198] sm:$0xff]
    %v603 = vld [vmem:[#allocation2 + $0x1a0] sm:$0xff]
    %v604 = vld [vmem:[#allocation2 + $0x1a8] sm:$0xff]
    %v605 = vld [vmem:[#allocation2 + $0x1b0] sm:$0xff]
    %v606 = vld [vmem:[#allocation2 + $0x1b8] sm:$0xff]
    %v607 = vld [vmem:[#allocation2 + $0x1c0] sm:$0xff]
    %v608 = vld [vmem:[#allocation2 + $0x1c8] sm:$0xff]
    %v609 = vld [vmem:[#allocation2 + $0x1d0] sm:$0xff]
    %v610 = vld [vmem:[#allocation2 + $0x1d8] sm:$0xff]
    %v611 = vld [vmem:[#allocation2 + $0x1e0] sm:$0xff]
    %v612 = vld [vmem:[#allocation2 + $0x1e8] sm:$0xff]
    %v613 = vld [vmem:[#allocation2 + $0x1f0] sm:$0xff]
    %v614 = vld [vmem:[#allocation2 + $0x1f8] sm:$0xff]
    %615 = vmatprep.subr.bf16.mxu0 %v552
    %616 = vmatpush1.bf16.msra.mxu0 %v551
    %617 = vmatprep.subr.bf16.mxu0 %v556
    %618 = vmatpush1.bf16.msra.mxu0 %v555
    %619 = vmatprep.subr.bf16.mxu0 %v560
    %620 = vmatpush1.bf16.msra.mxu0 %v559
    %621 = vmatprep.subr.bf16.mxu0 %v564
    %622 = vmatpush1.bf16.msra.mxu0 %v563
    %623 = vmatprep.subr.bf16.mxu0 %v568
    %624 = vmatpush1.bf16.msra.mxu0 %v567
    %625 = vmatprep.subr.bf16.mxu0 %v572
    %626 = vmatpush1.bf16.msra.mxu0 %v571
    %627 = vmatprep.subr.bf16.mxu0 %v576
    %628 = vmatpush1.bf16.msra.mxu0 %v575
    %629 = vmatprep.subr.bf16.mxu0 %v580
    %630 = vmatpush1.bf16.msra.mxu0 %v579
    %631 = vmatprep.subr.bf16.mxu0 %v584
    %632 = vmatpush1.bf16.msra.mxu0 %v583
    %633 = vmatprep.subr.bf16.mxu0 %v588
    %634 = vmatpush1.bf16.msra.mxu0 %v587
    %635 = vmatprep.subr.bf16.mxu0 %v592
    %636 = vmatpush1.bf16.msra.mxu0 %v591
    %637 = vmatprep.subr.bf16.mxu0 %v596
    %638 = vmatpush1.bf16.msra.mxu0 %v595
    %639 = vmatprep.subr.bf16.mxu0 %v600
    %640 = vmatpush1.bf16.msra.mxu0 %v599
    %641 = vmatprep.subr.bf16.mxu0 %v604
    %642 = vmatpush1.bf16.msra.mxu0 %v603
    %643 = vmatprep.subr.bf16.mxu0 %v608
    %644 = vmatpush1.bf16.msra.mxu0 %v607
    %645 = vmatprep.subr.bf16.mxu0 %v612
    %646 = vmatpush1.bf16.msra.mxu0 %v611
    %647 = vmatprep.mubr.bf16.mxu0 %v550
    %648 = vmatmul.mubr.bf16.gmra.mrb[0].mxu0 %v549
    %v649 = vpop.f32.mrb[0].mxu0
    %v650 = vadd.f32 0.0, %v649
    %v651 = vpop.f32.mrb[0].mxu0
    %v652 = vadd.f32 0.0, %v651
    %v653 = vpop.f32.mrb[0].mxu0
    %v654 = vpop.f32.mrb[0].mxu0
    %655 = vdwg.mxu0
    %656 = vmatprep.subr.bf16.mxu0 %v554
    %657 = vmatpush1.bf16.msra.mxu0 %v553
    %658 = vmatprep.subr.bf16.mxu0 %v558
    %659 = vmatpush1.bf16.msra.mxu0 %v557
    %660 = vmatprep.subr.bf16.mxu0 %v562
    %661 = vmatpush1.bf16.msra.mxu0 %v561
    %662 = vmatprep.subr.bf16.mxu0 %v566
    %663 = vmatpush1.bf16.msra.mxu0 %v565
    %664 = vmatprep.subr.bf16.mxu0 %v570
    %665 = vmatpush1.bf16.msra.mxu0 %v569
    %666 = vmatprep.subr.bf16.mxu0 %v574
    %667 = vmatpush1.bf16.msra.mxu0 %v573
    %668 = vmatprep.subr.bf16.mxu0 %v578
    %669 = vmatpush1.bf16.msra.mxu0 %v577
    %670 = vmatprep.subr.bf16.mxu0 %v582
    %671 = vmatpush1.bf16.msra.mxu0 %v581
    %672 = vmatprep.subr.bf16.mxu0 %v586
    %673 = vmatpush1.bf16.msra.mxu0 %v585
    %674 = vmatprep.subr.bf16.mxu0 %v590
    %675 = vmatpush1.bf16.msra.mxu0 %v589
    %676 = vmatprep.subr.bf16.mxu0 %v594
    %677 = vmatpush1.bf16.msra.mxu0 %v593
    %678 = vmatprep.subr.bf16.mxu0 %v598
    %679 = vmatpush1.bf16.msra.mxu0 %v597
    %680 = vmatprep.subr.bf16.mxu0 %v602
    %681 = vmatpush1.bf16.msra.mxu0 %v601
    %682 = vmatprep.subr.bf16.mxu0 %v606
    %683 = vmatpush1.bf16.msra.mxu0 %v605
    %684 = vmatprep.subr.bf16.mxu0 %v610
    %685 = vmatpush1.bf16.msra.mxu0 %v609
    %686 = vmatprep.subr.bf16.mxu0 %v614
    %687 = vmatpush1.bf16.msra.mxu0 %v613
    %688 = vmatprep.mubr.bf16.mxu0 %v550
    %689 = vmatmul.mubr.bf16.gmra.mrb[0].mxu0 %v549
    %v690 = vpop.f32.mrb[0].mxu0
    %v691 = vadd.f32 0.0, %v690
    %v692 = vpop.f32.mrb[0].mxu0
    %v693 = vadd.f32 0.0, %v692
    %v694 = vpop.f32.mrb[0].mxu0
    %v695 = vpop.f32.mrb[0].mxu0
    %696 = vdwg.mxu0
    %v697 = vrot.slane %v650, 4
    %v698 = vadd.f32 %v650, %v697
    %v699 = vrot.slane %v698, 2
    %v700 = vadd.f32 %v698, %v699
    %v701 = vrot.slane %v700, 1
    %v702 = vadd.f32 %v700, %v701
    %v703 = vrot.slane %v652, 4
    %v704 = vadd.f32 %v652, %v703
    %v705 = vrot.slane %v704, 2
    %v706 = vadd.f32 %v704, %v705
    %v707 = vrot.slane %v706, 1
    %v708 = vadd.f32 %v706, %v707
    %v709 = vrot.slane %v691, 4
    %v710 = vadd.f32 %v691, %v709
    %v711 = vrot.slane %v710, 2
    %v712 = vadd.f32 %v710, %v711
    %v713 = vrot.slane %v712, 1
    %v714 = vadd.f32 %v712, %v713
    %v715 = vrot.slane %v693, 4
    %v716 = vadd.f32 %v693, %v715
    %v717 = vrot.slane %v716, 2
    %v718 = vadd.f32 %v716, %v717
    %v719 = vrot.slane %v718, 1
    %v720 = vadd.f32 %v718, %v719
    %v721 = vmul.f32 %v702, %v444
    %v722 = vmul.f32 %v708, %v444
    %v723 = vmul.f32 %v714, %v444
    %v724 = vmul.f32 %v720, %v444
    %v725 = vmul.f32 %v650, %v650
    %v726 = vmul.f32 %v652, %v652
    %v727 = vmul.f32 %v691, %v691
    %v728 = vmul.f32 %v693, %v693
    %v729 = vrot.slane %v725, 4
    %v730 = vadd.f32 %v725, %v729
    %v731 = vrot.slane %v730, 2
    %v732 = vadd.f32 %v730, %v731
    %v733 = vrot.slane %v732, 1
    %v734 = vadd.f32 %v732, %v733
    %v735 = vrot.slane %v726, 4
    %v736 = vadd.f32 %v726, %v735
    %v737 = vrot.slane %v736, 2
    %v738 = vadd.f32 %v736, %v737
    %v739 = vrot.slane %v738, 1
    %v740 = vadd.f32 %v738, %v739
    %v741 = vrot.slane %v727, 4
    %v742 = vadd.f32 %v727, %v741
    %v743 = vrot.slane %v742, 2
    %v744 = vadd.f32 %v742, %v743
    %v745 = vrot.slane %v744, 1
    %v746 = vadd.f32 %v744, %v745
    %v747 = vrot.slane %v728, 4
    %v748 = vadd.f32 %v728, %v747
    %v749 = vrot.slane %v748, 2
    %v750 = vadd.f32 %v748, %v749
    %v751 = vrot.slane %v750, 1
    %v752 = vadd.f32 %v750, %v751
    %v753 = vmul.f32 %v734, %v444
    %v754 = vmul.f32 %v740, %v444
    %v755 = vmul.f32 %v746, %v444
    %v756 = vmul.f32 %v752, %v444
    %v757 = vmul.f32 %v721, %v721
    %v758 = vmul.f32 %v722, %v722
    %v759 = vmul.f32 %v723, %v723
    %v760 = vmul.f32 %v724, %v724
    %v761 = vsub.f32 %v753, %v757
    %v762 = vsub.f32 %v754, %v758
    %v763 = vsub.f32 %v755, %v759
    %v764 = vsub.f32 %v756, %v760
    %v765 = vmax.f32 %v761, 0.0
    %v766 = vmax.f32 %v762, 0.0
    %v767 = vmax.f32 %v763, 0.0
    %v768 = vmax.f32 %v764, 0.0
    %v769 = vadd.f32 %v765, 0.8
    %v770 = vadd.f32 %v766, 0.8
    %v771 = vadd.f32 %v767, 0.8
    %v772 = vadd.f32 %v768, 0.8
    %v773 = vrsqrt.pop %v769
    %v774 = vrsqrt.pop %v770
    %v775 = vrsqrt.pop %v771
    %v776 = vrsqrt.pop %v772
    %v781 = vcombine.low %v773, %v774
    %v782 = vcombine.low %v775, %v776
    %v784 = vunpack.c.l.s4 1966171168
    %v785 = vunpack.c.0.s8 %v784
    %v786 = vlaneseq
    %v787 = vshrl.u32 %v786, 7
    %v788 = vsub.s32 %v785, %v787
    %v789 = vrot.slane %v781, %v788
    %v791 = vunpack.c.l.s4 1966171168
    %v792 = vunpack.c.0.s8 %v791
    %v793 = vlaneseq
    %v794 = vshrl.u32 %v793, 7
    %v795 = vsub.s32 %v792, %v794
    %v796 = vrot.slane %v782, %v795
    %v797 = vcombine.low %v789, %v796
    %v799 = vunpack.c.l.s4 1966171168
    %v800 = vunpack.c.0.s8 %v799
    %v801 = vlaneseq
    %v802 = vshrl.u32 %v801, 7
    %v803 = vsub.s32 %v800, %v802
    %v804 = vrot.slane %v797, %v803
    %v806 = vmul.f32 %v171, %v804
    %v808 = vlaneseq
    %v809 = vshrl.u32 %v808, 7
    %v810 = vsub.s32 0, %v809
    %v811 = vrot.slane %v806, %v810
    %v812 = vlaneseq
    %v813 = vshrl.u32 %v812, 7
    %v814 = vsub.s32 1, %v813
    %v815 = vrot.slane %v806, %v814
    %v816 = vlaneseq
    %v817 = vshrl.u32 %v816, 7
    %v818 = vsub.s32 2, %v817
    %v819 = vrot.slane %v806, %v818
    %v820 = vlaneseq
    %v821 = vshrl.u32 %v820, 7
    %v822 = vsub.s32 3, %v821
    %v823 = vrot.slane %v806, %v822
    %v828 = vmul.f32 %v721, %v811
    %v829 = vmul.f32 %v722, %v815
    %v830 = vmul.f32 %v723, %v819
    %v831 = vmul.f32 %v724, %v823
    %v836 = vcombine.low %v828, %v829
    %v837 = vcombine.low %v830, %v831
    %v839 = vunpack.c.l.s4 1966171168
    %v840 = vunpack.c.0.s8 %v839
    %v841 = vlaneseq
    %v842 = vshrl.u32 %v841, 7
    %v843 = vsub.s32 %v840, %v842
    %v844 = vrot.slane %v836, %v843
    %v846 = vunpack.c.l.s4 1966171168
    %v847 = vunpack.c.0.s8 %v846
    %v848 = vlaneseq
    %v849 = vshrl.u32 %v848, 7
    %v850 = vsub.s32 %v847, %v849
    %v851 = vrot.slane %v837, %v850
    %v852 = vcombine.low %v844, %v851
    %v854 = vunpack.c.l.s4 1966171168
    %v855 = vunpack.c.0.s8 %v854
    %v856 = vlaneseq
    %v857 = vshrl.u32 %v856, 7
    %v858 = vsub.s32 %v855, %v857
    %v859 = vrot.slane %v852, %v858
    %v861 = vsub.f32 %v173, %v859
    %v862 = vmul.f32 %v650, %v811
    %v863 = vmul.f32 %v652, %v815
    %v864 = vmul.f32 %v691, %v819
    %v865 = vmul.f32 %v693, %v823
    %v867 = vlaneseq
    %v868 = vshrl.u32 %v867, 7
    %v869 = vsub.s32 0, %v868
    %v870 = vrot.slane %v861, %v869
    %v871 = vlaneseq
    %v872 = vshrl.u32 %v871, 7
    %v873 = vsub.s32 1, %v872
    %v874 = vrot.slane %v861, %v873
    %v875 = vlaneseq
    %v876 = vshrl.u32 %v875, 7
    %v877 = vsub.s32 2, %v876
    %v878 = vrot.slane %v861, %v877
    %v879 = vlaneseq
    %v880 = vshrl.u32 %v879, 7
    %v881 = vsub.s32 3, %v880
    %v882 = vrot.slane %v861, %v881
    %v887 = vadd.f32 %v862, %v870
    %v888 = vadd.f32 %v863, %v874
    %v889 = vadd.f32 %v864, %v878
    %v890 = vadd.f32 %v865, %v882
    %vm891 = vcmp.ge.f32.partialorder %v887, 0.0
    %vm892 = vcmp.ge.f32.partialorder %v888, 0.0
    %vm893 = vcmp.ge.f32.partialorder %v889, 0.0
    %vm894 = vcmp.ge.f32.partialorder %v890, 0.0
    %v895 = vmul.f32 %v887, 0.2
    %v896 = vmul.f32 %v888, 0.2
    %v897 = vmul.f32 %v889, 0.2
    %v898 = vmul.f32 %v890, 0.2
    %v899 = vsel %vm891, %v887, %v895
    %v900 = vsel %vm892, %v888, %v896
    %v901 = vsel %vm893, %v889, %v897
    %v902 = vsel %vm894, %v890, %v898
    %s903 = smul.u32 4, 64
    %s904 = smul.u32 %s903, 8
    %s905 = sshll.u32 %s904, 4
    %906 = dma.done %s95, %s905
    %v907 = vpack.c.bf16 %v899, %v899
    %v908 = vpack.c.bf16 %v900, %v900
    %v909 = vpack.c.bf16 %v901, %v901
    %v910 = vpack.c.bf16 %v902, %v902
    %v911 = vld [vmem:[#allocation3] sm:$0xff]
    %v912 = vld [vmem:[#allocation3 + $0x8] sm:$0xff]
    %v913 = vld [vmem:[#allocation3 + $0x10] sm:$0xff]
    %v914 = vld [vmem:[#allocation3 + $0x18] sm:$0xff]
    %v915 = vld [vmem:[#allocation3 + $0x20] sm:$0xff]
    %v916 = vld [vmem:[#allocation3 + $0x28] sm:$0xff]
    %v917 = vld [vmem:[#allocation3 + $0x30] sm:$0xff]
    %v918 = vld [vmem:[#allocation3 + $0x38] sm:$0xff]
    %v919 = vld [vmem:[#allocation3 + $0x40] sm:$0xff]
    %v920 = vld [vmem:[#allocation3 + $0x48] sm:$0xff]
    %v921 = vld [vmem:[#allocation3 + $0x50] sm:$0xff]
    %v922 = vld [vmem:[#allocation3 + $0x58] sm:$0xff]
    %v923 = vld [vmem:[#allocation3 + $0x60] sm:$0xff]
    %v924 = vld [vmem:[#allocation3 + $0x68] sm:$0xff]
    %v925 = vld [vmem:[#allocation3 + $0x70] sm:$0xff]
    %v926 = vld [vmem:[#allocation3 + $0x78] sm:$0xff]
    %v927 = vld [vmem:[#allocation3 + $0x80] sm:$0xff]
    %v928 = vld [vmem:[#allocation3 + $0x88] sm:$0xff]
    %v929 = vld [vmem:[#allocation3 + $0x90] sm:$0xff]
    %v930 = vld [vmem:[#allocation3 + $0x98] sm:$0xff]
    %v931 = vld [vmem:[#allocation3 + $0xa0] sm:$0xff]
    %v932 = vld [vmem:[#allocation3 + $0xa8] sm:$0xff]
    %v933 = vld [vmem:[#allocation3 + $0xb0] sm:$0xff]
    %v934 = vld [vmem:[#allocation3 + $0xb8] sm:$0xff]
    %v935 = vld [vmem:[#allocation3 + $0xc0] sm:$0xff]
    %v936 = vld [vmem:[#allocation3 + $0xc8] sm:$0xff]
    %v937 = vld [vmem:[#allocation3 + $0xd0] sm:$0xff]
    %v938 = vld [vmem:[#allocation3 + $0xd8] sm:$0xff]
    %v939 = vld [vmem:[#allocation3 + $0xe0] sm:$0xff]
    %v940 = vld [vmem:[#allocation3 + $0xe8] sm:$0xff]
    %v941 = vld [vmem:[#allocation3 + $0xf0] sm:$0xff]
    %v942 = vld [vmem:[#allocation3 + $0xf8] sm:$0xff]
    %v943 = vld [vmem:[#allocation3 + $0x100] sm:$0xff]
    %v944 = vld [vmem:[#allocation3 + $0x108] sm:$0xff]
    %v945 = vld [vmem:[#allocation3 + $0x110] sm:$0xff]
    %v946 = vld [vmem:[#allocation3 + $0x118] sm:$0xff]
    %v947 = vld [vmem:[#allocation3 + $0x120] sm:$0xff]
    %v948 = vld [vmem:[#allocation3 + $0x128] sm:$0xff]
    %v949 = vld [vmem:[#allocation3 + $0x130] sm:$0xff]
    %v950 = vld [vmem:[#allocation3 + $0x138] sm:$0xff]
    %v951 = vld [vmem:[#allocation3 + $0x140] sm:$0xff]
    %v952 = vld [vmem:[#allocation3 + $0x148] sm:$0xff]
    %v953 = vld [vmem:[#allocation3 + $0x150] sm:$0xff]
    %v954 = vld [vmem:[#allocation3 + $0x158] sm:$0xff]
    %v955 = vld [vmem:[#allocation3 + $0x160] sm:$0xff]
    %v956 = vld [vmem:[#allocation3 + $0x168] sm:$0xff]
    %v957 = vld [vmem:[#allocation3 + $0x170] sm:$0xff]
    %v958 = vld [vmem:[#allocation3 + $0x178] sm:$0xff]
    %v959 = vld [vmem:[#allocation3 + $0x180] sm:$0xff]
    %v960 = vld [vmem:[#allocation3 + $0x188] sm:$0xff]
    %v961 = vld [vmem:[#allocation3 + $0x190] sm:$0xff]
    %v962 = vld [vmem:[#allocation3 + $0x198] sm:$0xff]
    %v963 = vld [vmem:[#allocation3 + $0x1a0] sm:$0xff]
    %v964 = vld [vmem:[#allocation3 + $0x1a8] sm:$0xff]
    %v965 = vld [vmem:[#allocation3 + $0x1b0] sm:$0xff]
    %v966 = vld [vmem:[#allocation3 + $0x1b8] sm:$0xff]
    %v967 = vld [vmem:[#allocation3 + $0x1c0] sm:$0xff]
    %v968 = vld [vmem:[#allocation3 + $0x1c8] sm:$0xff]
    %v969 = vld [vmem:[#allocation3 + $0x1d0] sm:$0xff]
    %v970 = vld [vmem:[#allocation3 + $0x1d8] sm:$0xff]
    %v971 = vld [vmem:[#allocation3 + $0x1e0] sm:$0xff]
    %v972 = vld [vmem:[#allocation3 + $0x1e8] sm:$0xff]
    %v973 = vld [vmem:[#allocation3 + $0x1f0] sm:$0xff]
    %v974 = vld [vmem:[#allocation3 + $0x1f8] sm:$0xff]
    %v975 = vld [vmem:[#allocation3 + $0x200] sm:$0xff]
    %v976 = vld [vmem:[#allocation3 + $0x208] sm:$0xff]
    %v977 = vld [vmem:[#allocation3 + $0x210] sm:$0xff]
    %v978 = vld [vmem:[#allocation3 + $0x218] sm:$0xff]
    %v979 = vld [vmem:[#allocation3 + $0x220] sm:$0xff]
    %v980 = vld [vmem:[#allocation3 + $0x228] sm:$0xff]
    %v981 = vld [vmem:[#allocation3 + $0x230] sm:$0xff]
    %v982 = vld [vmem:[#allocation3 + $0x238] sm:$0xff]
    %v983 = vld [vmem:[#allocation3 + $0x240] sm:$0xff]
    %v984 = vld [vmem:[#allocation3 + $0x248] sm:$0xff]
    %v985 = vld [vmem:[#allocation3 + $0x250] sm:$0xff]
    %v986 = vld [vmem:[#allocation3 + $0x258] sm:$0xff]
    %v987 = vld [vmem:[#allocation3 + $0x260] sm:$0xff]
    %v988 = vld [vmem:[#allocation3 + $0x268] sm:$0xff]
    %v989 = vld [vmem:[#allocation3 + $0x270] sm:$0xff]
    %v990 = vld [vmem:[#allocation3 + $0x278] sm:$0xff]
    %v991 = vld [vmem:[#allocation3 + $0x280] sm:$0xff]
    %v992 = vld [vmem:[#allocation3 + $0x288] sm:$0xff]
    %v993 = vld [vmem:[#allocation3 + $0x290] sm:$0xff]
    %v994 = vld [vmem:[#allocation3 + $0x298] sm:$0xff]
    %v995 = vld [vmem:[#allocation3 + $0x2a0] sm:$0xff]
    %v996 = vld [vmem:[#allocation3 + $0x2a8] sm:$0xff]
    %v997 = vld [vmem:[#allocation3 + $0x2b0] sm:$0xff]
    %v998 = vld [vmem:[#allocation3 + $0x2b8] sm:$0xff]
    %v999 = vld [vmem:[#allocation3 + $0x2c0] sm:$0xff]
    %v1000 = vld [vmem:[#allocation3 + $0x2c8] sm:$0xff]
    %v1001 = vld [vmem:[#allocation3 + $0x2d0] sm:$0xff]
    %v1002 = vld [vmem:[#allocation3 + $0x2d8] sm:$0xff]
    %v1003 = vld [vmem:[#allocation3 + $0x2e0] sm:$0xff]
    %v1004 = vld [vmem:[#allocation3 + $0x2e8] sm:$0xff]
    %v1005 = vld [vmem:[#allocation3 + $0x2f0] sm:$0xff]
    %v1006 = vld [vmem:[#allocation3 + $0x2f8] sm:$0xff]
    %v1007 = vld [vmem:[#allocation3 + $0x300] sm:$0xff]
    %v1008 = vld [vmem:[#allocation3 + $0x308] sm:$0xff]
    %v1009 = vld [vmem:[#allocation3 + $0x310] sm:$0xff]
    %v1010 = vld [vmem:[#allocation3 + $0x318] sm:$0xff]
    %v1011 = vld [vmem:[#allocation3 + $0x320] sm:$0xff]
    %v1012 = vld [vmem:[#allocation3 + $0x328] sm:$0xff]
    %v1013 = vld [vmem:[#allocation3 + $0x330] sm:$0xff]
    %v1014 = vld [vmem:[#allocation3 + $0x338] sm:$0xff]
    %v1015 = vld [vmem:[#allocation3 + $0x340] sm:$0xff]
    %v1016 = vld [vmem:[#allocation3 + $0x348] sm:$0xff]
    %v1017 = vld [vmem:[#allocation3 + $0x350] sm:$0xff]
    %v1018 = vld [vmem:[#allocation3 + $0x358] sm:$0xff]
    %v1019 = vld [vmem:[#allocation3 + $0x360] sm:$0xff]
    %v1020 = vld [vmem:[#allocation3 + $0x368] sm:$0xff]
    %v1021 = vld [vmem:[#allocation3 + $0x370] sm:$0xff]
    %v1022 = vld [vmem:[#allocation3 + $0x378] sm:$0xff]
    %v1023 = vld [vmem:[#allocation3 + $0x380] sm:$0xff]
    %v1024 = vld [vmem:[#allocation3 + $0x388] sm:$0xff]
    %v1025 = vld [vmem:[#allocation3 + $0x390] sm:$0xff]
    %v1026 = vld [vmem:[#allocation3 + $0x398] sm:$0xff]
    %v1027 = vld [vmem:[#allocation3 + $0x3a0] sm:$0xff]
    %v1028 = vld [vmem:[#allocation3 + $0x3a8] sm:$0xff]
    %v1029 = vld [vmem:[#allocation3 + $0x3b0] sm:$0xff]
    %v1030 = vld [vmem:[#allocation3 + $0x3b8] sm:$0xff]
    %v1031 = vld [vmem:[#allocation3 + $0x3c0] sm:$0xff]
    %v1032 = vld [vmem:[#allocation3 + $0x3c8] sm:$0xff]
    %v1033 = vld [vmem:[#allocation3 + $0x3d0] sm:$0xff]
    %v1034 = vld [vmem:[#allocation3 + $0x3d8] sm:$0xff]
    %v1035 = vld [vmem:[#allocation3 + $0x3e0] sm:$0xff]
    %v1036 = vld [vmem:[#allocation3 + $0x3e8] sm:$0xff]
    %v1037 = vld [vmem:[#allocation3 + $0x3f0] sm:$0xff]
    %v1038 = vld [vmem:[#allocation3 + $0x3f8] sm:$0xff]
    %v1039 = vld [vmem:[#allocation3 + $0x400] sm:$0xff]
    %v1040 = vld [vmem:[#allocation3 + $0x408] sm:$0xff]
    %v1041 = vld [vmem:[#allocation3 + $0x410] sm:$0xff]
    %v1042 = vld [vmem:[#allocation3 + $0x418] sm:$0xff]
    %v1043 = vld [vmem:[#allocation3 + $0x420] sm:$0xff]
    %v1044 = vld [vmem:[#allocation3 + $0x428] sm:$0xff]
    %v1045 = vld [vmem:[#allocation3 + $0x430] sm:$0xff]
    %v1046 = vld [vmem:[#allocation3 + $0x438] sm:$0xff]
    %v1047 = vld [vmem:[#allocation3 + $0x440] sm:$0xff]
    %v1048 = vld [vmem:[#allocation3 + $0x448] sm:$0xff]
    %v1049 = vld [vmem:[#allocation3 + $0x450] sm:$0xff]
    %v1050 = vld [vmem:[#allocation3 + $0x458] sm:$0xff]
    %v1051 = vld [vmem:[#allocation3 + $0x460] sm:$0xff]
    %v1052 = vld [vmem:[#allocation3 + $0x468] sm:$0xff]
    %v1053 = vld [vmem:[#allocation3 + $0x470] sm:$0xff]
    %v1054 = vld [vmem:[#allocation3 + $0x478] sm:$0xff]
    %v1055 = vld [vmem:[#allocation3 + $0x480] sm:$0xff]
    %v1056 = vld [vmem:[#allocation3 + $0x488] sm:$0xff]
    %v1057 = vld [vmem:[#allocation3 + $0x490] sm:$0xff]
    %v1058 = vld [vmem:[#allocation3 + $0x498] sm:$0xff]
    %v1059 = vld [vmem:[#allocation3 + $0x4a0] sm:$0xff]
    %v1060 = vld [vmem:[#allocation3 + $0x4a8] sm:$0xff]
    %v1061 = vld [vmem:[#allocation3 + $0x4b0] sm:$0xff]
    %v1062 = vld [vmem:[#allocation3 + $0x4b8] sm:$0xff]
    %v1063 = vld [vmem:[#allocation3 + $0x4c0] sm:$0xff]
    %v1064 = vld [vmem:[#allocation3 + $0x4c8] sm:$0xff]
    %v1065 = vld [vmem:[#allocation3 + $0x4d0] sm:$0xff]
    %v1066 = vld [vmem:[#allocation3 + $0x4d8] sm:$0xff]
    %v1067 = vld [vmem:[#allocation3 + $0x4e0] sm:$0xff]
    %v1068 = vld [vmem:[#allocation3 + $0x4e8] sm:$0xff]
    %v1069 = vld [vmem:[#allocation3 + $0x4f0] sm:$0xff]
    %v1070 = vld [vmem:[#allocation3 + $0x4f8] sm:$0xff]
    %v1071 = vld [vmem:[#allocation3 + $0x500] sm:$0xff]
    %v1072 = vld [vmem:[#allocation3 + $0x508] sm:$0xff]
    %v1073 = vld [vmem:[#allocation3 + $0x510] sm:$0xff]
    %v1074 = vld [vmem:[#allocation3 + $0x518] sm:$0xff]
    %v1075 = vld [vmem:[#allocation3 + $0x520] sm:$0xff]
    %v1076 = vld [vmem:[#allocation3 + $0x528] sm:$0xff]
    %v1077 = vld [vmem:[#allocation3 + $0x530] sm:$0xff]
    %v1078 = vld [vmem:[#allocation3 + $0x538] sm:$0xff]
    %v1079 = vld [vmem:[#allocation3 + $0x540] sm:$0xff]
    %v1080 = vld [vmem:[#allocation3 + $0x548] sm:$0xff]
    %v1081 = vld [vmem:[#allocation3 + $0x550] sm:$0xff]
    %v1082 = vld [vmem:[#allocation3 + $0x558] sm:$0xff]
    %v1083 = vld [vmem:[#allocation3 + $0x560] sm:$0xff]
    %v1084 = vld [vmem:[#allocation3 + $0x568] sm:$0xff]
    %v1085 = vld [vmem:[#allocation3 + $0x570] sm:$0xff]
    %v1086 = vld [vmem:[#allocation3 + $0x578] sm:$0xff]
    %v1087 = vld [vmem:[#allocation3 + $0x580] sm:$0xff]
    %v1088 = vld [vmem:[#allocation3 + $0x588] sm:$0xff]
    %v1089 = vld [vmem:[#allocation3 + $0x590] sm:$0xff]
    %v1090 = vld [vmem:[#allocation3 + $0x598] sm:$0xff]
    %v1091 = vld [vmem:[#allocation3 + $0x5a0] sm:$0xff]
    %v1092 = vld [vmem:[#allocation3 + $0x5a8] sm:$0xff]
    %v1093 = vld [vmem:[#allocation3 + $0x5b0] sm:$0xff]
    %v1094 = vld [vmem:[#allocation3 + $0x5b8] sm:$0xff]
    %v1095 = vld [vmem:[#allocation3 + $0x5c0] sm:$0xff]
    %v1096 = vld [vmem:[#allocation3 + $0x5c8] sm:$0xff]
    %v1097 = vld [vmem:[#allocation3 + $0x5d0] sm:$0xff]
    %v1098 = vld [vmem:[#allocation3 + $0x5d8] sm:$0xff]
    %v1099 = vld [vmem:[#allocation3 + $0x5e0] sm:$0xff]
    %v1100 = vld [vmem:[#allocation3 + $0x5e8] sm:$0xff]
    %v1101 = vld [vmem:[#allocation3 + $0x5f0] sm:$0xff]
    %v1102 = vld [vmem:[#allocation3 + $0x5f8] sm:$0xff]
    %v1103 = vld [vmem:[#allocation3 + $0x600] sm:$0xff]
    %v1104 = vld [vmem:[#allocation3 + $0x608] sm:$0xff]
    %v1105 = vld [vmem:[#allocation3 + $0x610] sm:$0xff]
    %v1106 = vld [vmem:[#allocation3 + $0x618] sm:$0xff]
    %v1107 = vld [vmem:[#allocation3 + $0x620] sm:$0xff]
    %v1108 = vld [vmem:[#allocation3 + $0x628] sm:$0xff]
    %v1109 = vld [vmem:[#allocation3 + $0x630] sm:$0xff]
    %v1110 = vld [vmem:[#allocation3 + $0x638] sm:$0xff]
    %v1111 = vld [vmem:[#allocation3 + $0x640] sm:$0xff]
    %v1112 = vld [vmem:[#allocation3 + $0x648] sm:$0xff]
    %v1113 = vld [vmem:[#allocation3 + $0x650] sm:$0xff]
    %v1114 = vld [vmem:[#allocation3 + $0x658] sm:$0xff]
    %v1115 = vld [vmem:[#allocation3 + $0x660] sm:$0xff]
    %v1116 = vld [vmem:[#allocation3 + $0x668] sm:$0xff]
    %v1117 = vld [vmem:[#allocation3 + $0x670] sm:$0xff]
    %v1118 = vld [vmem:[#allocation3 + $0x678] sm:$0xff]
    %v1119 = vld [vmem:[#allocation3 + $0x680] sm:$0xff]
    %v1120 = vld [vmem:[#allocation3 + $0x688] sm:$0xff]
    %v1121 = vld [vmem:[#allocation3 + $0x690] sm:$0xff]
    %v1122 = vld [vmem:[#allocation3 + $0x698] sm:$0xff]
    %v1123 = vld [vmem:[#allocation3 + $0x6a0] sm:$0xff]
    %v1124 = vld [vmem:[#allocation3 + $0x6a8] sm:$0xff]
    %v1125 = vld [vmem:[#allocation3 + $0x6b0] sm:$0xff]
    %v1126 = vld [vmem:[#allocation3 + $0x6b8] sm:$0xff]
    %v1127 = vld [vmem:[#allocation3 + $0x6c0] sm:$0xff]
    %v1128 = vld [vmem:[#allocation3 + $0x6c8] sm:$0xff]
    %v1129 = vld [vmem:[#allocation3 + $0x6d0] sm:$0xff]
    %v1130 = vld [vmem:[#allocation3 + $0x6d8] sm:$0xff]
    %v1131 = vld [vmem:[#allocation3 + $0x6e0] sm:$0xff]
    %v1132 = vld [vmem:[#allocation3 + $0x6e8] sm:$0xff]
    %v1133 = vld [vmem:[#allocation3 + $0x6f0] sm:$0xff]
    %v1134 = vld [vmem:[#allocation3 + $0x6f8] sm:$0xff]
    %v1135 = vld [vmem:[#allocation3 + $0x700] sm:$0xff]
    %v1136 = vld [vmem:[#allocation3 + $0x708] sm:$0xff]
    %v1137 = vld [vmem:[#allocation3 + $0x710] sm:$0xff]
    %v1138 = vld [vmem:[#allocation3 + $0x718] sm:$0xff]
    %v1139 = vld [vmem:[#allocation3 + $0x720] sm:$0xff]
    %v1140 = vld [vmem:[#allocation3 + $0x728] sm:$0xff]
    %v1141 = vld [vmem:[#allocation3 + $0x730] sm:$0xff]
    %v1142 = vld [vmem:[#allocation3 + $0x738] sm:$0xff]
    %v1143 = vld [vmem:[#allocation3 + $0x740] sm:$0xff]
    %v1144 = vld [vmem:[#allocation3 + $0x748] sm:$0xff]
    %v1145 = vld [vmem:[#allocation3 + $0x750] sm:$0xff]
    %v1146 = vld [vmem:[#allocation3 + $0x758] sm:$0xff]
    %v1147 = vld [vmem:[#allocation3 + $0x760] sm:$0xff]
    %v1148 = vld [vmem:[#allocation3 + $0x768] sm:$0xff]
    %v1149 = vld [vmem:[#allocation3 + $0x770] sm:$0xff]
    %v1150 = vld [vmem:[#allocation3 + $0x778] sm:$0xff]
    %v1151 = vld [vmem:[#allocation3 + $0x780] sm:$0xff]
    %v1152 = vld [vmem:[#allocation3 + $0x788] sm:$0xff]
    %v1153 = vld [vmem:[#allocation3 + $0x790] sm:$0xff]
    %v1154 = vld [vmem:[#allocation3 + $0x798] sm:$0xff]
    %v1155 = vld [vmem:[#allocation3 + $0x7a0] sm:$0xff]
    %v1156 = vld [vmem:[#allocation3 + $0x7a8] sm:$0xff]
    %v1157 = vld [vmem:[#allocation3 + $0x7b0] sm:$0xff]
    %v1158 = vld [vmem:[#allocation3 + $0x7b8] sm:$0xff]
    %v1159 = vld [vmem:[#allocation3 + $0x7c0] sm:$0xff]
    %v1160 = vld [vmem:[#allocation3 + $0x7c8] sm:$0xff]
    %v1161 = vld [vmem:[#allocation3 + $0x7d0] sm:$0xff]
    %v1162 = vld [vmem:[#allocation3 + $0x7d8] sm:$0xff]
    %v1163 = vld [vmem:[#allocation3 + $0x7e0] sm:$0xff]
    %v1164 = vld [vmem:[#allocation3 + $0x7e8] sm:$0xff]
    %v1165 = vld [vmem:[#allocation3 + $0x7f0] sm:$0xff]
    %v1166 = vld [vmem:[#allocation3 + $0x7f8] sm:$0xff]
    %1167 = vmatprep.subr.bf16.mxu0 %v912
    %1168 = vmatpush1.bf16.msra.mxu0 %v911
    %1169 = vmatprep.subr.bf16.mxu0 %v920
    %1170 = vmatpush1.bf16.msra.mxu0 %v919
    %1171 = vmatprep.subr.bf16.mxu0 %v928
    %1172 = vmatpush1.bf16.msra.mxu0 %v927
    %1173 = vmatprep.subr.bf16.mxu0 %v936
    %1174 = vmatpush1.bf16.msra.mxu0 %v935
    %1175 = vmatprep.subr.bf16.mxu0 %v944
    %1176 = vmatpush1.bf16.msra.mxu0 %v943
    %1177 = vmatprep.subr.bf16.mxu0 %v952
    %1178 = vmatpush1.bf16.msra.mxu0 %v951
    %1179 = vmatprep.subr.bf16.mxu0 %v960
    %1180 = vmatpush1.bf16.msra.mxu0 %v959
    %1181 = vmatprep.subr.bf16.mxu0 %v968
    %1182 = vmatpush1.bf16.msra.mxu0 %v967
    %1183 = vmatprep.subr.bf16.mxu0 %v976
    %1184 = vmatpush1.bf16.msra.mxu0 %v975
    %1185 = vmatprep.subr.bf16.mxu0 %v984
    %1186 = vmatpush1.bf16.msra.mxu0 %v983
    %1187 = vmatprep.subr.bf16.mxu0 %v992
    %1188 = vmatpush1.bf16.msra.mxu0 %v991
    %1189 = vmatprep.subr.bf16.mxu0 %v1000
    %1190 = vmatpush1.bf16.msra.mxu0 %v999
    %1191 = vmatprep.subr.bf16.mxu0 %v1008
    %1192 = vmatpush1.bf16.msra.mxu0 %v1007
    %1193 = vmatprep.subr.bf16.mxu0 %v1016
    %1194 = vmatpush1.bf16.msra.mxu0 %v1015
    %1195 = vmatprep.subr.bf16.mxu0 %v1024
    %1196 = vmatpush1.bf16.msra.mxu0 %v1023
    %1197 = vmatprep.subr.bf16.mxu0 %v1032
    %1198 = vmatpush1.bf16.msra.mxu0 %v1031
    %1199 = vmatprep.mubr.bf16.mxu0 %v908
    %1200 = vmatmul.mubr.bf16.gmra.mrb[0].mxu0 %v907
    %v1201 = vpop.f32.mrb[0].mxu0
    %v1202 = vadd.f32 0.0, %v1201
    %v1203 = vpop.f32.mrb[0].mxu0
    %v1204 = vadd.f32 0.0, %v1203
    %v1205 = vpop.f32.mrb[0].mxu0
    %v1206 = vpop.f32.mrb[0].mxu0
    %1207 = vdwg.mxu0
    %1208 = vmatprep.subr.bf16.mxu0 %v1040
    %1209 = vmatpush1.bf16.msra.mxu0 %v1039
    %1210 = vmatprep.subr.bf16.mxu0 %v1048
    %1211 = vmatpush1.bf16.msra.mxu0 %v1047
    %1212 = vmatprep.subr.bf16.mxu0 %v1056
    %1213 = vmatpush1.bf16.msra.mxu0 %v1055
    %1214 = vmatprep.subr.bf16.mxu0 %v1064
    %1215 = vmatpush1.bf16.msra.mxu0 %v1063
    %1216 = vmatprep.subr.bf16.mxu0 %v1072
    %1217 = vmatpush1.bf16.msra.mxu0 %v1071
    %1218 = vmatprep.subr.bf16.mxu0 %v1080
    %1219 = vmatpush1.bf16.msra.mxu0 %v1079
    %1220 = vmatprep.subr.bf16.mxu0 %v1088
    %1221 = vmatpush1.bf16.msra.mxu0 %v1087
    %1222 = vmatprep.subr.bf16.mxu0 %v1096
    %1223 = vmatpush1.bf16.msra.mxu0 %v1095
    %1224 = vmatprep.subr.bf16.mxu0 %v1104
    %1225 = vmatpush1.bf16.msra.mxu0 %v1103
    %1226 = vmatprep.subr.bf16.mxu0 %v1112
    %1227 = vmatpush1.bf16.msra.mxu0 %v1111
    %1228 = vmatprep.subr.bf16.mxu0 %v1120
    %1229 = vmatpush1.bf16.msra.mxu0 %v1119
    %1230 = vmatprep.subr.bf16.mxu0 %v1128
    %1231 = vmatpush1.bf16.msra.mxu0 %v1127
    %1232 = vmatprep.subr.bf16.mxu0 %v1136
    %1233 = vmatpush1.bf16.msra.mxu0 %v1135
    %1234 = vmatprep.subr.bf16.mxu0 %v1144
    %1235 = vmatpush1.bf16.msra.mxu0 %v1143
    %1236 = vmatprep.subr.bf16.mxu0 %v1152
    %1237 = vmatpush1.bf16.msra.mxu0 %v1151
    %1238 = vmatprep.subr.bf16.mxu0 %v1160
    %1239 = vmatpush1.bf16.msra.mxu0 %v1159
    %1240 = vmatprep.mubr.bf16.mxu0 %v910
    %1241 = vmatmul.mubr.bf16.gmra.mrb[0].mxu0 %v909
    %v1242 = vpop.f32.mrb[0].mxu0
    %v1243 = vadd.f32 %v1202, %v1242
    %v1244 = vpop.f32.mrb[0].mxu0
    %v1245 = vadd.f32 %v1204, %v1244
    %v1246 = vpop.f32.mrb[0].mxu0
    %v1247 = vpop.f32.mrb[0].mxu0
    %1248 = vdwg.mxu0
    %1249 = vmatprep.subr.bf16.mxu0 %v914
    %1250 = vmatpush1.bf16.msra.mxu0 %v913
    %1251 = vmatprep.subr.bf16.mxu0 %v922
    %1252 = vmatpush1.bf16.msra.mxu0 %v921
    %1253 = vmatprep.subr.bf16.mxu0 %v930
    %1254 = vmatpush1.bf16.msra.mxu0 %v929
    %1255 = vmatprep.subr.bf16.mxu0 %v938
    %1256 = vmatpush1.bf16.msra.mxu0 %v937
    %1257 = vmatprep.subr.bf16.mxu0 %v946
    %1258 = vmatpush1.bf16.msra.mxu0 %v945
    %1259 = vmatprep.subr.bf16.mxu0 %v954
    %1260 = vmatpush1.bf16.msra.mxu0 %v953
    %1261 = vmatprep.subr.bf16.mxu0 %v962
    %1262 = vmatpush1.bf16.msra.mxu0 %v961
    %1263 = vmatprep.subr.bf16.mxu0 %v970
    %1264 = vmatpush1.bf16.msra.mxu0 %v969
    %1265 = vmatprep.subr.bf16.mxu0 %v978
    %1266 = vmatpush1.bf16.msra.mxu0 %v977
    %1267 = vmatprep.subr.bf16.mxu0 %v986
    %1268 = vmatpush1.bf16.msra.mxu0 %v985
    %1269 = vmatprep.subr.bf16.mxu0 %v994
    %1270 = vmatpush1.bf16.msra.mxu0 %v993
    %1271 = vmatprep.subr.bf16.mxu0 %v1002
    %1272 = vmatpush1.bf16.msra.mxu0 %v1001
    %1273 = vmatprep.subr.bf16.mxu0 %v1010
    %1274 = vmatpush1.bf16.msra.mxu0 %v1009
    %1275 = vmatprep.subr.bf16.mxu0 %v1018
    %1276 = vmatpush1.bf16.msra.mxu0 %v1017
    %1277 = vmatprep.subr.bf16.mxu0 %v1026
    %1278 = vmatpush1.bf16.msra.mxu0 %v1025
    %1279 = vmatprep.subr.bf16.mxu0 %v1034
    %1280 = vmatpush1.bf16.msra.mxu0 %v1033
    %1281 = vmatprep.mubr.bf16.mxu0 %v908
    %1282 = vmatmul.mubr.bf16.gmra.mrb[0].mxu0 %v907
    %v1283 = vpop.f32.mrb[0].mxu0
    %v1284 = vadd.f32 0.0, %v1283
    %v1285 = vpop.f32.mrb[0].mxu0
    %v1286 = vadd.f32 0.0, %v1285
    %v1287 = vpop.f32.mrb[0].mxu0
    %v1288 = vpop.f32.mrb[0].mxu0
    %1289 = vdwg.mxu0
    %1290 = vmatprep.subr.bf16.mxu0 %v1042
    %1291 = vmatpush1.bf16.msra.mxu0 %v1041
    %1292 = vmatprep.subr.bf16.mxu0 %v1050
    %1293 = vmatpush1.bf16.msra.mxu0 %v1049
    %1294 = vmatprep.subr.bf16.mxu0 %v1058
    %1295 = vmatpush1.bf16.msra.mxu0 %v1057
    %1296 = vmatprep.subr.bf16.mxu0 %v1066
    %1297 = vmatpush1.bf16.msra.mxu0 %v1065
    %1298 = vmatprep.subr.bf16.mxu0 %v1074
    %1299 = vmatpush1.bf16.msra.mxu0 %v1073
    %1300 = vmatprep.subr.bf16.mxu0 %v1082
    %1301 = vmatpush1.bf16.msra.mxu0 %v1081
    %1302 = vmatprep.subr.bf16.mxu0 %v1090
    %1303 = vmatpush1.bf16.msra.mxu0 %v1089
    %1304 = vmatprep.subr.bf16.mxu0 %v1098
    %1305 = vmatpush1.bf16.msra.mxu0 %v1097
    %1306 = vmatprep.subr.bf16.mxu0 %v1106
    %1307 = vmatpush1.bf16.msra.mxu0 %v1105
    %1308 = vmatprep.subr.bf16.mxu0 %v1114
    %1309 = vmatpush1.bf16.msra.mxu0 %v1113
    %1310 = vmatprep.subr.bf16.mxu0 %v1122
    %1311 = vmatpush1.bf16.msra.mxu0 %v1121
    %1312 = vmatprep.subr.bf16.mxu0 %v1130
    %1313 = vmatpush1.bf16.msra.mxu0 %v1129
    %1314 = vmatprep.subr.bf16.mxu0 %v1138
    %1315 = vmatpush1.bf16.msra.mxu0 %v1137
    %1316 = vmatprep.subr.bf16.mxu0 %v1146
    %1317 = vmatpush1.bf16.msra.mxu0 %v1145
    %1318 = vmatprep.subr.bf16.mxu0 %v1154
    %1319 = vmatpush1.bf16.msra.mxu0 %v1153
    %1320 = vmatprep.subr.bf16.mxu0 %v1162
    %1321 = vmatpush1.bf16.msra.mxu0 %v1161
    %1322 = vmatprep.mubr.bf16.mxu0 %v910
    %1323 = vmatmul.mubr.bf16.gmra.mrb[0].mxu0 %v909
    %v1324 = vpop.f32.mrb[0].mxu0
    %v1325 = vadd.f32 %v1284, %v1324
    %v1326 = vpop.f32.mrb[0].mxu0
    %v1327 = vadd.f32 %v1286, %v1326
    %v1328 = vpop.f32.mrb[0].mxu0
    %v1329 = vpop.f32.mrb[0].mxu0
    %1330 = vdwg.mxu0
    %1331 = vmatprep.subr.bf16.mxu0 %v916
    %1332 = vmatpush1.bf16.msra.mxu0 %v915
    %1333 = vmatprep.subr.bf16.mxu0 %v924
    %1334 = vmatpush1.bf16.msra.mxu0 %v923
    %1335 = vmatprep.subr.bf16.mxu0 %v932
    %1336 = vmatpush1.bf16.msra.mxu0 %v931
    %1337 = vmatprep.subr.bf16.mxu0 %v940
    %1338 = vmatpush1.bf16.msra.mxu0 %v939
    %1339 = vmatprep.subr.bf16.mxu0 %v948
    %1340 = vmatpush1.bf16.msra.mxu0 %v947
    %1341 = vmatprep.subr.bf16.mxu0 %v956
    %1342 = vmatpush1.bf16.msra.mxu0 %v955
    %1343 = vmatprep.subr.bf16.mxu0 %v964
    %1344 = vmatpush1.bf16.msra.mxu0 %v963
    %1345 = vmatprep.subr.bf16.mxu0 %v972
    %1346 = vmatpush1.bf16.msra.mxu0 %v971
    %1347 = vmatprep.subr.bf16.mxu0 %v980
    %1348 = vmatpush1.bf16.msra.mxu0 %v979
    %1349 = vmatprep.subr.bf16.mxu0 %v988
    %1350 = vmatpush1.bf16.msra.mxu0 %v987
    %1351 = vmatprep.subr.bf16.mxu0 %v996
    %1352 = vmatpush1.bf16.msra.mxu0 %v995
    %1353 = vmatprep.subr.bf16.mxu0 %v1004
    %1354 = vmatpush1.bf16.msra.mxu0 %v1003
    %1355 = vmatprep.subr.bf16.mxu0 %v1012
    %1356 = vmatpush1.bf16.msra.mxu0 %v1011
    %1357 = vmatprep.subr.bf16.mxu0 %v1020
    %1358 = vmatpush1.bf16.msra.mxu0 %v1019
    %1359 = vmatprep.subr.bf16.mxu0 %v1028
    %1360 = vmatpush1.bf16.msra.mxu0 %v1027
    %1361 = vmatprep.subr.bf16.mxu0 %v1036
    %1362 = vmatpush1.bf16.msra.mxu0 %v1035
    %1363 = vmatprep.mubr.bf16.mxu0 %v908
    %1364 = vmatmul.mubr.bf16.gmra.mrb[0].mxu0 %v907
    %v1365 = vpop.f32.mrb[0].mxu0
    %v1366 = vadd.f32 0.0, %v1365
    %v1367 = vpop.f32.mrb[0].mxu0
    %v1368 = vadd.f32 0.0, %v1367
    %v1369 = vpop.f32.mrb[0].mxu0
    %v1370 = vpop.f32.mrb[0].mxu0
    %1371 = vdwg.mxu0
    %1372 = vmatprep.subr.bf16.mxu0 %v1044
    %1373 = vmatpush1.bf16.msra.mxu0 %v1043
    %1374 = vmatprep.subr.bf16.mxu0 %v1052
    %1375 = vmatpush1.bf16.msra.mxu0 %v1051
    %1376 = vmatprep.subr.bf16.mxu0 %v1060
    %1377 = vmatpush1.bf16.msra.mxu0 %v1059
    %1378 = vmatprep.subr.bf16.mxu0 %v1068
    %1379 = vmatpush1.bf16.msra.mxu0 %v1067
    %1380 = vmatprep.subr.bf16.mxu0 %v1076
    %1381 = vmatpush1.bf16.msra.mxu0 %v1075
    %1382 = vmatprep.subr.bf16.mxu0 %v1084
    %1383 = vmatpush1.bf16.msra.mxu0 %v1083
    %1384 = vmatprep.subr.bf16.mxu0 %v1092
    %1385 = vmatpush1.bf16.msra.mxu0 %v1091
    %1386 = vmatprep.subr.bf16.mxu0 %v1100
    %1387 = vmatpush1.bf16.msra.mxu0 %v1099
    %1388 = vmatprep.subr.bf16.mxu0 %v1108
    %1389 = vmatpush1.bf16.msra.mxu0 %v1107
    %1390 = vmatprep.subr.bf16.mxu0 %v1116
    %1391 = vmatpush1.bf16.msra.mxu0 %v1115
    %1392 = vmatprep.subr.bf16.mxu0 %v1124
    %1393 = vmatpush1.bf16.msra.mxu0 %v1123
    %1394 = vmatprep.subr.bf16.mxu0 %v1132
    %1395 = vmatpush1.bf16.msra.mxu0 %v1131
    %1396 = vmatprep.subr.bf16.mxu0 %v1140
    %1397 = vmatpush1.bf16.msra.mxu0 %v1139
    %1398 = vmatprep.subr.bf16.mxu0 %v1148
    %1399 = vmatpush1.bf16.msra.mxu0 %v1147
    %1400 = vmatprep.subr.bf16.mxu0 %v1156
    %1401 = vmatpush1.bf16.msra.mxu0 %v1155
    %1402 = vmatprep.subr.bf16.mxu0 %v1164
    %1403 = vmatpush1.bf16.msra.mxu0 %v1163
    %1404 = vmatprep.mubr.bf16.mxu0 %v910
    %1405 = vmatmul.mubr.bf16.gmra.mrb[0].mxu0 %v909
    %v1406 = vpop.f32.mrb[0].mxu0
    %v1407 = vadd.f32 %v1366, %v1406
    %v1408 = vpop.f32.mrb[0].mxu0
    %v1409 = vadd.f32 %v1368, %v1408
    %v1410 = vpop.f32.mrb[0].mxu0
    %v1411 = vpop.f32.mrb[0].mxu0
    %1412 = vdwg.mxu0
    %1413 = vmatprep.subr.bf16.mxu0 %v918
    %1414 = vmatpush1.bf16.msra.mxu0 %v917
    %1415 = vmatprep.subr.bf16.mxu0 %v926
    %1416 = vmatpush1.bf16.msra.mxu0 %v925
    %1417 = vmatprep.subr.bf16.mxu0 %v934
    %1418 = vmatpush1.bf16.msra.mxu0 %v933
    %1419 = vmatprep.subr.bf16.mxu0 %v942
    %1420 = vmatpush1.bf16.msra.mxu0 %v941
    %1421 = vmatprep.subr.bf16.mxu0 %v950
    %1422 = vmatpush1.bf16.msra.mxu0 %v949
    %1423 = vmatprep.subr.bf16.mxu0 %v958
    %1424 = vmatpush1.bf16.msra.mxu0 %v957
    %1425 = vmatprep.subr.bf16.mxu0 %v966
    %1426 = vmatpush1.bf16.msra.mxu0 %v965
    %1427 = vmatprep.subr.bf16.mxu0 %v974
    %1428 = vmatpush1.bf16.msra.mxu0 %v973
    %1429 = vmatprep.subr.bf16.mxu0 %v982
    %1430 = vmatpush1.bf16.msra.mxu0 %v981
    %1431 = vmatprep.subr.bf16.mxu0 %v990
    %1432 = vmatpush1.bf16.msra.mxu0 %v989
    %1433 = vmatprep.subr.bf16.mxu0 %v998
    %1434 = vmatpush1.bf16.msra.mxu0 %v997
    %1435 = vmatprep.subr.bf16.mxu0 %v1006
    %1436 = vmatpush1.bf16.msra.mxu0 %v1005
    %1437 = vmatprep.subr.bf16.mxu0 %v1014
    %1438 = vmatpush1.bf16.msra.mxu0 %v1013
    %1439 = vmatprep.subr.bf16.mxu0 %v1022
    %1440 = vmatpush1.bf16.msra.mxu0 %v1021
    %1441 = vmatprep.subr.bf16.mxu0 %v1030
    %1442 = vmatpush1.bf16.msra.mxu0 %v1029
    %1443 = vmatprep.subr.bf16.mxu0 %v1038
    %1444 = vmatpush1.bf16.msra.mxu0 %v1037
    %1445 = vmatprep.mubr.bf16.mxu0 %v908
    %1446 = vmatmul.mubr.bf16.gmra.mrb[0].mxu0 %v907
    %v1447 = vpop.f32.mrb[0].mxu0
    %v1448 = vadd.f32 0.0, %v1447
    %v1449 = vpop.f32.mrb[0].mxu0
    %v1450 = vadd.f32 0.0, %v1449
    %v1451 = vpop.f32.mrb[0].mxu0
    %v1452 = vpop.f32.mrb[0].mxu0
    %1453 = vdwg.mxu0
    %1454 = vmatprep.subr.bf16.mxu0 %v1046
    %1455 = vmatpush1.bf16.msra.mxu0 %v1045
    %1456 = vmatprep.subr.bf16.mxu0 %v1054
    %1457 = vmatpush1.bf16.msra.mxu0 %v1053
    %1458 = vmatprep.subr.bf16.mxu0 %v1062
    %1459 = vmatpush1.bf16.msra.mxu0 %v1061
    %1460 = vmatprep.subr.bf16.mxu0 %v1070
    %1461 = vmatpush1.bf16.msra.mxu0 %v1069
    %1462 = vmatprep.subr.bf16.mxu0 %v1078
    %1463 = vmatpush1.bf16.msra.mxu0 %v1077
    %1464 = vmatprep.subr.bf16.mxu0 %v1086
    %1465 = vmatpush1.bf16.msra.mxu0 %v1085
    %1466 = vmatprep.subr.bf16.mxu0 %v1094
    %1467 = vmatpush1.bf16.msra.mxu0 %v1093
    %1468 = vmatprep.subr.bf16.mxu0 %v1102
    %1469 = vmatpush1.bf16.msra.mxu0 %v1101
    %1470 = vmatprep.subr.bf16.mxu0 %v1110
    %1471 = vmatpush1.bf16.msra.mxu0 %v1109
    %1472 = vmatprep.subr.bf16.mxu0 %v1118
    %1473 = vmatpush1.bf16.msra.mxu0 %v1117
    %1474 = vmatprep.subr.bf16.mxu0 %v1126
    %1475 = vmatpush1.bf16.msra.mxu0 %v1125
    %1476 = vmatprep.subr.bf16.mxu0 %v1134
    %1477 = vmatpush1.bf16.msra.mxu0 %v1133
    %1478 = vmatprep.subr.bf16.mxu0 %v1142
    %1479 = vmatpush1.bf16.msra.mxu0 %v1141
    %1480 = vmatprep.subr.bf16.mxu0 %v1150
    %1481 = vmatpush1.bf16.msra.mxu0 %v1149
    %1482 = vmatprep.subr.bf16.mxu0 %v1158
    %1483 = vmatpush1.bf16.msra.mxu0 %v1157
    %1484 = vmatprep.subr.bf16.mxu0 %v1166
    %1485 = vmatpush1.bf16.msra.mxu0 %v1165
    %1486 = vmatprep.mubr.bf16.mxu0 %v910
    %1487 = vmatmul.mubr.bf16.gmra.mrb[0].mxu0 %v909
    %v1488 = vpop.f32.mrb[0].mxu0
    %v1489 = vadd.f32 %v1448, %v1488
    %v1490 = vpop.f32.mrb[0].mxu0
    %v1491 = vadd.f32 %v1450, %v1490
    %v1492 = vpop.f32.mrb[0].mxu0
    %v1493 = vpop.f32.mrb[0].mxu0
    %1494 = vdwg.mxu0
    %v1495 = vrot.slane %v1243, 4
    %v1496 = vadd.f32 %v1243, %v1495
    %v1497 = vrot.slane %v1496, 2
    %v1498 = vadd.f32 %v1496, %v1497
    %v1499 = vrot.slane %v1498, 1
    %v1500 = vadd.f32 %v1498, %v1499
    %v1501 = vrot.slane %v1245, 4
    %v1502 = vadd.f32 %v1245, %v1501
    %v1503 = vrot.slane %v1502, 2
    %v1504 = vadd.f32 %v1502, %v1503
    %v1505 = vrot.slane %v1504, 1
    %v1506 = vadd.f32 %v1504, %v1505
    %v1507 = vrot.slane %v1325, 4
    %v1508 = vadd.f32 %v1325, %v1507
    %v1509 = vrot.slane %v1508, 2
    %v1510 = vadd.f32 %v1508, %v1509
    %v1511 = vrot.slane %v1510, 1
    %v1512 = vadd.f32 %v1510, %v1511
    %v1513 = vrot.slane %v1327, 4
    %v1514 = vadd.f32 %v1327, %v1513
    %v1515 = vrot.slane %v1514, 2
    %v1516 = vadd.f32 %v1514, %v1515
    %v1517 = vrot.slane %v1516, 1
    %v1518 = vadd.f32 %v1516, %v1517
    %v1519 = vrot.slane %v1407, 4
    %v1520 = vadd.f32 %v1407, %v1519
    %v1521 = vrot.slane %v1520, 2
    %v1522 = vadd.f32 %v1520, %v1521
    %v1523 = vrot.slane %v1522, 1
    %v1524 = vadd.f32 %v1522, %v1523
    %v1525 = vrot.slane %v1409, 4
    %v1526 = vadd.f32 %v1409, %v1525
    %v1527 = vrot.slane %v1526, 2
    %v1528 = vadd.f32 %v1526, %v1527
    %v1529 = vrot.slane %v1528, 1
    %v1530 = vadd.f32 %v1528, %v1529
    %v1531 = vrot.slane %v1489, 4
    %v1532 = vadd.f32 %v1489, %v1531
    %v1533 = vrot.slane %v1532, 2
    %v1534 = vadd.f32 %v1532, %v1533
    %v1535 = vrot.slane %v1534, 1
    %v1536 = vadd.f32 %v1534, %v1535
    %v1537 = vrot.slane %v1491, 4
    %v1538 = vadd.f32 %v1491, %v1537
    %v1539 = vrot.slane %v1538, 2
    %v1540 = vadd.f32 %v1538, %v1539
    %v1541 = vrot.slane %v1540, 1
    %v1542 = vadd.f32 %v1540, %v1541
    %v1543 = vmul.f32 %v1500, %v444
    %v1544 = vmul.f32 %v1506, %v444
    %v1545 = vmul.f32 %v1512, %v444
    %v1546 = vmul.f32 %v1518, %v444
    %v1547 = vmul.f32 %v1524, %v444
    %v1548 = vmul.f32 %v1530, %v444
    %v1549 = vmul.f32 %v1536, %v444
    %v1550 = vmul.f32 %v1542, %v444
    %v1551 = vmul.f32 %v1243, %v1243
    %v1552 = vmul.f32 %v1245, %v1245
    %v1553 = vmul.f32 %v1325, %v1325
    %v1554 = vmul.f32 %v1327, %v1327
    %v1555 = vmul.f32 %v1407, %v1407
    %v1556 = vmul.f32 %v1409, %v1409
    %v1557 = vmul.f32 %v1489, %v1489
    %v1558 = vmul.f32 %v1491, %v1491
    %v1559 = vrot.slane %v1551, 4
    %v1560 = vadd.f32 %v1551, %v1559
    %v1561 = vrot.slane %v1560, 2
    %v1562 = vadd.f32 %v1560, %v1561
    %v1563 = vrot.slane %v1562, 1
    %v1564 = vadd.f32 %v1562, %v1563
    %v1565 = vrot.slane %v1552, 4
    %v1566 = vadd.f32 %v1552, %v1565
    %v1567 = vrot.slane %v1566, 2
    %v1568 = vadd.f32 %v1566, %v1567
    %v1569 = vrot.slane %v1568, 1
    %v1570 = vadd.f32 %v1568, %v1569
    %v1571 = vrot.slane %v1553, 4
    %v1572 = vadd.f32 %v1553, %v1571
    %v1573 = vrot.slane %v1572, 2
    %v1574 = vadd.f32 %v1572, %v1573
    %v1575 = vrot.slane %v1574, 1
    %v1576 = vadd.f32 %v1574, %v1575
    %v1577 = vrot.slane %v1554, 4
    %v1578 = vadd.f32 %v1554, %v1577
    %v1579 = vrot.slane %v1578, 2
    %v1580 = vadd.f32 %v1578, %v1579
    %v1581 = vrot.slane %v1580, 1
    %v1582 = vadd.f32 %v1580, %v1581
    %v1583 = vrot.slane %v1555, 4
    %v1584 = vadd.f32 %v1555, %v1583
    %v1585 = vrot.slane %v1584, 2
    %v1586 = vadd.f32 %v1584, %v1585
    %v1587 = vrot.slane %v1586, 1
    %v1588 = vadd.f32 %v1586, %v1587
    %v1589 = vrot.slane %v1556, 4
    %v1590 = vadd.f32 %v1556, %v1589
    %v1591 = vrot.slane %v1590, 2
    %v1592 = vadd.f32 %v1590, %v1591
    %v1593 = vrot.slane %v1592, 1
    %v1594 = vadd.f32 %v1592, %v1593
    %v1595 = vrot.slane %v1557, 4
    %v1596 = vadd.f32 %v1557, %v1595
    %v1597 = vrot.slane %v1596, 2
    %v1598 = vadd.f32 %v1596, %v1597
    %v1599 = vrot.slane %v1598, 1
    %v1600 = vadd.f32 %v1598, %v1599
    %v1601 = vrot.slane %v1558, 4
    %v1602 = vadd.f32 %v1558, %v1601
    %v1603 = vrot.slane %v1602, 2
    %v1604 = vadd.f32 %v1602, %v1603
    %v1605 = vrot.slane %v1604, 1
    %v1606 = vadd.f32 %v1604, %v1605
    %v1607 = vmul.f32 %v1564, %v444
    %v1608 = vmul.f32 %v1570, %v444
    %v1609 = vmul.f32 %v1576, %v444
    %v1610 = vmul.f32 %v1582, %v444
    %v1611 = vmul.f32 %v1588, %v444
    %v1612 = vmul.f32 %v1594, %v444
    %v1613 = vmul.f32 %v1600, %v444
    %v1614 = vmul.f32 %v1606, %v444
    %v1615 = vmul.f32 %v1543, %v1543
    %v1616 = vmul.f32 %v1544, %v1544
    %v1617 = vmul.f32 %v1545, %v1545
    %v1618 = vmul.f32 %v1546, %v1546
    %v1619 = vmul.f32 %v1547, %v1547
    %v1620 = vmul.f32 %v1548, %v1548
    %v1621 = vmul.f32 %v1549, %v1549
    %v1622 = vmul.f32 %v1550, %v1550
    %v1623 = vsub.f32 %v1607, %v1615
    %v1624 = vsub.f32 %v1608, %v1616
    %v1625 = vsub.f32 %v1609, %v1617
    %v1626 = vsub.f32 %v1610, %v1618
    %v1627 = vsub.f32 %v1611, %v1619
    %v1628 = vsub.f32 %v1612, %v1620
    %v1629 = vsub.f32 %v1613, %v1621
    %v1630 = vsub.f32 %v1614, %v1622
    %v1631 = vmax.f32 %v1623, 0.0
    %v1632 = vmax.f32 %v1624, 0.0
    %v1633 = vmax.f32 %v1625, 0.0
    %v1634 = vmax.f32 %v1626, 0.0
    %v1635 = vmax.f32 %v1627, 0.0
    %v1636 = vmax.f32 %v1628, 0.0
    %v1637 = vmax.f32 %v1629, 0.0
    %v1638 = vmax.f32 %v1630, 0.0
    %v1639 = vadd.f32 %v1631, 0.8
    %v1640 = vadd.f32 %v1632, 0.8
    %v1641 = vadd.f32 %v1633, 0.8
    %v1642 = vadd.f32 %v1634, 0.8
    %v1643 = vadd.f32 %v1635, 0.8
    %v1644 = vadd.f32 %v1636, 0.8
    %v1645 = vadd.f32 %v1637, 0.8
    %v1646 = vadd.f32 %v1638, 0.8
    %v1647 = vrsqrt.pop %v1639
    %v1648 = vrsqrt.pop %v1640
    %v1649 = vrsqrt.pop %v1641
    %v1650 = vrsqrt.pop %v1642
    %v1651 = vrsqrt.pop %v1643
    %v1652 = vrsqrt.pop %v1644
    %v1653 = vrsqrt.pop %v1645
    %v1654 = vrsqrt.pop %v1646
    %v1663 = vcombine.low %v1647, %v1648
    %v1664 = vcombine.low %v1649, %v1650
    %v1665 = vcombine.low %v1651, %v1652
    %v1666 = vcombine.low %v1653, %v1654
    %v1668 = vunpack.c.l.s4 1966171168
    %v1669 = vunpack.c.0.s8 %v1668
    %v1670 = vlaneseq
    %v1671 = vshrl.u32 %v1670, 7
    %v1672 = vsub.s32 %v1669, %v1671
    %v1673 = vrot.slane %v1663, %v1672
    %v1675 = vunpack.c.l.s4 1966171168
    %v1676 = vunpack.c.0.s8 %v1675
    %v1677 = vlaneseq
    %v1678 = vshrl.u32 %v1677, 7
    %v1679 = vsub.s32 %v1676, %v1678
    %v1680 = vrot.slane %v1664, %v1679
    %v1682 = vunpack.c.l.s4 1966171168
    %v1683 = vunpack.c.0.s8 %v1682
    %v1684 = vlaneseq
    %v1685 = vshrl.u32 %v1684, 7
    %v1686 = vsub.s32 %v1683, %v1685
    %v1687 = vrot.slane %v1665, %v1686
    %v1689 = vunpack.c.l.s4 1966171168
    %v1690 = vunpack.c.0.s8 %v1689
    %v1691 = vlaneseq
    %v1692 = vshrl.u32 %v1691, 7
    %v1693 = vsub.s32 %v1690, %v1692
    %v1694 = vrot.slane %v1666, %v1693
    %v1695 = vcombine.low %v1673, %v1680
    %v1696 = vcombine.low %v1687, %v1694
    %v1698 = vunpack.c.l.s4 1966171168
    %v1699 = vunpack.c.0.s8 %v1698
    %v1700 = vlaneseq
    %v1701 = vshrl.u32 %v1700, 7
    %v1702 = vsub.s32 %v1699, %v1701
    %v1703 = vrot.slane %v1695, %v1702
    %v1705 = vunpack.c.l.s4 1966171168
    %v1706 = vunpack.c.0.s8 %v1705
    %v1707 = vlaneseq
    %v1708 = vshrl.u32 %v1707, 7
    %v1709 = vsub.s32 %v1706, %v1708
    %v1710 = vrot.slane %v1696, %v1709
    %v1711 = vcombine.low %v1703, %v1710
    %v1713 = vmul.f32 %v177, %v1711
    %v1715 = vlaneseq
    %v1716 = vshrl.u32 %v1715, 7
    %v1717 = vsub.s32 0, %v1716
    %v1718 = vrot.slane %v1713, %v1717
    %v1719 = vlaneseq
    %v1720 = vshrl.u32 %v1719, 7
    %v1721 = vsub.s32 1, %v1720
    %v1722 = vrot.slane %v1713, %v1721
    %v1723 = vlaneseq
    %v1724 = vshrl.u32 %v1723, 7
    %v1725 = vsub.s32 2, %v1724
    %v1726 = vrot.slane %v1713, %v1725
    %v1727 = vlaneseq
    %v1728 = vshrl.u32 %v1727, 7
    %v1729 = vsub.s32 3, %v1728
    %v1730 = vrot.slane %v1713, %v1729
    %v1731 = vlaneseq
    %v1732 = vshrl.u32 %v1731, 7
    %v1733 = vsub.s32 4, %v1732
    %v1734 = vrot.slane %v1713, %v1733
    %v1735 = vlaneseq
    %v1736 = vshrl.u32 %v1735, 7
    %v1737 = vsub.s32 5, %v1736
    %v1738 = vrot.slane %v1713, %v1737
    %v1739 = vlaneseq
    %v1740 = vshrl.u32 %v1739, 7
    %v1741 = vsub.s32 6, %v1740
    %v1742 = vrot.slane %v1713, %v1741
    %v1743 = vlaneseq
    %v1744 = vshrl.u32 %v1743, 7
    %v1745 = vsub.s32 7, %v1744
    %v1746 = vrot.slane %v1713, %v1745
    %v1755 = vmul.f32 %v1543, %v1718
    %v1756 = vmul.f32 %v1544, %v1722
    %v1757 = vmul.f32 %v1545, %v1726
    %v1758 = vmul.f32 %v1546, %v1730
    %v1759 = vmul.f32 %v1547, %v1734
    %v1760 = vmul.f32 %v1548, %v1738
    %v1761 = vmul.f32 %v1549, %v1742
    %v1762 = vmul.f32 %v1550, %v1746
    %v1771 = vcombine.low %v1755, %v1756
    %v1772 = vcombine.low %v1757, %v1758
    %v1773 = vcombine.low %v1759, %v1760
    %v1774 = vcombine.low %v1761, %v1762
    %v1776 = vunpack.c.l.s4 1966171168
    %v1777 = vunpack.c.0.s8 %v1776
    %v1778 = vlaneseq
    %v1779 = vshrl.u32 %v1778, 7
    %v1780 = vsub.s32 %v1777, %v1779
    %v1781 = vrot.slane %v1771, %v1780
    %v1783 = vunpack.c.l.s4 1966171168
    %v1784 = vunpack.c.0.s8 %v1783
    %v1785 = vlaneseq
    %v1786 = vshrl.u32 %v1785, 7
    %v1787 = vsub.s32 %v1784, %v1786
    %v1788 = vrot.slane %v1772, %v1787
    %v1790 = vunpack.c.l.s4 1966171168
    %v1791 = vunpack.c.0.s8 %v1790
    %v1792 = vlaneseq
    %v1793 = vshrl.u32 %v1792, 7
    %v1794 = vsub.s32 %v1791, %v1793
    %v1795 = vrot.slane %v1773, %v1794
    %v1797 = vunpack.c.l.s4 1966171168
    %v1798 = vunpack.c.0.s8 %v1797
    %v1799 = vlaneseq
    %v1800 = vshrl.u32 %v1799, 7
    %v1801 = vsub.s32 %v1798, %v1800
    %v1802 = vrot.slane %v1774, %v1801
    %v1803 = vcombine.low %v1781, %v1788
    %v1804 = vcombine.low %v1795, %v1802
    %v1806 = vunpack.c.l.s4 1966171168
    %v1807 = vunpack.c.0.s8 %v1806
    %v1808 = vlaneseq
    %v1809 = vshrl.u32 %v1808, 7
    %v1810 = vsub.s32 %v1807, %v1809
    %v1811 = vrot.slane %v1803, %v1810
    %v1813 = vunpack.c.l.s4 1966171168
    %v1814 = vunpack.c.0.s8 %v1813
    %v1815 = vlaneseq
    %v1816 = vshrl.u32 %v1815, 7
    %v1817 = vsub.s32 %v1814, %v1816
    %v1818 = vrot.slane %v1804, %v1817
    %v1819 = vcombine.low %v1811, %v1818
    %v1821 = vsub.f32 %v181, %v1819
    %v1822 = vmul.f32 %v1243, %v1718
    %v1823 = vmul.f32 %v1245, %v1722
    %v1824 = vmul.f32 %v1325, %v1726
    %v1825 = vmul.f32 %v1327, %v1730
    %v1826 = vmul.f32 %v1407, %v1734
    %v1827 = vmul.f32 %v1409, %v1738
    %v1828 = vmul.f32 %v1489, %v1742
    %v1829 = vmul.f32 %v1491, %v1746
    %v1831 = vlaneseq
    %v1832 = vshrl.u32 %v1831, 7
    %v1833 = vsub.s32 0, %v1832
    %v1834 = vrot.slane %v1821, %v1833
    %v1835 = vlaneseq
    %v1836 = vshrl.u32 %v1835, 7
    %v1837 = vsub.s32 1, %v1836
    %v1838 = vrot.slane %v1821, %v1837
    %v1839 = vlaneseq
    %v1840 = vshrl.u32 %v1839, 7
    %v1841 = vsub.s32 2, %v1840
    %v1842 = vrot.slane %v1821, %v1841
    %v1843 = vlaneseq
    %v1844 = vshrl.u32 %v1843, 7
    %v1845 = vsub.s32 3, %v1844
    %v1846 = vrot.slane %v1821, %v1845
    %v1847 = vlaneseq
    %v1848 = vshrl.u32 %v1847, 7
    %v1849 = vsub.s32 4, %v1848
    %v1850 = vrot.slane %v1821, %v1849
    %v1851 = vlaneseq
    %v1852 = vshrl.u32 %v1851, 7
    %v1853 = vsub.s32 5, %v1852
    %v1854 = vrot.slane %v1821, %v1853
    %v1855 = vlaneseq
    %v1856 = vshrl.u32 %v1855, 7
    %v1857 = vsub.s32 6, %v1856
    %v1858 = vrot.slane %v1821, %v1857
    %v1859 = vlaneseq
    %v1860 = vshrl.u32 %v1859, 7
    %v1861 = vsub.s32 7, %v1860
    %v1862 = vrot.slane %v1821, %v1861
    %v1871 = vadd.f32 %v1822, %v1834
    %v1872 = vadd.f32 %v1823, %v1838
    %v1873 = vadd.f32 %v1824, %v1842
    %v1874 = vadd.f32 %v1825, %v1846
    %v1875 = vadd.f32 %v1826, %v1850
    %v1876 = vadd.f32 %v1827, %v1854
    %v1877 = vadd.f32 %v1828, %v1858
    %v1878 = vadd.f32 %v1829, %v1862
    %vm1879 = vcmp.ge.f32.partialorder %v1871, 0.0
    %vm1880 = vcmp.ge.f32.partialorder %v1872, 0.0
    %vm1881 = vcmp.ge.f32.partialorder %v1873, 0.0
    %vm1882 = vcmp.ge.f32.partialorder %v1874, 0.0
    %vm1883 = vcmp.ge.f32.partialorder %v1875, 0.0
    %vm1884 = vcmp.ge.f32.partialorder %v1876, 0.0
    %vm1885 = vcmp.ge.f32.partialorder %v1877, 0.0
    %vm1886 = vcmp.ge.f32.partialorder %v1878, 0.0
    %v1887 = vmul.f32 %v1871, 0.2
    %v1888 = vmul.f32 %v1872, 0.2
    %v1889 = vmul.f32 %v1873, 0.2
    %v1890 = vmul.f32 %v1874, 0.2
    %v1891 = vmul.f32 %v1875, 0.2
    %v1892 = vmul.f32 %v1876, 0.2
    %v1893 = vmul.f32 %v1877, 0.2
    %v1894 = vmul.f32 %v1878, 0.2
    %v1895 = vsel %vm1879, %v1871, %v1887
    %v1896 = vsel %vm1880, %v1872, %v1888
    %v1897 = vsel %vm1881, %v1873, %v1889
    %v1898 = vsel %vm1882, %v1874, %v1890
    %v1899 = vsel %vm1883, %v1875, %v1891
    %v1900 = vsel %vm1884, %v1876, %v1892
    %v1901 = vsel %vm1885, %v1877, %v1893
    %v1902 = vsel %vm1886, %v1878, %v1894
    %s1903 = smul.u32 4, 128
    %s1904 = smul.u32 %s1903, 7
    %s1905 = sshll.u32 %s1904, 4
    %1906 = dma.done %s130, %s1905
    %v1907 = vpack.c.bf16 %v1895, %v1895
    %v1908 = vpack.c.bf16 %v1896, %v1896
    %v1909 = vpack.c.bf16 %v1897, %v1897
    %v1910 = vpack.c.bf16 %v1898, %v1898
    %v1911 = vpack.c.bf16 %v1899, %v1899
    %v1912 = vpack.c.bf16 %v1900, %v1900
    %v1913 = vpack.c.bf16 %v1901, %v1901
    %v1914 = vpack.c.bf16 %v1902, %v1902
    %v1915 = vld [vmem:[#allocation4] sm:$0xff]
    %v1916 = vld [vmem:[#allocation4 + $0x8] sm:$0xff]
    %v1917 = vld [vmem:[#allocation4 + $0x10] sm:$0xff]
    %v1918 = vld [vmem:[#allocation4 + $0x18] sm:$0xff]
    %v1919 = vld [vmem:[#allocation4 + $0x20] sm:$0xff]
    %v1920 = vld [vmem:[#allocation4 + $0x28] sm:$0xff]
    %v1921 = vld [vmem:[#allocation4 + $0x30] sm:$0xff]
    %v1922 = vld [vmem:[#allocation4 + $0x38] sm:$0xff]
    %v1923 = vld [vmem:[#allocation4 + $0x40] sm:$0xff]
    %v1924 = vld [vmem:[#allocation4 + $0x48] sm:$0xff]
    %v1925 = vld [vmem:[#allocation4 + $0x50] sm:$0xff]
    %v1926 = vld [vmem:[#allocation4 + $0x58] sm:$0xff]
    %v1927 = vld [vmem:[#allocation4 + $0x60] sm:$0xff]
    %v1928 = vld [vmem:[#allocation4 + $0x68] sm:$0xff]
    %v1929 = vld [vmem:[#allocation4 + $0x70] sm:$0xff]
    %v1930 = vld [vmem:[#allocation4 + $0x78] sm:$0xff]
    %v1931 = vld [vmem:[#allocation4 + $0x80] sm:$0xff]
    %v1932 = vld [vmem:[#allocation4 + $0x88] sm:$0xff]
    %v1933 = vld [vmem:[#allocation4 + $0x90] sm:$0xff]
    %v1934 = vld [vmem:[#allocation4 + $0x98] sm:$0xff]
    %v1935 = vld [vmem:[#allocation4 + $0xa0] sm:$0xff]
    %v1936 = vld [vmem:[#allocation4 + $0xa8] sm:$0xff]
    %v1937 = vld [vmem:[#allocation4 + $0xb0] sm:$0xff]
    %v1938 = vld [vmem:[#allocation4 + $0xb8] sm:$0xff]
    %v1939 = vld [vmem:[#allocation4 + $0xc0] sm:$0xff]
    %v1940 = vld [vmem:[#allocation4 + $0xc8] sm:$0xff]
    %v1941 = vld [vmem:[#allocation4 + $0xd0] sm:$0xff]
    %v1942 = vld [vmem:[#allocation4 + $0xd8] sm:$0xff]
    %v1943 = vld [vmem:[#allocation4 + $0xe0] sm:$0xff]
    %v1944 = vld [vmem:[#allocation4 + $0xe8] sm:$0xff]
    %v1945 = vld [vmem:[#allocation4 + $0xf0] sm:$0xff]
    %v1946 = vld [vmem:[#allocation4 + $0xf8] sm:$0xff]
    %v1947 = vld [vmem:[#allocation4 + $0x100] sm:$0xff]
    %v1948 = vld [vmem:[#allocation4 + $0x108] sm:$0xff]
    %v1949 = vld [vmem:[#allocation4 + $0x110] sm:$0xff]
    %v1950 = vld [vmem:[#allocation4 + $0x118] sm:$0xff]
    %v1951 = vld [vmem:[#allocation4 + $0x120] sm:$0xff]
    %v1952 = vld [vmem:[#allocation4 + $0x128] sm:$0xff]
    %v1953 = vld [vmem:[#allocation4 + $0x130] sm:$0xff]
    %v1954 = vld [vmem:[#allocation4 + $0x138] sm:$0xff]
    %v1955 = vld [vmem:[#allocation4 + $0x140] sm:$0xff]
    %v1956 = vld [vmem:[#allocation4 + $0x148] sm:$0xff]
    %v1957 = vld [vmem:[#allocation4 + $0x150] sm:$0xff]
    %v1958 = vld [vmem:[#allocation4 + $0x158] sm:$0xff]
    %v1959 = vld [vmem:[#allocation4 + $0x160] sm:$0xff]
    %v1960 = vld [vmem:[#allocation4 + $0x168] sm:$0xff]
    %v1961 = vld [vmem:[#allocation4 + $0x170] sm:$0xff]
    %v1962 = vld [vmem:[#allocation4 + $0x178] sm:$0xff]
    %v1963 = vld [vmem:[#allocation4 + $0x180] sm:$0xff]
    %v1964 = vld [vmem:[#allocation4 + $0x188] sm:$0xff]
    %v1965 = vld [vmem:[#allocation4 + $0x190] sm:$0xff]
    %v1966 = vld [vmem:[#allocation4 + $0x198] sm:$0xff]
    %v1967 = vld [vmem:[#allocation4 + $0x1a0] sm:$0xff]
    %v1968 = vld [vmem:[#allocation4 + $0x1a8] sm:$0xff]
    %v1969 = vld [vmem:[#allocation4 + $0x1b0] sm:$0xff]
    %v1970 = vld [vmem:[#allocation4 + $0x1b8] sm:$0xff]
    %v1971 = vld [vmem:[#allocation4 + $0x1c0] sm:$0xff]
    %v1972 = vld [vmem:[#allocation4 + $0x1c8] sm:$0xff]
    %v1973 = vld [vmem:[#allocation4 + $0x1d0] sm:$0xff]
    %v1974 = vld [vmem:[#allocation4 + $0x1d8] sm:$0xff]
    %v1975 = vld [vmem:[#allocation4 + $0x1e0] sm:$0xff]
    %v1976 = vld [vmem:[#allocation4 + $0x1e8] sm:$0xff]
    %v1977 = vld [vmem:[#allocation4 + $0x1f0] sm:$0xff]
    %v1978 = vld [vmem:[#allocation4 + $0x1f8] sm:$0xff]
    %v1979 = vld [vmem:[#allocation4 + $0x200] sm:$0xff]
    %v1980 = vld [vmem:[#allocation4 + $0x208] sm:$0xff]
    %v1981 = vld [vmem:[#allocation4 + $0x210] sm:$0xff]
    %v1982 = vld [vmem:[#allocation4 + $0x218] sm:$0xff]
    %v1983 = vld [vmem:[#allocation4 + $0x220] sm:$0xff]
    %v1984 = vld [vmem:[#allocation4 + $0x228] sm:$0xff]
    %v1985 = vld [vmem:[#allocation4 + $0x230] sm:$0xff]
    %v1986 = vld [vmem:[#allocation4 + $0x238] sm:$0xff]
    %v1987 = vld [vmem:[#allocation4 + $0x240] sm:$0xff]
    %v1988 = vld [vmem:[#allocation4 + $0x248] sm:$0xff]
    %v1989 = vld [vmem:[#allocation4 + $0x250] sm:$0xff]
    %v1990 = vld [vmem:[#allocation4 + $0x258] sm:$0xff]
    %v1991 = vld [vmem:[#allocation4 + $0x260] sm:$0xff]
    %v1992 = vld [vmem:[#allocation4 + $0x268] sm:$0xff]
    %v1993 = vld [vmem:[#allocation4 + $0x270] sm:$0xff]
    %v1994 = vld [vmem:[#allocation4 + $0x278] sm:$0xff]
    %v1995 = vld [vmem:[#allocation4 + $0x280] sm:$0xff]
    %v1996 = vld [vmem:[#allocation4 + $0x288] sm:$0xff]
    %v1997 = vld [vmem:[#allocation4 + $0x290] sm:$0xff]
    %v1998 = vld [vmem:[#allocation4 + $0x298] sm:$0xff]
    %v1999 = vld [vmem:[#allocation4 + $0x2a0] sm:$0xff]
    %v2000 = vld [vmem:[#allocation4 + $0x2a8] sm:$0xff]
    %v2001 = vld [vmem:[#allocation4 + $0x2b0] sm:$0xff]
    %v2002 = vld [vmem:[#allocation4 + $0x2b8] sm:$0xff]
    %v2003 = vld [vmem:[#allocation4 + $0x2c0] sm:$0xff]
    %v2004 = vld [vmem:[#allocation4 + $0x2c8] sm:$0xff]
    %v2005 = vld [vmem:[#allocation4 + $0x2d0] sm:$0xff]
    %v2006 = vld [vmem:[#allocation4 + $0x2d8] sm:$0xff]
    %v2007 = vld [vmem:[#allocation4 + $0x2e0] sm:$0xff]
    %v2008 = vld [vmem:[#allocation4 + $0x2e8] sm:$0xff]
    %v2009 = vld [vmem:[#allocation4 + $0x2f0] sm:$0xff]
    %v2010 = vld [vmem:[#allocation4 + $0x2f8] sm:$0xff]
    %v2011 = vld [vmem:[#allocation4 + $0x300] sm:$0xff]
    %v2012 = vld [vmem:[#allocation4 + $0x308] sm:$0xff]
    %v2013 = vld [vmem:[#allocation4 + $0x310] sm:$0xff]
    %v2014 = vld [vmem:[#allocation4 + $0x318] sm:$0xff]
    %v2015 = vld [vmem:[#allocation4 + $0x320] sm:$0xff]
    %v2016 = vld [vmem:[#allocation4 + $0x328] sm:$0xff]
    %v2017 = vld [vmem:[#allocation4 + $0x330] sm:$0xff]
    %v2018 = vld [vmem:[#allocation4 + $0x338] sm:$0xff]
    %v2019 = vld [vmem:[#allocation4 + $0x340] sm:$0xff]
    %v2020 = vld [vmem:[#allocation4 + $0x348] sm:$0xff]
    %v2021 = vld [vmem:[#allocation4 + $0x350] sm:$0xff]
    %v2022 = vld [vmem:[#allocation4 + $0x358] sm:$0xff]
    %v2023 = vld [vmem:[#allocation4 + $0x360] sm:$0xff]
    %v2024 = vld [vmem:[#allocation4 + $0x368] sm:$0xff]
    %v2025 = vld [vmem:[#allocation4 + $0x370] sm:$0xff]
    %v2026 = vld [vmem:[#allocation4 + $0x378] sm:$0xff]
    %v2027 = vld [vmem:[#allocation4 + $0x380] sm:$0xff]
    %v2028 = vld [vmem:[#allocation4 + $0x388] sm:$0xff]
    %v2029 = vld [vmem:[#allocation4 + $0x390] sm:$0xff]
    %v2030 = vld [vmem:[#allocation4 + $0x398] sm:$0xff]
    %v2031 = vld [vmem:[#allocation4 + $0x3a0] sm:$0xff]
    %v2032 = vld [vmem:[#allocation4 + $0x3a8] sm:$0xff]
    %v2033 = vld [vmem:[#allocation4 + $0x3b0] sm:$0xff]
    %v2034 = vld [vmem:[#allocation4 + $0x3b8] sm:$0xff]
    %v2035 = vld [vmem:[#allocation4 + $0x3c0] sm:$0xff]
    %v2036 = vld [vmem:[#allocation4 + $0x3c8] sm:$0xff]
    %v2037 = vld [vmem:[#allocation4 + $0x3d0] sm:$0xff]
    %v2038 = vld [vmem:[#allocation4 + $0x3d8] sm:$0xff]
    %v2039 = vld [vmem:[#allocation4 + $0x3e0] sm:$0xff]
    %v2040 = vld [vmem:[#allocation4 + $0x3e8] sm:$0xff]
    %v2041 = vld [vmem:[#allocation4 + $0x3f0] sm:$0xff]
    %v2042 = vld [vmem:[#allocation4 + $0x3f8] sm:$0xff]
    %v2043 = vld [vmem:[#allocation4 + $0x400] sm:$0xff]
    %v2044 = vld [vmem:[#allocation4 + $0x408] sm:$0xff]
    %v2045 = vld [vmem:[#allocation4 + $0x410] sm:$0xff]
    %v2046 = vld [vmem:[#allocation4 + $0x418] sm:$0xff]
    %v2047 = vld [vmem:[#allocation4 + $0x420] sm:$0xff]
    %v2048 = vld [vmem:[#allocation4 + $0x428] sm:$0xff]
    %v2049 = vld [vmem:[#allocation4 + $0x430] sm:$0xff]
    %v2050 = vld [vmem:[#allocation4 + $0x438] sm:$0xff]
    %v2051 = vld [vmem:[#allocation4 + $0x440] sm:$0xff]
    %v2052 = vld [vmem:[#allocation4 + $0x448] sm:$0xff]
    %v2053 = vld [vmem:[#allocation4 + $0x450] sm:$0xff]
    %v2054 = vld [vmem:[#allocation4 + $0x458] sm:$0xff]
    %v2055 = vld [vmem:[#allocation4 + $0x460] sm:$0xff]
    %v2056 = vld [vmem:[#allocation4 + $0x468] sm:$0xff]
    %v2057 = vld [vmem:[#allocation4 + $0x470] sm:$0xff]
    %v2058 = vld [vmem:[#allocation4 + $0x478] sm:$0xff]
    %v2059 = vld [vmem:[#allocation4 + $0x480] sm:$0xff]
    %v2060 = vld [vmem:[#allocation4 + $0x488] sm:$0xff]
    %v2061 = vld [vmem:[#allocation4 + $0x490] sm:$0xff]
    %v2062 = vld [vmem:[#allocation4 + $0x498] sm:$0xff]
    %v2063 = vld [vmem:[#allocation4 + $0x4a0] sm:$0xff]
    %v2064 = vld [vmem:[#allocation4 + $0x4a8] sm:$0xff]
    %v2065 = vld [vmem:[#allocation4 + $0x4b0] sm:$0xff]
    %v2066 = vld [vmem:[#allocation4 + $0x4b8] sm:$0xff]
    %v2067 = vld [vmem:[#allocation4 + $0x4c0] sm:$0xff]
    %v2068 = vld [vmem:[#allocation4 + $0x4c8] sm:$0xff]
    %v2069 = vld [vmem:[#allocation4 + $0x4d0] sm:$0xff]
    %v2070 = vld [vmem:[#allocation4 + $0x4d8] sm:$0xff]
    %v2071 = vld [vmem:[#allocation4 + $0x4e0] sm:$0xff]
    %v2072 = vld [vmem:[#allocation4 + $0x4e8] sm:$0xff]
    %v2073 = vld [vmem:[#allocation4 + $0x4f0] sm:$0xff]
    %v2074 = vld [vmem:[#allocation4 + $0x4f8] sm:$0xff]
    %v2075 = vld [vmem:[#allocation4 + $0x500] sm:$0xff]
    %v2076 = vld [vmem:[#allocation4 + $0x508] sm:$0xff]
    %v2077 = vld [vmem:[#allocation4 + $0x510] sm:$0xff]
    %v2078 = vld [vmem:[#allocation4 + $0x518] sm:$0xff]
    %v2079 = vld [vmem:[#allocation4 + $0x520] sm:$0xff]
    %v2080 = vld [vmem:[#allocation4 + $0x528] sm:$0xff]
    %v2081 = vld [vmem:[#allocation4 + $0x530] sm:$0xff]
    %v2082 = vld [vmem:[#allocation4 + $0x538] sm:$0xff]
    %v2083 = vld [vmem:[#allocation4 + $0x540] sm:$0xff]
    %v2084 = vld [vmem:[#allocation4 + $0x548] sm:$0xff]
    %v2085 = vld [vmem:[#allocation4 + $0x550] sm:$0xff]
    %v2086 = vld [vmem:[#allocation4 + $0x558] sm:$0xff]
    %v2087 = vld [vmem:[#allocation4 + $0x560] sm:$0xff]
    %v2088 = vld [vmem:[#allocation4 + $0x568] sm:$0xff]
    %v2089 = vld [vmem:[#allocation4 + $0x570] sm:$0xff]
    %v2090 = vld [vmem:[#allocation4 + $0x578] sm:$0xff]
    %v2091 = vld [vmem:[#allocation4 + $0x580] sm:$0xff]
    %v2092 = vld [vmem:[#allocation4 + $0x588] sm:$0xff]
    %v2093 = vld [vmem:[#allocation4 + $0x590] sm:$0xff]
    %v2094 = vld [vmem:[#allocation4 + $0x598] sm:$0xff]
    %v2095 = vld [vmem:[#allocation4 + $0x5a0] sm:$0xff]
    %v2096 = vld [vmem:[#allocation4 + $0x5a8] sm:$0xff]
    %v2097 = vld [vmem:[#allocation4 + $0x5b0] sm:$0xff]
    %v2098 = vld [vmem:[#allocation4 + $0x5b8] sm:$0xff]
    %v2099 = vld [vmem:[#allocation4 + $0x5c0] sm:$0xff]
    %v2100 = vld [vmem:[#allocation4 + $0x5c8] sm:$0xff]
    %v2101 = vld [vmem:[#allocation4 + $0x5d0] sm:$0xff]
    %v2102 = vld [vmem:[#allocation4 + $0x5d8] sm:$0xff]
    %v2103 = vld [vmem:[#allocation4 + $0x5e0] sm:$0xff]
    %v2104 = vld [vmem:[#allocation4 + $0x5e8] sm:$0xff]
    %v2105 = vld [vmem:[#allocation4 + $0x5f0] sm:$0xff]
    %v2106 = vld [vmem:[#allocation4 + $0x5f8] sm:$0xff]
    %v2107 = vld [vmem:[#allocation4 + $0x600] sm:$0xff]
    %v2108 = vld [vmem:[#allocation4 + $0x608] sm:$0xff]
    %v2109 = vld [vmem:[#allocation4 + $0x610] sm:$0xff]
    %v2110 = vld [vmem:[#allocation4 + $0x618] sm:$0xff]
    %v2111 = vld [vmem:[#allocation4 + $0x620] sm:$0xff]
    %v2112 = vld [vmem:[#allocation4 + $0x628] sm:$0xff]
    %v2113 = vld [vmem:[#allocation4 + $0x630] sm:$0xff]
    %v2114 = vld [vmem:[#allocation4 + $0x638] sm:$0xff]
    %v2115 = vld [vmem:[#allocation4 + $0x640] sm:$0xff]
    %v2116 = vld [vmem:[#allocation4 + $0x648] sm:$0xff]
    %v2117 = vld [vmem:[#allocation4 + $0x650] sm:$0xff]
    %v2118 = vld [vmem:[#allocation4 + $0x658] sm:$0xff]
    %v2119 = vld [vmem:[#allocation4 + $0x660] sm:$0xff]
    %v2120 = vld [vmem:[#allocation4 + $0x668] sm:$0xff]
    %v2121 = vld [vmem:[#allocation4 + $0x670] sm:$0xff]
    %v2122 = vld [vmem:[#allocation4 + $0x678] sm:$0xff]
    %v2123 = vld [vmem:[#allocation4 + $0x680] sm:$0xff]
    %v2124 = vld [vmem:[#allocation4 + $0x688] sm:$0xff]
    %v2125 = vld [vmem:[#allocation4 + $0x690] sm:$0xff]
    %v2126 = vld [vmem:[#allocation4 + $0x698] sm:$0xff]
    %v2127 = vld [vmem:[#allocation4 + $0x6a0] sm:$0xff]
    %v2128 = vld [vmem:[#allocation4 + $0x6a8] sm:$0xff]
    %v2129 = vld [vmem:[#allocation4 + $0x6b0] sm:$0xff]
    %v2130 = vld [vmem:[#allocation4 + $0x6b8] sm:$0xff]
    %v2131 = vld [vmem:[#allocation4 + $0x6c0] sm:$0xff]
    %v2132 = vld [vmem:[#allocation4 + $0x6c8] sm:$0xff]
    %v2133 = vld [vmem:[#allocation4 + $0x6d0] sm:$0xff]
    %v2134 = vld [vmem:[#allocation4 + $0x6d8] sm:$0xff]
    %v2135 = vld [vmem:[#allocation4 + $0x6e0] sm:$0xff]
    %v2136 = vld [vmem:[#allocation4 + $0x6e8] sm:$0xff]
    %v2137 = vld [vmem:[#allocation4 + $0x6f0] sm:$0xff]
    %v2138 = vld [vmem:[#allocation4 + $0x6f8] sm:$0xff]
    %v2139 = vld [vmem:[#allocation4 + $0x700] sm:$0xff]
    %v2140 = vld [vmem:[#allocation4 + $0x708] sm:$0xff]
    %v2141 = vld [vmem:[#allocation4 + $0x710] sm:$0xff]
    %v2142 = vld [vmem:[#allocation4 + $0x718] sm:$0xff]
    %v2143 = vld [vmem:[#allocation4 + $0x720] sm:$0xff]
    %v2144 = vld [vmem:[#allocation4 + $0x728] sm:$0xff]
    %v2145 = vld [vmem:[#allocation4 + $0x730] sm:$0xff]
    %v2146 = vld [vmem:[#allocation4 + $0x738] sm:$0xff]
    %v2147 = vld [vmem:[#allocation4 + $0x740] sm:$0xff]
    %v2148 = vld [vmem:[#allocation4 + $0x748] sm:$0xff]
    %v2149 = vld [vmem:[#allocation4 + $0x750] sm:$0xff]
    %v2150 = vld [vmem:[#allocation4 + $0x758] sm:$0xff]
    %v2151 = vld [vmem:[#allocation4 + $0x760] sm:$0xff]
    %v2152 = vld [vmem:[#allocation4 + $0x768] sm:$0xff]
    %v2153 = vld [vmem:[#allocation4 + $0x770] sm:$0xff]
    %v2154 = vld [vmem:[#allocation4 + $0x778] sm:$0xff]
    %v2155 = vld [vmem:[#allocation4 + $0x780] sm:$0xff]
    %v2156 = vld [vmem:[#allocation4 + $0x788] sm:$0xff]
    %v2157 = vld [vmem:[#allocation4 + $0x790] sm:$0xff]
    %v2158 = vld [vmem:[#allocation4 + $0x798] sm:$0xff]
    %v2159 = vld [vmem:[#allocation4 + $0x7a0] sm:$0xff]
    %v2160 = vld [vmem:[#allocation4 + $0x7a8] sm:$0xff]
    %v2161 = vld [vmem:[#allocation4 + $0x7b0] sm:$0xff]
    %v2162 = vld [vmem:[#allocation4 + $0x7b8] sm:$0xff]
    %v2163 = vld [vmem:[#allocation4 + $0x7c0] sm:$0xff]
    %v2164 = vld [vmem:[#allocation4 + $0x7c8] sm:$0xff]
    %v2165 = vld [vmem:[#allocation4 + $0x7d0] sm:$0xff]
    %v2166 = vld [vmem:[#allocation4 + $0x7d8] sm:$0xff]
    %v2167 = vld [vmem:[#allocation4 + $0x7e0] sm:$0xff]
    %v2168 = vld [vmem:[#allocation4 + $0x7e8] sm:$0xff]
    %v2169 = vld [vmem:[#allocation4 + $0x7f0] sm:$0xff]
    %v2170 = vld [vmem:[#allocation4 + $0x7f8] sm:$0xff]
    %v2171 = vld [vmem:[#allocation4 + $0x800] sm:$0xff]
    %v2172 = vld [vmem:[#allocation4 + $0x808] sm:$0xff]
    %v2173 = vld [vmem:[#allocation4 + $0x810] sm:$0xff]
    %v2174 = vld [vmem:[#allocation4 + $0x818] sm:$0xff]
    %v2175 = vld [vmem:[#allocation4 + $0x820] sm:$0xff]
    %v2176 = vld [vmem:[#allocation4 + $0x828] sm:$0xff]
    %v2177 = vld [vmem:[#allocation4 + $0x830] sm:$0xff]
    %v2178 = vld [vmem:[#allocation4 + $0x838] sm:$0xff]
    %v2179 = vld [vmem:[#allocation4 + $0x840] sm:$0xff]
    %v2180 = vld [vmem:[#allocation4 + $0x848] sm:$0xff]
    %v2181 = vld [vmem:[#allocation4 + $0x850] sm:$0xff]
    %v2182 = vld [vmem:[#allocation4 + $0x858] sm:$0xff]
    %v2183 = vld [vmem:[#allocation4 + $0x860] sm:$0xff]
    %v2184 = vld [vmem:[#allocation4 + $0x868] sm:$0xff]
    %v2185 = vld [vmem:[#allocation4 + $0x870] sm:$0xff]
    %v2186 = vld [vmem:[#allocation4 + $0x878] sm:$0xff]
    %v2187 = vld [vmem:[#allocation4 + $0x880] sm:$0xff]
    %v2188 = vld [vmem:[#allocation4 + $0x888] sm:$0xff]
    %v2189 = vld [vmem:[#allocation4 + $0x890] sm:$0xff]
    %v2190 = vld [vmem:[#allocation4 + $0x898] sm:$0xff]
    %v2191 = vld [vmem:[#allocation4 + $0x8a0] sm:$0xff]
    %v2192 = vld [vmem:[#allocation4 + $0x8a8] sm:$0xff]
    %v2193 = vld [vmem:[#allocation4 + $0x8b0] sm:$0xff]
    %v2194 = vld [vmem:[#allocation4 + $0x8b8] sm:$0xff]
    %v2195 = vld [vmem:[#allocation4 + $0x8c0] sm:$0xff]
    %v2196 = vld [vmem:[#allocation4 + $0x8c8] sm:$0xff]
    %v2197 = vld [vmem:[#allocation4 + $0x8d0] sm:$0xff]
    %v2198 = vld [vmem:[#allocation4 + $0x8d8] sm:$0xff]
    %v2199 = vld [vmem:[#allocation4 + $0x8e0] sm:$0xff]
    %v2200 = vld [vmem:[#allocation4 + $0x8e8] sm:$0xff]
    %v2201 = vld [vmem:[#allocation4 + $0x8f0] sm:$0xff]
    %v2202 = vld [vmem:[#allocation4 + $0x8f8] sm:$0xff]
    %v2203 = vld [vmem:[#allocation4 + $0x900] sm:$0xff]
    %v2204 = vld [vmem:[#allocation4 + $0x908] sm:$0xff]
    %v2205 = vld [vmem:[#allocation4 + $0x910] sm:$0xff]
    %v2206 = vld [vmem:[#allocation4 + $0x918] sm:$0xff]
    %v2207 = vld [vmem:[#allocation4 + $0x920] sm:$0xff]
    %v2208 = vld [vmem:[#allocation4 + $0x928] sm:$0xff]
    %v2209 = vld [vmem:[#allocation4 + $0x930] sm:$0xff]
    %v2210 = vld [vmem:[#allocation4 + $0x938] sm:$0xff]
    %v2211 = vld [vmem:[#allocation4 + $0x940] sm:$0xff]
    %v2212 = vld [vmem:[#allocation4 + $0x948] sm:$0xff]
    %v2213 = vld [vmem:[#allocation4 + $0x950] sm:$0xff]
    %v2214 = vld [vmem:[#allocation4 + $0x958] sm:$0xff]
    %v2215 = vld [vmem:[#allocation4 + $0x960] sm:$0xff]
    %v2216 = vld [vmem:[#allocation4 + $0x968] sm:$0xff]
    %v2217 = vld [vmem:[#allocation4 + $0x970] sm:$0xff]
    %v2218 = vld [vmem:[#allocation4 + $0x978] sm:$0xff]
    %v2219 = vld [vmem:[#allocation4 + $0x980] sm:$0xff]
    %v2220 = vld [vmem:[#allocation4 + $0x988] sm:$0xff]
    %v2221 = vld [vmem:[#allocation4 + $0x990] sm:$0xff]
    %v2222 = vld [vmem:[#allocation4 + $0x998] sm:$0xff]
    %v2223 = vld [vmem:[#allocation4 + $0x9a0] sm:$0xff]
    %v2224 = vld [vmem:[#allocation4 + $0x9a8] sm:$0xff]
    %v2225 = vld [vmem:[#allocation4 + $0x9b0] sm:$0xff]
    %v2226 = vld [vmem:[#allocation4 + $0x9b8] sm:$0xff]
    %v2227 = vld [vmem:[#allocation4 + $0x9c0] sm:$0xff]
    %v2228 = vld [vmem:[#allocation4 + $0x9c8] sm:$0xff]
    %v2229 = vld [vmem:[#allocation4 + $0x9d0] sm:$0xff]
    %v2230 = vld [vmem:[#allocation4 + $0x9d8] sm:$0xff]
    %v2231 = vld [vmem:[#allocation4 + $0x9e0] sm:$0xff]
    %v2232 = vld [vmem:[#allocation4 + $0x9e8] sm:$0xff]
    %v2233 = vld [vmem:[#allocation4 + $0x9f0] sm:$0xff]
    %v2234 = vld [vmem:[#allocation4 + $0x9f8] sm:$0xff]
    %v2235 = vld [vmem:[#allocation4 + $0xa00] sm:$0xff]
    %v2236 = vld [vmem:[#allocation4 + $0xa08] sm:$0xff]
    %v2237 = vld [vmem:[#allocation4 + $0xa10] sm:$0xff]
    %v2238 = vld [vmem:[#allocation4 + $0xa18] sm:$0xff]
    %v2239 = vld [vmem:[#allocation4 + $0xa20] sm:$0xff]
    %v2240 = vld [vmem:[#allocation4 + $0xa28] sm:$0xff]
    %v2241 = vld [vmem:[#allocation4 + $0xa30] sm:$0xff]
    %v2242 = vld [vmem:[#allocation4 + $0xa38] sm:$0xff]
    %v2243 = vld [vmem:[#allocation4 + $0xa40] sm:$0xff]
    %v2244 = vld [vmem:[#allocation4 + $0xa48] sm:$0xff]
    %v2245 = vld [vmem:[#allocation4 + $0xa50] sm:$0xff]
    %v2246 = vld [vmem:[#allocation4 + $0xa58] sm:$0xff]
    %v2247 = vld [vmem:[#allocation4 + $0xa60] sm:$0xff]
    %v2248 = vld [vmem:[#allocation4 + $0xa68] sm:$0xff]
    %v2249 = vld [vmem:[#allocation4 + $0xa70] sm:$0xff]
    %v2250 = vld [vmem:[#allocation4 + $0xa78] sm:$0xff]
    %v2251 = vld [vmem:[#allocation4 + $0xa80] sm:$0xff]
    %v2252 = vld [vmem:[#allocation4 + $0xa88] sm:$0xff]
    %v2253 = vld [vmem:[#allocation4 + $0xa90] sm:$0xff]
    %v2254 = vld [vmem:[#allocation4 + $0xa98] sm:$0xff]
    %v2255 = vld [vmem:[#allocation4 + $0xaa0] sm:$0xff]
    %v2256 = vld [vmem:[#allocation4 + $0xaa8] sm:$0xff]
    %v2257 = vld [vmem:[#allocation4 + $0xab0] sm:$0xff]
    %v2258 = vld [vmem:[#allocation4 + $0xab8] sm:$0xff]
    %v2259 = vld [vmem:[#allocation4 + $0xac0] sm:$0xff]
    %v2260 = vld [vmem:[#allocation4 + $0xac8] sm:$0xff]
    %v2261 = vld [vmem:[#allocation4 + $0xad0] sm:$0xff]
    %v2262 = vld [vmem:[#allocation4 + $0xad8] sm:$0xff]
    %v2263 = vld [vmem:[#allocation4 + $0xae0] sm:$0xff]
    %v2264 = vld [vmem:[#allocation4 + $0xae8] sm:$0xff]
    %v2265 = vld [vmem:[#allocation4 + $0xaf0] sm:$0xff]
    %v2266 = vld [vmem:[#allocation4 + $0xaf8] sm:$0xff]
    %v2267 = vld [vmem:[#allocation4 + $0xb00] sm:$0xff]
    %v2268 = vld [vmem:[#allocation4 + $0xb08] sm:$0xff]
    %v2269 = vld [vmem:[#allocation4 + $0xb10] sm:$0xff]
    %v2270 = vld [vmem:[#allocation4 + $0xb18] sm:$0xff]
    %v2271 = vld [vmem:[#allocation4 + $0xb20] sm:$0xff]
    %v2272 = vld [vmem:[#allocation4 + $0xb28] sm:$0xff]
    %v2273 = vld [vmem:[#allocation4 + $0xb30] sm:$0xff]
    %v2274 = vld [vmem:[#allocation4 + $0xb38] sm:$0xff]
    %v2275 = vld [vmem:[#allocation4 + $0xb40] sm:$0xff]
    %v2276 = vld [vmem:[#allocation4 + $0xb48] sm:$0xff]
    %v2277 = vld [vmem:[#allocation4 + $0xb50] sm:$0xff]
    %v2278 = vld [vmem:[#allocation4 + $0xb58] sm:$0xff]
    %v2279 = vld [vmem:[#allocation4 + $0xb60] sm:$0xff]
    %v2280 = vld [vmem:[#allocation4 + $0xb68] sm:$0xff]
    %v2281 = vld [vmem:[#allocation4 + $0xb70] sm:$0xff]
    %v2282 = vld [vmem:[#allocation4 + $0xb78] sm:$0xff]
    %v2283 = vld [vmem:[#allocation4 + $0xb80] sm:$0xff]
    %v2284 = vld [vmem:[#allocation4 + $0xb88] sm:$0xff]
    %v2285 = vld [vmem:[#allocation4 + $0xb90] sm:$0xff]
    %v2286 = vld [vmem:[#allocation4 + $0xb98] sm:$0xff]
    %v2287 = vld [vmem:[#allocation4 + $0xba0] sm:$0xff]
    %v2288 = vld [vmem:[#allocation4 + $0xba8] sm:$0xff]
    %v2289 = vld [vmem:[#allocation4 + $0xbb0] sm:$0xff]
    %v2290 = vld [vmem:[#allocation4 + $0xbb8] sm:$0xff]
    %v2291 = vld [vmem:[#allocation4 + $0xbc0] sm:$0xff]
    %v2292 = vld [vmem:[#allocation4 + $0xbc8] sm:$0xff]
    %v2293 = vld [vmem:[#allocation4 + $0xbd0] sm:$0xff]
    %v2294 = vld [vmem:[#allocation4 + $0xbd8] sm:$0xff]
    %v2295 = vld [vmem:[#allocation4 + $0xbe0] sm:$0xff]
    %v2296 = vld [vmem:[#allocation4 + $0xbe8] sm:$0xff]
    %v2297 = vld [vmem:[#allocation4 + $0xbf0] sm:$0xff]
    %v2298 = vld [vmem:[#allocation4 + $0xbf8] sm:$0xff]
    %v2299 = vld [vmem:[#allocation4 + $0xc00] sm:$0xff]
    %v2300 = vld [vmem:[#allocation4 + $0xc08] sm:$0xff]
    %v2301 = vld [vmem:[#allocation4 + $0xc10] sm:$0xff]
    %v2302 = vld [vmem:[#allocation4 + $0xc18] sm:$0xff]
    %v2303 = vld [vmem:[#allocation4 + $0xc20] sm:$0xff]
    %v2304 = vld [vmem:[#allocation4 + $0xc28] sm:$0xff]
    %v2305 = vld [vmem:[#allocation4 + $0xc30] sm:$0xff]
    %v2306 = vld [vmem:[#allocation4 + $0xc38] sm:$0xff]
    %v2307 = vld [vmem:[#allocation4 + $0xc40] sm:$0xff]
    %v2308 = vld [vmem:[#allocation4 + $0xc48] sm:$0xff]
    %v2309 = vld [vmem:[#allocation4 + $0xc50] sm:$0xff]
    %v2310 = vld [vmem:[#allocation4 + $0xc58] sm:$0xff]
    %v2311 = vld [vmem:[#allocation4 + $0xc60] sm:$0xff]
    %v2312 = vld [vmem:[#allocation4 + $0xc68] sm:$0xff]
    %v2313 = vld [vmem:[#allocation4 + $0xc70] sm:$0xff]
    %v2314 = vld [vmem:[#allocation4 + $0xc78] sm:$0xff]
    %v2315 = vld [vmem:[#allocation4 + $0xc80] sm:$0xff]
    %v2316 = vld [vmem:[#allocation4 + $0xc88] sm:$0xff]
    %v2317 = vld [vmem:[#allocation4 + $0xc90] sm:$0xff]
    %v2318 = vld [vmem:[#allocation4 + $0xc98] sm:$0xff]
    %v2319 = vld [vmem:[#allocation4 + $0xca0] sm:$0xff]
    %v2320 = vld [vmem:[#allocation4 + $0xca8] sm:$0xff]
    %v2321 = vld [vmem:[#allocation4 + $0xcb0] sm:$0xff]
    %v2322 = vld [vmem:[#allocation4 + $0xcb8] sm:$0xff]
    %v2323 = vld [vmem:[#allocation4 + $0xcc0] sm:$0xff]
    %v2324 = vld [vmem:[#allocation4 + $0xcc8] sm:$0xff]
    %v2325 = vld [vmem:[#allocation4 + $0xcd0] sm:$0xff]
    %v2326 = vld [vmem:[#allocation4 + $0xcd8] sm:$0xff]
    %v2327 = vld [vmem:[#allocation4 + $0xce0] sm:$0xff]
    %v2328 = vld [vmem:[#allocation4 + $0xce8] sm:$0xff]
    %v2329 = vld [vmem:[#allocation4 + $0xcf0] sm:$0xff]
    %v2330 = vld [vmem:[#allocation4 + $0xcf8] sm:$0xff]
    %v2331 = vld [vmem:[#allocation4 + $0xd00] sm:$0xff]
    %v2332 = vld [vmem:[#allocation4 + $0xd08] sm:$0xff]
    %v2333 = vld [vmem:[#allocation4 + $0xd10] sm:$0xff]
    %v2334 = vld [vmem:[#allocation4 + $0xd18] sm:$0xff]
    %v2335 = vld [vmem:[#allocation4 + $0xd20] sm:$0xff]
    %v2336 = vld [vmem:[#allocation4 + $0xd28] sm:$0xff]
    %v2337 = vld [vmem:[#allocation4 + $0xd30] sm:$0xff]
    %v2338 = vld [vmem:[#allocation4 + $0xd38] sm:$0xff]
    %v2339 = vld [vmem:[#allocation4 + $0xd40] sm:$0xff]
    %v2340 = vld [vmem:[#allocation4 + $0xd48] sm:$0xff]
    %v2341 = vld [vmem:[#allocation4 + $0xd50] sm:$0xff]
    %v2342 = vld [vmem:[#allocation4 + $0xd58] sm:$0xff]
    %v2343 = vld [vmem:[#allocation4 + $0xd60] sm:$0xff]
    %v2344 = vld [vmem:[#allocation4 + $0xd68] sm:$0xff]
    %v2345 = vld [vmem:[#allocation4 + $0xd70] sm:$0xff]
    %v2346 = vld [vmem:[#allocation4 + $0xd78] sm:$0xff]
    %v2347 = vld [vmem:[#allocation4 + $0xd80] sm:$0xff]
    %v2348 = vld [vmem:[#allocation4 + $0xd88] sm:$0xff]
    %v2349 = vld [vmem:[#allocation4 + $0xd90] sm:$0xff]
    %v2350 = vld [vmem:[#allocation4 + $0xd98] sm:$0xff]
    %v2351 = vld [vmem:[#allocation4 + $0xda0] sm:$0xff]
    %v2352 = vld [vmem:[#allocation4 + $0xda8] sm:$0xff]
    %v2353 = vld [vmem:[#allocation4 + $0xdb0] sm:$0xff]
    %v2354 = vld [vmem:[#allocation4 + $0xdb8] sm:$0xff]
    %v2355 = vld [vmem:[#allocation4 + $0xdc0] sm:$0xff]
    %v2356 = vld [vmem:[#allocation4 + $0xdc8] sm:$0xff]
    %v2357 = vld [vmem:[#allocation4 + $0xdd0] sm:$0xff]
    %v2358 = vld [vmem:[#allocation4 + $0xdd8] sm:$0xff]
    %v2359 = vld [vmem:[#allocation4 + $0xde0] sm:$0xff]
    %v2360 = vld [vmem:[#allocation4 + $0xde8] sm:$0xff]
    %v2361 = vld [vmem:[#allocation4 + $0xdf0] sm:$0xff]
    %v2362 = vld [vmem:[#allocation4 + $0xdf8] sm:$0xff]
    %v2364 = vlaneseq
    %v2365 = vshrl.u32 %v2364, 7
    %v2366 = vsub.s32 0, %v2365
    %v2367 = vrot.slane %v185, %v2366
    %v2368 = vlaneseq
    %v2369 = vshrl.u32 %v2368, 7
    %v2370 = vsub.s32 1, %v2369
    %v2371 = vrot.slane %v185, %v2370
    %v2372 = vlaneseq
    %v2373 = vshrl.u32 %v2372, 7
    %v2374 = vsub.s32 2, %v2373
    %v2375 = vrot.slane %v185, %v2374
    %v2376 = vlaneseq
    %v2377 = vshrl.u32 %v2376, 7
    %v2378 = vsub.s32 3, %v2377
    %v2379 = vrot.slane %v185, %v2378
    %v2380 = vlaneseq
    %v2381 = vshrl.u32 %v2380, 7
    %v2382 = vsub.s32 4, %v2381
    %v2383 = vrot.slane %v185, %v2382
    %v2384 = vlaneseq
    %v2385 = vshrl.u32 %v2384, 7
    %v2386 = vsub.s32 5, %v2385
    %v2387 = vrot.slane %v185, %v2386
    %v2388 = vlaneseq
    %v2389 = vshrl.u32 %v2388, 7
    %v2390 = vsub.s32 6, %v2389
    %v2391 = vrot.slane %v185, %v2390
    %2399 = vmatprep.subr.bf16.mxu0 %v1916
    %2400 = vmatpush1.bf16.msra.mxu0 %v1915
    %2401 = vmatprep.subr.bf16.mxu0 %v1923
    %2402 = vmatpush1.bf16.msra.mxu0 %v1922
    %2403 = vmatprep.subr.bf16.mxu0 %v1930
    %2404 = vmatpush1.bf16.msra.mxu0 %v1929
    %2405 = vmatprep.subr.bf16.mxu0 %v1937
    %2406 = vmatpush1.bf16.msra.mxu0 %v1936
    %2407 = vmatprep.subr.bf16.mxu0 %v1944
    %2408 = vmatpush1.bf16.msra.mxu0 %v1943
    %2409 = vmatprep.subr.bf16.mxu0 %v1951
    %2410 = vmatpush1.bf16.msra.mxu0 %v1950
    %2411 = vmatprep.subr.bf16.mxu0 %v1958
    %2412 = vmatpush1.bf16.msra.mxu0 %v1957
    %2413 = vmatprep.subr.bf16.mxu0 %v1965
    %2414 = vmatpush1.bf16.msra.mxu0 %v1964
    %2415 = vmatprep.subr.bf16.mxu0 %v1972
    %2416 = vmatpush1.bf16.msra.mxu0 %v1971
    %2417 = vmatprep.subr.bf16.mxu0 %v1979
    %2418 = vmatpush1.bf16.msra.mxu0 %v1978
    %2419 = vmatprep.subr.bf16.mxu0 %v1986
    %2420 = vmatpush1.bf16.msra.mxu0 %v1985
    %2421 = vmatprep.subr.bf16.mxu0 %v1993
    %2422 = vmatpush1.bf16.msra.mxu0 %v1992
    %2423 = vmatprep.subr.bf16.mxu0 %v2000
    %2424 = vmatpush1.bf16.msra.mxu0 %v1999
    %2425 = vmatprep.subr.bf16.mxu0 %v2007
    %2426 = vmatpush1.bf16.msra.mxu0 %v2006
    %2427 = vmatprep.subr.bf16.mxu0 %v2014
    %2428 = vmatpush1.bf16.msra.mxu0 %v2013
    %2429 = vmatprep.subr.bf16.mxu0 %v2021
    %2430 = vmatpush1.bf16.msra.mxu0 %v2020
    %2431 = vmatprep.mubr.bf16.mxu0 %v1908
    %2432 = vmatmul.mubr.bf16.gmra.mrb[0].mxu0 %v1907
    %v2433 = vpop.f32.mrb[0].mxu0
    %v2434 = vadd.f32 %v2367, %v2433
    %v2435 = vpop.f32.mrb[0].mxu0
    %v2436 = vadd.f32 %v2371, %v2435
    %v2437 = vpop.f32.mrb[0].mxu0
    %v2438 = vpop.f32.mrb[0].mxu0
    %2439 = vdwg.mxu0
    %2440 = vmatprep.subr.bf16.mxu0 %v2028
    %2441 = vmatpush1.bf16.msra.mxu0 %v2027
    %2442 = vmatprep.subr.bf16.mxu0 %v2035
    %2443 = vmatpush1.bf16.msra.mxu0 %v2034
    %2444 = vmatprep.subr.bf16.mxu0 %v2042
    %2445 = vmatpush1.bf16.msra.mxu0 %v2041
    %2446 = vmatprep.subr.bf16.mxu0 %v2049
    %2447 = vmatpush1.bf16.msra.mxu0 %v2048
    %2448 = vmatprep.subr.bf16.mxu0 %v2056
    %2449 = vmatpush1.bf16.msra.mxu0 %v2055
    %2450 = vmatprep.subr.bf16.mxu0 %v2063
    %2451 = vmatpush1.bf16.msra.mxu0 %v2062
    %2452 = vmatprep.subr.bf16.mxu0 %v2070
    %2453 = vmatpush1.bf16.msra.mxu0 %v2069
    %2454 = vmatprep.subr.bf16.mxu0 %v2077
    %2455 = vmatpush1.bf16.msra.mxu0 %v2076
    %2456 = vmatprep.subr.bf16.mxu0 %v2084
    %2457 = vmatpush1.bf16.msra.mxu0 %v2083
    %2458 = vmatprep.subr.bf16.mxu0 %v2091
    %2459 = vmatpush1.bf16.msra.mxu0 %v2090
    %2460 = vmatprep.subr.bf16.mxu0 %v2098
    %2461 = vmatpush1.bf16.msra.mxu0 %v2097
    %2462 = vmatprep.subr.bf16.mxu0 %v2105
    %2463 = vmatpush1.bf16.msra.mxu0 %v2104
    %2464 = vmatprep.subr.bf16.mxu0 %v2112
    %2465 = vmatpush1.bf16.msra.mxu0 %v2111
    %2466 = vmatprep.subr.bf16.mxu0 %v2119
    %2467 = vmatpush1.bf16.msra.mxu0 %v2118
    %2468 = vmatprep.subr.bf16.mxu0 %v2126
    %2469 = vmatpush1.bf16.msra.mxu0 %v2125
    %2470 = vmatprep.subr.bf16.mxu0 %v2133
    %2471 = vmatpush1.bf16.msra.mxu0 %v2132
    %2472 = vmatprep.mubr.bf16.mxu0 %v1910
    %2473 = vmatmul.mubr.bf16.gmra.mrb[0].mxu0 %v1909
    %v2474 = vpop.f32.mrb[0].mxu0
    %v2475 = vadd.f32 %v2434, %v2474
    %v2476 = vpop.f32.mrb[0].mxu0
    %v2477 = vadd.f32 %v2436, %v2476
    %v2478 = vpop.f32.mrb[0].mxu0
    %v2479 = vpop.f32.mrb[0].mxu0
    %2480 = vdwg.mxu0
    %2481 = vmatprep.subr.bf16.mxu0 %v2140
    %2482 = vmatpush1.bf16.msra.mxu0 %v2139
    %2483 = vmatprep.subr.bf16.mxu0 %v2147
    %2484 = vmatpush1.bf16.msra.mxu0 %v2146
    %2485 = vmatprep.subr.bf16.mxu0 %v2154
    %2486 = vmatpush1.bf16.msra.mxu0 %v2153
    %2487 = vmatprep.subr.bf16.mxu0 %v2161
    %2488 = vmatpush1.bf16.msra.mxu0 %v2160
    %2489 = vmatprep.subr.bf16.mxu0 %v2168
    %2490 = vmatpush1.bf16.msra.mxu0 %v2167
    %2491 = vmatprep.subr.bf16.mxu0 %v2175
    %2492 = vmatpush1.bf16.msra.mxu0 %v2174
    %2493 = vmatprep.subr.bf16.mxu0 %v2182
    %2494 = vmatpush1.bf16.msra.mxu0 %v2181
    %2495 = vmatprep.subr.bf16.mxu0 %v2189
    %2496 = vmatpush1.bf16.msra.mxu0 %v2188
    %2497 = vmatprep.subr.bf16.mxu0 %v2196
    %2498 = vmatpush1.bf16.msra.mxu0 %v2195
    %2499 = vmatprep.subr.bf16.mxu0 %v2203
    %2500 = vmatpush1.bf16.msra.mxu0 %v2202
    %2501 = vmatprep.subr.bf16.mxu0 %v2210
    %2502 = vmatpush1.bf16.msra.mxu0 %v2209
    %2503 = vmatprep.subr.bf16.mxu0 %v2217
    %2504 = vmatpush1.bf16.msra.mxu0 %v2216
    %2505 = vmatprep.subr.bf16.mxu0 %v2224
    %2506 = vmatpush1.bf16.msra.mxu0 %v2223
    %2507 = vmatprep.subr.bf16.mxu0 %v2231
    %2508 = vmatpush1.bf16.msra.mxu0 %v2230
    %2509 = vmatprep.subr.bf16.mxu0 %v2238
    %2510 = vmatpush1.bf16.msra.mxu0 %v2237
    %2511 = vmatprep.subr.bf16.mxu0 %v2245
    %2512 = vmatpush1.bf16.msra.mxu0 %v2244
    %2513 = vmatprep.mubr.bf16.mxu0 %v1912
    %2514 = vmatmul.mubr.bf16.gmra.mrb[0].mxu0 %v1911
    %v2515 = vpop.f32.mrb[0].mxu0
    %v2516 = vadd.f32 %v2475, %v2515
    %v2517 = vpop.f32.mrb[0].mxu0
    %v2518 = vadd.f32 %v2477, %v2517
    %v2519 = vpop.f32.mrb[0].mxu0
    %v2520 = vpop.f32.mrb[0].mxu0
    %2521 = vdwg.mxu0
    %2522 = vmatprep.subr.bf16.mxu0 %v2252
    %2523 = vmatpush1.bf16.msra.mxu0 %v2251
    %2524 = vmatprep.subr.bf16.mxu0 %v2259
    %2525 = vmatpush1.bf16.msra.mxu0 %v2258
    %2526 = vmatprep.subr.bf16.mxu0 %v2266
    %2527 = vmatpush1.bf16.msra.mxu0 %v2265
    %2528 = vmatprep.subr.bf16.mxu0 %v2273
    %2529 = vmatpush1.bf16.msra.mxu0 %v2272
    %2530 = vmatprep.subr.bf16.mxu0 %v2280
    %2531 = vmatpush1.bf16.msra.mxu0 %v2279
    %2532 = vmatprep.subr.bf16.mxu0 %v2287
    %2533 = vmatpush1.bf16.msra.mxu0 %v2286
    %2534 = vmatprep.subr.bf16.mxu0 %v2294
    %2535 = vmatpush1.bf16.msra.mxu0 %v2293
    %2536 = vmatprep.subr.bf16.mxu0 %v2301
    %2537 = vmatpush1.bf16.msra.mxu0 %v2300
    %2538 = vmatprep.subr.bf16.mxu0 %v2308
    %2539 = vmatpush1.bf16.msra.mxu0 %v2307
    %2540 = vmatprep.subr.bf16.mxu0 %v2315
    %2541 = vmatpush1.bf16.msra.mxu0 %v2314
    %2542 = vmatprep.subr.bf16.mxu0 %v2322
    %2543 = vmatpush1.bf16.msra.mxu0 %v2321
    %2544 = vmatprep.subr.bf16.mxu0 %v2329
    %2545 = vmatpush1.bf16.msra.mxu0 %v2328
    %2546 = vmatprep.subr.bf16.mxu0 %v2336
    %2547 = vmatpush1.bf16.msra.mxu0 %v2335
    %2548 = vmatprep.subr.bf16.mxu0 %v2343
    %2549 = vmatpush1.bf16.msra.mxu0 %v2342
    %2550 = vmatprep.subr.bf16.mxu0 %v2350
    %2551 = vmatpush1.bf16.msra.mxu0 %v2349
    %2552 = vmatprep.subr.bf16.mxu0 %v2357
    %2553 = vmatpush1.bf16.msra.mxu0 %v2356
    %2554 = vmatprep.mubr.bf16.mxu0 %v1914
    %2555 = vmatmul.mubr.bf16.gmra.mrb[0].mxu0 %v1913
    %v2556 = vpop.f32.mrb[0].mxu0
    %v2557 = vadd.f32 %v2516, %v2556
    %v2558 = vpop.f32.mrb[0].mxu0
    %v2559 = vadd.f32 %v2518, %v2558
    %v2560 = vpop.f32.mrb[0].mxu0
    %v2561 = vpop.f32.mrb[0].mxu0
    %2562 = vdwg.mxu0
    %2563 = vmatprep.subr.bf16.mxu0 %v1918
    %2564 = vmatpush1.bf16.msra.mxu0 %v1917
    %2565 = vmatprep.subr.bf16.mxu0 %v1925
    %2566 = vmatpush1.bf16.msra.mxu0 %v1924
    %2567 = vmatprep.subr.bf16.mxu0 %v1932
    %2568 = vmatpush1.bf16.msra.mxu0 %v1931
    %2569 = vmatprep.subr.bf16.mxu0 %v1939
    %2570 = vmatpush1.bf16.msra.mxu0 %v1938
    %2571 = vmatprep.subr.bf16.mxu0 %v1946
    %2572 = vmatpush1.bf16.msra.mxu0 %v1945
    %2573 = vmatprep.subr.bf16.mxu0 %v1953
    %2574 = vmatpush1.bf16.msra.mxu0 %v1952
    %2575 = vmatprep.subr.bf16.mxu0 %v1960
    %2576 = vmatpush1.bf16.msra.mxu0 %v1959
    %2577 = vmatprep.subr.bf16.mxu0 %v1967
    %2578 = vmatpush1.bf16.msra.mxu0 %v1966
    %2579 = vmatprep.subr.bf16.mxu0 %v1974
    %2580 = vmatpush1.bf16.msra.mxu0 %v1973
    %2581 = vmatprep.subr.bf16.mxu0 %v1981
    %2582 = vmatpush1.bf16.msra.mxu0 %v1980
    %2583 = vmatprep.subr.bf16.mxu0 %v1988
    %2584 = vmatpush1.bf16.msra.mxu0 %v1987
    %2585 = vmatprep.subr.bf16.mxu0 %v1995
    %2586 = vmatpush1.bf16.msra.mxu0 %v1994
    %2587 = vmatprep.subr.bf16.mxu0 %v2002
    %2588 = vmatpush1.bf16.msra.mxu0 %v2001
    %2589 = vmatprep.subr.bf16.mxu0 %v2009
    %2590 = vmatpush1.bf16.msra.mxu0 %v2008
    %2591 = vmatprep.subr.bf16.mxu0 %v2016
    %2592 = vmatpush1.bf16.msra.mxu0 %v2015
    %2593 = vmatprep.subr.bf16.mxu0 %v2023
    %2594 = vmatpush1.bf16.msra.mxu0 %v2022
    %2595 = vmatprep.mubr.bf16.mxu0 %v1908
    %2596 = vmatmul.mubr.bf16.gmra.mrb[0].mxu0 %v1907
    %v2597 = vpop.f32.mrb[0].mxu0
    %v2598 = vadd.f32 %v2375, %v2597
    %v2599 = vpop.f32.mrb[0].mxu0
    %v2600 = vadd.f32 %v2379, %v2599
    %v2601 = vpop.f32.mrb[0].mxu0
    %v2602 = vpop.f32.mrb[0].mxu0
    %2603 = vdwg.mxu0
    %2604 = vmatprep.subr.bf16.mxu0 %v2030
    %2605 = vmatpush1.bf16.msra.mxu0 %v2029
    %2606 = vmatprep.subr.bf16.mxu0 %v2037
    %2607 = vmatpush1.bf16.msra.mxu0 %v2036
    %2608 = vmatprep.subr.bf16.mxu0 %v2044
    %2609 = vmatpush1.bf16.msra.mxu0 %v2043
    %2610 = vmatprep.subr.bf16.mxu0 %v2051
    %2611 = vmatpush1.bf16.msra.mxu0 %v2050
    %2612 = vmatprep.subr.bf16.mxu0 %v2058
    %2613 = vmatpush1.bf16.msra.mxu0 %v2057
    %2614 = vmatprep.subr.bf16.mxu0 %v2065
    %2615 = vmatpush1.bf16.msra.mxu0 %v2064
    %2616 = vmatprep.subr.bf16.mxu0 %v2072
    %2617 = vmatpush1.bf16.msra.mxu0 %v2071
    %2618 = vmatprep.subr.bf16.mxu0 %v2079
    %2619 = vmatpush1.bf16.msra.mxu0 %v2078
    %2620 = vmatprep.subr.bf16.mxu0 %v2086
    %2621 = vmatpush1.bf16.msra.mxu0 %v2085
    %2622 = vmatprep.subr.bf16.mxu0 %v2093
    %2623 = vmatpush1.bf16.msra.mxu0 %v2092
    %2624 = vmatprep.subr.bf16.mxu0 %v2100
    %2625 = vmatpush1.bf16.msra.mxu0 %v2099
    %2626 = vmatprep.subr.bf16.mxu0 %v2107
    %2627 = vmatpush1.bf16.msra.mxu0 %v2106
    %2628 = vmatprep.subr.bf16.mxu0 %v2114
    %2629 = vmatpush1.bf16.msra.mxu0 %v2113
    %2630 = vmatprep.subr.bf16.mxu0 %v2121
    %2631 = vmatpush1.bf16.msra.mxu0 %v2120
    %2632 = vmatprep.subr.bf16.mxu0 %v2128
    %2633 = vmatpush1.bf16.msra.mxu0 %v2127
    %2634 = vmatprep.subr.bf16.mxu0 %v2135
    %2635 = vmatpush1.bf16.msra.mxu0 %v2134
    %2636 = vmatprep.mubr.bf16.mxu0 %v1910
    %2637 = vmatmul.mubr.bf16.gmra.mrb[0].mxu0 %v1909
    %v2638 = vpop.f32.mrb[0].mxu0
    %v2639 = vadd.f32 %v2598, %v2638
    %v2640 = vpop.f32.mrb[0].mxu0
    %v2641 = vadd.f32 %v2600, %v2640
    %v2642 = vpop.f32.mrb[0].mxu0
    %v2643 = vpop.f32.mrb[0].mxu0
    %2644 = vdwg.mxu0
    %2645 = vmatprep.subr.bf16.mxu0 %v2142
    %2646 = vmatpush1.bf16.msra.mxu0 %v2141
    %2647 = vmatprep.subr.bf16.mxu0 %v2149
    %2648 = vmatpush1.bf16.msra.mxu0 %v2148
    %2649 = vmatprep.subr.bf16.mxu0 %v2156
    %2650 = vmatpush1.bf16.msra.mxu0 %v2155
    %2651 = vmatprep.subr.bf16.mxu0 %v2163
    %2652 = vmatpush1.bf16.msra.mxu0 %v2162
    %2653 = vmatprep.subr.bf16.mxu0 %v2170
    %2654 = vmatpush1.bf16.msra.mxu0 %v2169
    %2655 = vmatprep.subr.bf16.mxu0 %v2177
    %2656 = vmatpush1.bf16.msra.mxu0 %v2176
    %2657 = vmatprep.subr.bf16.mxu0 %v2184
    %2658 = vmatpush1.bf16.msra.mxu0 %v2183
    %2659 = vmatprep.subr.bf16.mxu0 %v2191
    %2660 = vmatpush1.bf16.msra.mxu0 %v2190
    %2661 = vmatprep.subr.bf16.mxu0 %v2198
    %2662 = vmatpush1.bf16.msra.mxu0 %v2197
    %2663 = vmatprep.subr.bf16.mxu0 %v2205
    %2664 = vmatpush1.bf16.msra.mxu0 %v2204
    %2665 = vmatprep.subr.bf16.mxu0 %v2212
    %2666 = vmatpush1.bf16.msra.mxu0 %v2211
    %2667 = vmatprep.subr.bf16.mxu0 %v2219
    %2668 = vmatpush1.bf16.msra.mxu0 %v2218
    %2669 = vmatprep.subr.bf16.mxu0 %v2226
    %2670 = vmatpush1.bf16.msra.mxu0 %v2225
    %2671 = vmatprep.subr.bf16.mxu0 %v2233
    %2672 = vmatpush1.bf16.msra.mxu0 %v2232
    %2673 = vmatprep.subr.bf16.mxu0 %v2240
    %2674 = vmatpush1.bf16.msra.mxu0 %v2239
    %2675 = vmatprep.subr.bf16.mxu0 %v2247
    %2676 = vmatpush1.bf16.msra.mxu0 %v2246
    %2677 = vmatprep.mubr.bf16.mxu0 %v1912
    %2678 = vmatmul.mubr.bf16.gmra.mrb[0].mxu0 %v1911
    %v2679 = vpop.f32.mrb[0].mxu0
    %v2680 = vadd.f32 %v2639, %v2679
    %v2681 = vpop.f32.mrb[0].mxu0
    %v2682 = vadd.f32 %v2641, %v2681
    %v2683 = vpop.f32.mrb[0].mxu0
    %v2684 = vpop.f32.mrb[0].mxu0
    %2685 = vdwg.mxu0
    %2686 = vmatprep.subr.bf16.mxu0 %v2254
    %2687 = vmatpush1.bf16.msra.mxu0 %v2253
    %2688 = vmatprep.subr.bf16.mxu0 %v2261
    %2689 = vmatpush1.bf16.msra.mxu0 %v2260
    %2690 = vmatprep.subr.bf16.mxu0 %v2268
    %2691 = vmatpush1.bf16.msra.mxu0 %v2267
    %2692 = vmatprep.subr.bf16.mxu0 %v2275
    %2693 = vmatpush1.bf16.msra.mxu0 %v2274
    %2694 = vmatprep.subr.bf16.mxu0 %v2282
    %2695 = vmatpush1.bf16.msra.mxu0 %v2281
    %2696 = vmatprep.subr.bf16.mxu0 %v2289
    %2697 = vmatpush1.bf16.msra.mxu0 %v2288
    %2698 = vmatprep.subr.bf16.mxu0 %v2296
    %2699 = vmatpush1.bf16.msra.mxu0 %v2295
    %2700 = vmatprep.subr.bf16.mxu0 %v2303
    %2701 = vmatpush1.bf16.msra.mxu0 %v2302
    %2702 = vmatprep.subr.bf16.mxu0 %v2310
    %2703 = vmatpush1.bf16.msra.mxu0 %v2309
    %2704 = vmatprep.subr.bf16.mxu0 %v2317
    %2705 = vmatpush1.bf16.msra.mxu0 %v2316
    %2706 = vmatprep.subr.bf16.mxu0 %v2324
    %2707 = vmatpush1.bf16.msra.mxu0 %v2323
    %2708 = vmatprep.subr.bf16.mxu0 %v2331
    %2709 = vmatpush1.bf16.msra.mxu0 %v2330
    %2710 = vmatprep.subr.bf16.mxu0 %v2338
    %2711 = vmatpush1.bf16.msra.mxu0 %v2337
    %2712 = vmatprep.subr.bf16.mxu0 %v2345
    %2713 = vmatpush1.bf16.msra.mxu0 %v2344
    %2714 = vmatprep.subr.bf16.mxu0 %v2352
    %2715 = vmatpush1.bf16.msra.mxu0 %v2351
    %2716 = vmatprep.subr.bf16.mxu0 %v2359
    %2717 = vmatpush1.bf16.msra.mxu0 %v2358
    %2718 = vmatprep.mubr.bf16.mxu0 %v1914
    %2719 = vmatmul.mubr.bf16.gmra.mrb[0].mxu0 %v1913
    %v2720 = vpop.f32.mrb[0].mxu0
    %v2721 = vadd.f32 %v2680, %v2720
    %v2722 = vpop.f32.mrb[0].mxu0
    %v2723 = vadd.f32 %v2682, %v2722
    %v2724 = vpop.f32.mrb[0].mxu0
    %v2725 = vpop.f32.mrb[0].mxu0
    %2726 = vdwg.mxu0
    %2727 = vmatprep.subr.bf16.mxu0 %v1920
    %2728 = vmatpush1.bf16.msra.mxu0 %v1919
    %2729 = vmatprep.subr.bf16.mxu0 %v1927
    %2730 = vmatpush1.bf16.msra.mxu0 %v1926
    %2731 = vmatprep.subr.bf16.mxu0 %v1934
    %2732 = vmatpush1.bf16.msra.mxu0 %v1933
    %2733 = vmatprep.subr.bf16.mxu0 %v1941
    %2734 = vmatpush1.bf16.msra.mxu0 %v1940
    %2735 = vmatprep.subr.bf16.mxu0 %v1948
    %2736 = vmatpush1.bf16.msra.mxu0 %v1947
    %2737 = vmatprep.subr.bf16.mxu0 %v1955
    %2738 = vmatpush1.bf16.msra.mxu0 %v1954
    %2739 = vmatprep.subr.bf16.mxu0 %v1962
    %2740 = vmatpush1.bf16.msra.mxu0 %v1961
    %2741 = vmatprep.subr.bf16.mxu0 %v1969
    %2742 = vmatpush1.bf16.msra.mxu0 %v1968
    %2743 = vmatprep.subr.bf16.mxu0 %v1976
    %2744 = vmatpush1.bf16.msra.mxu0 %v1975
    %2745 = vmatprep.subr.bf16.mxu0 %v1983
    %2746 = vmatpush1.bf16.msra.mxu0 %v1982
    %2747 = vmatprep.subr.bf16.mxu0 %v1990
    %2748 = vmatpush1.bf16.msra.mxu0 %v1989
    %2749 = vmatprep.subr.bf16.mxu0 %v1997
    %2750 = vmatpush1.bf16.msra.mxu0 %v1996
    %2751 = vmatprep.subr.bf16.mxu0 %v2004
    %2752 = vmatpush1.bf16.msra.mxu0 %v2003
    %2753 = vmatprep.subr.bf16.mxu0 %v2011
    %2754 = vmatpush1.bf16.msra.mxu0 %v2010
    %2755 = vmatprep.subr.bf16.mxu0 %v2018
    %2756 = vmatpush1.bf16.msra.mxu0 %v2017
    %2757 = vmatprep.subr.bf16.mxu0 %v2025
    %2758 = vmatpush1.bf16.msra.mxu0 %v2024
    %2759 = vmatprep.mubr.bf16.mxu0 %v1908
    %2760 = vmatmul.mubr.bf16.gmra.mrb[0].mxu0 %v1907
    %v2761 = vpop.f32.mrb[0].mxu0
    %v2762 = vadd.f32 %v2383, %v2761
    %v2763 = vpop.f32.mrb[0].mxu0
    %v2764 = vadd.f32 %v2387, %v2763
    %v2765 = vpop.f32.mrb[0].mxu0
    %v2766 = vpop.f32.mrb[0].mxu0
    %2767 = vdwg.mxu0
    %2768 = vmatprep.subr.bf16.mxu0 %v2032
    %2769 = vmatpush1.bf16.msra.mxu0 %v2031
    %2770 = vmatprep.subr.bf16.mxu0 %v2039
    %2771 = vmatpush1.bf16.msra.mxu0 %v2038
    %2772 = vmatprep.subr.bf16.mxu0 %v2046
    %2773 = vmatpush1.bf16.msra.mxu0 %v2045
    %2774 = vmatprep.subr.bf16.mxu0 %v2053
    %2775 = vmatpush1.bf16.msra.mxu0 %v2052
    %2776 = vmatprep.subr.bf16.mxu0 %v2060
    %2777 = vmatpush1.bf16.msra.mxu0 %v2059
    %2778 = vmatprep.subr.bf16.mxu0 %v2067
    %2779 = vmatpush1.bf16.msra.mxu0 %v2066
    %2780 = vmatprep.subr.bf16.mxu0 %v2074
    %2781 = vmatpush1.bf16.msra.mxu0 %v2073
    %2782 = vmatprep.subr.bf16.mxu0 %v2081
    %2783 = vmatpush1.bf16.msra.mxu0 %v2080
    %2784 = vmatprep.subr.bf16.mxu0 %v2088
    %2785 = vmatpush1.bf16.msra.mxu0 %v2087
    %2786 = vmatprep.subr.bf16.mxu0 %v2095
    %2787 = vmatpush1.bf16.msra.mxu0 %v2094
    %2788 = vmatprep.subr.bf16.mxu0 %v2102
    %2789 = vmatpush1.bf16.msra.mxu0 %v2101
    %2790 = vmatprep.subr.bf16.mxu0 %v2109
    %2791 = vmatpush1.bf16.msra.mxu0 %v2108
    %2792 = vmatprep.subr.bf16.mxu0 %v2116
    %2793 = vmatpush1.bf16.msra.mxu0 %v2115
    %2794 = vmatprep.subr.bf16.mxu0 %v2123
    %2795 = vmatpush1.bf16.msra.mxu0 %v2122
    %2796 = vmatprep.subr.bf16.mxu0 %v2130
    %2797 = vmatpush1.bf16.msra.mxu0 %v2129
    %2798 = vmatprep.subr.bf16.mxu0 %v2137
    %2799 = vmatpush1.bf16.msra.mxu0 %v2136
    %2800 = vmatprep.mubr.bf16.mxu0 %v1910
    %2801 = vmatmul.mubr.bf16.gmra.mrb[0].mxu0 %v1909
    %v2802 = vpop.f32.mrb[0].mxu0
    %v2803 = vadd.f32 %v2762, %v2802
    %v2804 = vpop.f32.mrb[0].mxu0
    %v2805 = vadd.f32 %v2764, %v2804
    %v2806 = vpop.f32.mrb[0].mxu0
    %v2807 = vpop.f32.mrb[0].mxu0
    %2808 = vdwg.mxu0
    %2809 = vmatprep.subr.bf16.mxu0 %v2144
    %2810 = vmatpush1.bf16.msra.mxu0 %v2143
    %2811 = vmatprep.subr.bf16.mxu0 %v2151
    %2812 = vmatpush1.bf16.msra.mxu0 %v2150
    %2813 = vmatprep.subr.bf16.mxu0 %v2158
    %2814 = vmatpush1.bf16.msra.mxu0 %v2157
    %2815 = vmatprep.subr.bf16.mxu0 %v2165
    %2816 = vmatpush1.bf16.msra.mxu0 %v2164
    %2817 = vmatprep.subr.bf16.mxu0 %v2172
    %2818 = vmatpush1.bf16.msra.mxu0 %v2171
    %2819 = vmatprep.subr.bf16.mxu0 %v2179
    %2820 = vmatpush1.bf16.msra.mxu0 %v2178
    %2821 = vmatprep.subr.bf16.mxu0 %v2186
    %2822 = vmatpush1.bf16.msra.mxu0 %v2185
    %2823 = vmatprep.subr.bf16.mxu0 %v2193
    %2824 = vmatpush1.bf16.msra.mxu0 %v2192
    %2825 = vmatprep.subr.bf16.mxu0 %v2200
    %2826 = vmatpush1.bf16.msra.mxu0 %v2199
    %2827 = vmatprep.subr.bf16.mxu0 %v2207
    %2828 = vmatpush1.bf16.msra.mxu0 %v2206
    %2829 = vmatprep.subr.bf16.mxu0 %v2214
    %2830 = vmatpush1.bf16.msra.mxu0 %v2213
    %2831 = vmatprep.subr.bf16.mxu0 %v2221
    %2832 = vmatpush1.bf16.msra.mxu0 %v2220
    %2833 = vmatprep.subr.bf16.mxu0 %v2228
    %2834 = vmatpush1.bf16.msra.mxu0 %v2227
    %2835 = vmatprep.subr.bf16.mxu0 %v2235
    %2836 = vmatpush1.bf16.msra.mxu0 %v2234
    %2837 = vmatprep.subr.bf16.mxu0 %v2242
    %2838 = vmatpush1.bf16.msra.mxu0 %v2241
    %2839 = vmatprep.subr.bf16.mxu0 %v2249
    %2840 = vmatpush1.bf16.msra.mxu0 %v2248
    %2841 = vmatprep.mubr.bf16.mxu0 %v1912
    %2842 = vmatmul.mubr.bf16.gmra.mrb[0].mxu0 %v1911
    %v2843 = vpop.f32.mrb[0].mxu0
    %v2844 = vadd.f32 %v2803, %v2843
    %v2845 = vpop.f32.mrb[0].mxu0
    %v2846 = vadd.f32 %v2805, %v2845
    %v2847 = vpop.f32.mrb[0].mxu0
    %v2848 = vpop.f32.mrb[0].mxu0
    %2849 = vdwg.mxu0
    %2850 = vmatprep.subr.bf16.mxu0 %v2256
    %2851 = vmatpush1.bf16.msra.mxu0 %v2255
    %2852 = vmatprep.subr.bf16.mxu0 %v2263
    %2853 = vmatpush1.bf16.msra.mxu0 %v2262
    %2854 = vmatprep.subr.bf16.mxu0 %v2270
    %2855 = vmatpush1.bf16.msra.mxu0 %v2269
    %2856 = vmatprep.subr.bf16.mxu0 %v2277
    %2857 = vmatpush1.bf16.msra.mxu0 %v2276
    %2858 = vmatprep.subr.bf16.mxu0 %v2284
    %2859 = vmatpush1.bf16.msra.mxu0 %v2283
    %2860 = vmatprep.subr.bf16.mxu0 %v2291
    %2861 = vmatpush1.bf16.msra.mxu0 %v2290
    %2862 = vmatprep.subr.bf16.mxu0 %v2298
    %2863 = vmatpush1.bf16.msra.mxu0 %v2297
    %2864 = vmatprep.subr.bf16.mxu0 %v2305
    %2865 = vmatpush1.bf16.msra.mxu0 %v2304
    %2866 = vmatprep.subr.bf16.mxu0 %v2312
    %2867 = vmatpush1.bf16.msra.mxu0 %v2311
    %2868 = vmatprep.subr.bf16.mxu0 %v2319
    %2869 = vmatpush1.bf16.msra.mxu0 %v2318
    %2870 = vmatprep.subr.bf16.mxu0 %v2326
    %2871 = vmatpush1.bf16.msra.mxu0 %v2325
    %2872 = vmatprep.subr.bf16.mxu0 %v2333
    %2873 = vmatpush1.bf16.msra.mxu0 %v2332
    %2874 = vmatprep.subr.bf16.mxu0 %v2340
    %2875 = vmatpush1.bf16.msra.mxu0 %v2339
    %2876 = vmatprep.subr.bf16.mxu0 %v2347
    %2877 = vmatpush1.bf16.msra.mxu0 %v2346
    %2878 = vmatprep.subr.bf16.mxu0 %v2354
    %2879 = vmatpush1.bf16.msra.mxu0 %v2353
    %2880 = vmatprep.subr.bf16.mxu0 %v2361
    %2881 = vmatpush1.bf16.msra.mxu0 %v2360
    %2882 = vmatprep.mubr.bf16.mxu0 %v1914
    %2883 = vmatmul.mubr.bf16.gmra.mrb[0].mxu0 %v1913
    %v2884 = vpop.f32.mrb[0].mxu0
    %v2885 = vadd.f32 %v2844, %v2884
    %v2886 = vpop.f32.mrb[0].mxu0
    %v2887 = vadd.f32 %v2846, %v2886
    %v2888 = vpop.f32.mrb[0].mxu0
    %v2889 = vpop.f32.mrb[0].mxu0
    %2890 = vdwg.mxu0
    %2891 = vmatprep.subr.bf16.mxu0 0
    %2892 = vmatpush1.bf16.msra.mxu0 %v1921
    %2893 = vmatprep.subr.bf16.mxu0 0
    %2894 = vmatpush1.bf16.msra.mxu0 %v1928
    %2895 = vmatprep.subr.bf16.mxu0 0
    %2896 = vmatpush1.bf16.msra.mxu0 %v1935
    %2897 = vmatprep.subr.bf16.mxu0 0
    %2898 = vmatpush1.bf16.msra.mxu0 %v1942
    %2899 = vmatprep.subr.bf16.mxu0 0
    %2900 = vmatpush1.bf16.msra.mxu0 %v1949
    %2901 = vmatprep.subr.bf16.mxu0 0
    %2902 = vmatpush1.bf16.msra.mxu0 %v1956
    %2903 = vmatprep.subr.bf16.mxu0 0
    %2904 = vmatpush1.bf16.msra.mxu0 %v1963
    %2905 = vmatprep.subr.bf16.mxu0 0
    %2906 = vmatpush1.bf16.msra.mxu0 %v1970
    %2907 = vmatprep.subr.bf16.mxu0 0
    %2908 = vmatpush1.bf16.msra.mxu0 %v1977
    %2909 = vmatprep.subr.bf16.mxu0 0
    %2910 = vmatpush1.bf16.msra.mxu0 %v1984
    %2911 = vmatprep.subr.bf16.mxu0 0
    %2912 = vmatpush1.bf16.msra.mxu0 %v1991
    %2913 = vmatprep.subr.bf16.mxu0 0
    %2914 = vmatpush1.bf16.msra.mxu0 %v1998
    %2915 = vmatprep.subr.bf16.mxu0 0
    %2916 = vmatpush1.bf16.msra.mxu0 %v2005
    %2917 = vmatprep.subr.bf16.mxu0 0
    %2918 = vmatpush1.bf16.msra.mxu0 %v2012
    %2919 = vmatprep.subr.bf16.mxu0 0
    %2920 = vmatpush1.bf16.msra.mxu0 %v2019
    %2921 = vmatprep.subr.bf16.mxu0 0
    %2922 = vmatpush1.bf16.msra.mxu0 %v2026
    %2923 = vmatprep.mubr.bf16.mxu0 %v1908
    %2924 = vmatmul.mubr.bf16.gmra.mrb[0].mxu0 %v1907
    %v2925 = vpop.f32.mrb[0].mxu0
    %v2926 = vadd.f32 %v2391, %v2925
    %v2927 = vpop.f32.mrb[0].mxu0
    %v2928 = vpop.f32.mrb[0].mxu0
    %v2929 = vpop.f32.mrb[0].mxu0
    %2930 = vdwg.mxu0
    %2931 = vmatprep.subr.bf16.mxu0 0
    %2932 = vmatpush1.bf16.msra.mxu0 %v2033
    %2933 = vmatprep.subr.bf16.mxu0 0
    %2934 = vmatpush1.bf16.msra.mxu0 %v2040
    %2935 = vmatprep.subr.bf16.mxu0 0
    %2936 = vmatpush1.bf16.msra.mxu0 %v2047
    %2937 = vmatprep.subr.bf16.mxu0 0
    %2938 = vmatpush1.bf16.msra.mxu0 %v2054
    %2939 = vmatprep.subr.bf16.mxu0 0
    %2940 = vmatpush1.bf16.msra.mxu0 %v2061
    %2941 = vmatprep.subr.bf16.mxu0 0
    %2942 = vmatpush1.bf16.msra.mxu0 %v2068
    %2943 = vmatprep.subr.bf16.mxu0 0
    %2944 = vmatpush1.bf16.msra.mxu0 %v2075
    %2945 = vmatprep.subr.bf16.mxu0 0
    %2946 = vmatpush1.bf16.msra.mxu0 %v2082
    %2947 = vmatprep.subr.bf16.mxu0 0
    %2948 = vmatpush1.bf16.msra.mxu0 %v2089
    %2949 = vmatprep.subr.bf16.mxu0 0
    %2950 = vmatpush1.bf16.msra.mxu0 %v2096
    %2951 = vmatprep.subr.bf16.mxu0 0
    %2952 = vmatpush1.bf16.msra.mxu0 %v2103
    %2953 = vmatprep.subr.bf16.mxu0 0
    %2954 = vmatpush1.bf16.msra.mxu0 %v2110
    %2955 = vmatprep.subr.bf16.mxu0 0
    %2956 = vmatpush1.bf16.msra.mxu0 %v2117
    %2957 = vmatprep.subr.bf16.mxu0 0
    %2958 = vmatpush1.bf16.msra.mxu0 %v2124
    %2959 = vmatprep.subr.bf16.mxu0 0
    %2960 = vmatpush1.bf16.msra.mxu0 %v2131
    %2961 = vmatprep.subr.bf16.mxu0 0
    %2962 = vmatpush1.bf16.msra.mxu0 %v2138
    %2963 = vmatprep.mubr.bf16.mxu0 %v1910
    %2964 = vmatmul.mubr.bf16.gmra.mrb[0].mxu0 %v1909
    %v2965 = vpop.f32.mrb[0].mxu0
    %v2966 = vadd.f32 %v2926, %v2965
    %v2967 = vpop.f32.mrb[0].mxu0
    %v2968 = vpop.f32.mrb[0].mxu0
    %v2969 = vpop.f32.mrb[0].mxu0
    %2970 = vdwg.mxu0
    %2971 = vmatprep.subr.bf16.mxu0 0
    %2972 = vmatpush1.bf16.msra.mxu0 %v2145
    %2973 = vmatprep.subr.bf16.mxu0 0
    %2974 = vmatpush1.bf16.msra.mxu0 %v2152
    %2975 = vmatprep.subr.bf16.mxu0 0
    %2976 = vmatpush1.bf16.msra.mxu0 %v2159
    %2977 = vmatprep.subr.bf16.mxu0 0
    %2978 = vmatpush1.bf16.msra.mxu0 %v2166
    %2979 = vmatprep.subr.bf16.mxu0 0
    %2980 = vmatpush1.bf16.msra.mxu0 %v2173
    %2981 = vmatprep.subr.bf16.mxu0 0
    %2982 = vmatpush1.bf16.msra.mxu0 %v2180
    %2983 = vmatprep.subr.bf16.mxu0 0
    %2984 = vmatpush1.bf16.msra.mxu0 %v2187
    %2985 = vmatprep.subr.bf16.mxu0 0
    %2986 = vmatpush1.bf16.msra.mxu0 %v2194
    %2987 = vmatprep.subr.bf16.mxu0 0
    %2988 = vmatpush1.bf16.msra.mxu0 %v2201
    %2989 = vmatprep.subr.bf16.mxu0 0
    %2990 = vmatpush1.bf16.msra.mxu0 %v2208
    %2991 = vmatprep.subr.bf16.mxu0 0
    %2992 = vmatpush1.bf16.msra.mxu0 %v2215
    %2993 = vmatprep.subr.bf16.mxu0 0
    %2994 = vmatpush1.bf16.msra.mxu0 %v2222
    %2995 = vmatprep.subr.bf16.mxu0 0
    %2996 = vmatpush1.bf16.msra.mxu0 %v2229
    %2997 = vmatprep.subr.bf16.mxu0 0
    %2998 = vmatpush1.bf16.msra.mxu0 %v2236
    %2999 = vmatprep.subr.bf16.mxu0 0
    %3000 = vmatpush1.bf16.msra.mxu0 %v2243
    %3001 = vmatprep.subr.bf16.mxu0 0
    %3002 = vmatpush1.bf16.msra.mxu0 %v2250
    %3003 = vmatprep.mubr.bf16.mxu0 %v1912
    %3004 = vmatmul.mubr.bf16.gmra.mrb[0].mxu0 %v1911
    %v3005 = vpop.f32.mrb[0].mxu0
    %v3006 = vadd.f32 %v2966, %v3005
    %v3007 = vpop.f32.mrb[0].mxu0
    %v3008 = vpop.f32.mrb[0].mxu0
    %v3009 = vpop.f32.mrb[0].mxu0
    %3010 = vdwg.mxu0
    %3011 = vmatprep.subr.bf16.mxu0 0
    %3012 = vmatpush1.bf16.msra.mxu0 %v2257
    %3013 = vmatprep.subr.bf16.mxu0 0
    %3014 = vmatpush1.bf16.msra.mxu0 %v2264
    %3015 = vmatprep.subr.bf16.mxu0 0
    %3016 = vmatpush1.bf16.msra.mxu0 %v2271
    %3017 = vmatprep.subr.bf16.mxu0 0
    %3018 = vmatpush1.bf16.msra.mxu0 %v2278
    %3019 = vmatprep.subr.bf16.mxu0 0
    %3020 = vmatpush1.bf16.msra.mxu0 %v2285
    %3021 = vmatprep.subr.bf16.mxu0 0
    %3022 = vmatpush1.bf16.msra.mxu0 %v2292
    %3023 = vmatprep.subr.bf16.mxu0 0
    %3024 = vmatpush1.bf16.msra.mxu0 %v2299
    %3025 = vmatprep.subr.bf16.mxu0 0
    %3026 = vmatpush1.bf16.msra.mxu0 %v2306
    %3027 = vmatprep.subr.bf16.mxu0 0
    %3028 = vmatpush1.bf16.msra.mxu0 %v2313
    %3029 = vmatprep.subr.bf16.mxu0 0
    %3030 = vmatpush1.bf16.msra.mxu0 %v2320
    %3031 = vmatprep.subr.bf16.mxu0 0
    %3032 = vmatpush1.bf16.msra.mxu0 %v2327
    %3033 = vmatprep.subr.bf16.mxu0 0
    %3034 = vmatpush1.bf16.msra.mxu0 %v2334
    %3035 = vmatprep.subr.bf16.mxu0 0
    %3036 = vmatpush1.bf16.msra.mxu0 %v2341
    %3037 = vmatprep.subr.bf16.mxu0 0
    %3038 = vmatpush1.bf16.msra.mxu0 %v2348
    %3039 = vmatprep.subr.bf16.mxu0 0
    %3040 = vmatpush1.bf16.msra.mxu0 %v2355
    %3041 = vmatprep.subr.bf16.mxu0 0
    %3042 = vmatpush1.bf16.msra.mxu0 %v2362
    %3043 = vmatprep.mubr.bf16.mxu0 %v1914
    %3044 = vmatmul.mubr.bf16.gmra.mrb[0].mxu0 %v1913
    %v3045 = vpop.f32.mrb[0].mxu0
    %v3046 = vadd.f32 %v3006, %v3045
    %v3047 = vpop.f32.mrb[0].mxu0
    %v3048 = vpop.f32.mrb[0].mxu0
    %v3049 = vpop.f32.mrb[0].mxu0
    %3050 = vdwg.mxu0
    %v3051 = vtanh.pop %v2557
    %v3052 = vtanh.pop %v2559
    %v3053 = vtanh.pop %v2721
    %v3054 = vtanh.pop %v2723
    %v3055 = vtanh.pop %v2885
    %v3056 = vtanh.pop %v2887
    %v3057 = vtanh.pop %v3046
    %3058 = vst [vmem:[%s7] sm:$0xff] %v3051
    %3059 = vst [vmem:[%s7 + $0x8] sm:$0xff] %v3052
    %3060 = vst [vmem:[%s7 + $0x10] sm:$0xff] %v3053
    %3061 = vst [vmem:[%s7 + $0x18] sm:$0xff] %v3054
    %3062 = vst [vmem:[%s7 + $0x20] sm:$0xff] %v3055
    %3063 = vst [vmem:[%s7 + $0x28] sm:$0xff] %v3056
    %3064 = vst [vmem:[%s7 + $0x30] sm:$0xff] %v3057
    // Predicated region
    $region30: #{generator_forward.1} parent=1 // pred_check
      _
    $region31: #{generator_forward.1} parent=1 // pred_check_branch
      %3066 = sbr.rel (0) target = $region33
    $region32: #{generator_forward.1} parent=1 // pred_region
      _
    $region33: #{generator_forward.1} parent=1 // pred_fallthru
      _
    // Predicated region
    $region34: #{generator_forward.1} parent=1 // pred_check
      _
    $region35: #{generator_forward.1} parent=1 // pred_check_branch
      %3068 = sbr.rel (0) target = $region37
    $region36: #{generator_forward.1} parent=1 // pred_region
      _
    $region37: #{generator_forward.1} parent=1 // pred_fallthru
      _
    %3069 = vsyncpa [#allocation7], 1
    %3070 = vsyncpa [#allocation9], 1
  %3071 = vsyncmov [#allocation5]
  %s3072 = vpop.sfrf %3071
  %p3073 = scmp.eq.s32.totalorder %s3072, 0
  %p3074 = pneg %p3073
  %3076 = shalt.err (%p3074)
  %s3077 = scalar_lea.sflag [#allocation5], 1
  %3078 = vsyncmov %s3077
  %s3079 = vpop.sfrf %3078
  %p3080 = scmp.eq.s32.totalorder %s3079, 0
  %p3081 = pneg %p3080
  %3083 = shalt.err (%p3081)
  %s3084 = scalar_lea.sflag [#allocation5], 2
  %3085 = vsyncmov %s3084
  %s3086 = vpop.sfrf %3085
  %p3087 = scmp.eq.s32.totalorder %s3086, 0
  %p3088 = pneg %p3087
  %3090 = shalt.err (%p3088)

</llo_original>
